<compile_context>
chip_gen: v7x
topology: tpu7x:2x2x1
jax: 0.10.0
libtpu: 0.0.40
codegen_flags: <defaults>
</compile_context>

<pallas_src>
import math
import jax
import jax.numpy as jnp
from jax.experimental import pallas as pl
from jax.experimental.pallas import tpu as pltpu

# ---------------- config (small, consistent with the module) ----------------
BATCH = 2
SEQ = 8
HIDDEN = 32
NUM_HEADS = 4
HEAD_SIZE = HIDDEN // NUM_HEADS          # 8
LABEL_SIZE = 5
NUM_REL = 2 * LABEL_SIZE + 1             # input_label_graph=True -> 11 relation ids


# ---------------------------- Pallas kernel ---------------------------------
def _fused_graph_attn_kernel(x_ref, wqkv_ref, bqkv_ref, arc_ref, relk_ref,
                             relv_ref, mask_ref, ctx_ref, probs_ref):
    # Block = one batch element.
    # x:     [1, S, H]           wqkv: [H, 3H] (pre-transposed)   bqkv: [1, 3H]
    # arc:   [1, S, S] int32     relk/relv: [NUM_REL, hd]         mask: [1, 1, S]
    # ctx:   [1, S, H]  (lane-dense, heads merged)
    # probs: [1, nh, S, S]
    S = x_ref.shape[1]
    H = x_ref.shape[2]
    nh = probs_ref.shape[1]
    hd = H // nh
    R = relk_ref.shape[0]

    x = x_ref[0].astype(jnp.float32)                       # [S, H]
    wqkv = wqkv_ref[...].astype(jnp.float32)               # [H, 3H]
    bqkv = bqkv_ref[...].astype(jnp.float32)               # [1, 3H]

    # ---- fused Q/K/V projection: one [S,H] x [H,3H] MXU matmul --------------
    qkv = jnp.dot(x, wqkv, preferred_element_type=jnp.float32) + bqkv   # [S, 3H]
    q_i = qkv[:, 0 * H:1 * H].reshape(S, nh, hd)           # [S, nh, hd]
    k_i = qkv[:, 1 * H:2 * H].reshape(S, nh, hd)
    v_i = qkv[:, 2 * H:3 * H].reshape(S, nh, hd)
    q_h = q_i.transpose(1, 0, 2)                           # [nh, S, hd]
    k_h = k_i.transpose(1, 0, 2)
    v_h = v_i.transpose(1, 0, 2)

    # ---- in-kernel relation-embedding "gather" as a one-hot MXU matmul ------
    arc = arc_ref[0]                                       # [S, S] int32
    rel_iota = jax.lax.broadcasted_iota(jnp.int32, (S, S, R), 2)
    onehot = (arc[:, :, None] == rel_iota).astype(jnp.float32)          # [S, S, R]
    onehot2 = onehot.reshape(S * S, R)                                  # [S*S, R]
    dpk = jnp.dot(onehot2, relk_ref[...].astype(jnp.float32),
                  preferred_element_type=jnp.float32).reshape(S, S, hd)
    dpv = jnp.dot(onehot2, relv_ref[...].astype(jnp.float32),
                  preferred_element_type=jnp.float32).reshape(S, S, hd)

    # ---- attention scores ---------------------------------------------------
    scale = 1.0 / math.sqrt(hd)
    scores = jnp.einsum('hqd,hkd->hqk', q_h, k_h,
                        preferred_element_type=jnp.float32) * scale      # [nh, S, S]
    # rel[i, h, j] = sum_d q[i,h,d] * dp_keys[i,j,d]  (batched over query i on MXU)
    rel_s = jnp.einsum('ihd,ijd->ihj', q_i, dpk,
                       preferred_element_type=jnp.float32)               # [S, nh, S]
    scores = scores + rel_s.transpose(1, 0, 2) + mask_ref[...].astype(jnp.float32)

    # ---- softmax over keys --------------------------------------------------
    m = jnp.max(scores, axis=-1, keepdims=True)
    e = jnp.exp(scores - m)
    denom = jnp.sum(e, axis=-1, keepdims=True)
    p = e * pl.reciprocal(denom, approx=True)                            # [nh, S, S]

    # ---- context: P V + relative_matmul_dpv(P, dp_values) -------------------
    ctx_h = jnp.einsum('hqk,hkd->hqd', p, v_h,
                       preferred_element_type=jnp.float32)               # [nh, S, hd]
    p_i = p.transpose(1, 0, 2)                                           # [S, nh, S]
    rel_c = jnp.einsum('ihj,ijd->ihd', p_i, dpv,
                       preferred_element_type=jnp.float32)               # [S, nh, hd]
    ctx = ctx_h.transpose(1, 0, 2) + rel_c                               # [S, nh, hd]

    # merge heads in-kernel -> lane-dense [S, H] store; no wrapper transpose.
    ctx_ref[0] = ctx.reshape(S, H).astype(ctx_ref.dtype)
    probs_ref[0] = p.astype(probs_ref.dtype)


# ------------------------------ wrapper --------------------------------------
def bert_graph_self_attention(hidden_states, attention_mask_add, graph_arc, params):
    """hidden_states: [B, S, H]; attention_mask_add: additive mask [B, 1, 1, S];
    graph_arc: int32 [B, S, S]. Returns (context [B, S, H], probs [B, nh, S, S])."""
    B, S, H = hidden_states.shape
    nh, hd = NUM_HEADS, HEAD_SIZE

    # Fuse + pre-transpose the projection weights once, host-side:
    # nn.Linear weights are [H_out, H_in]; store as [H_in, 3*H_out].
    wqkv = jnp.concatenate(
        [params["wq"].T, params["wk"].T, params["wv"].T], axis=1)        # [H, 3H]
    bqkv = jnp.concatenate(
        [params["bq"], params["bk"], params["bv"]]).reshape(1, 3 * H)    # [1, 3H]
    mask_b1s = attention_mask_add.reshape(B, 1, S)

    ctx, probs = pl.pallas_call(
        _fused_graph_attn_kernel,
        out_shape=(jax.ShapeDtypeStruct((B, S, H), jnp.float32),
                   jax.ShapeDtypeStruct((B, nh, S, S), jnp.float32)),
        grid=(B,),
        in_specs=[
            pl.BlockSpec((1, S, H), lambda b: (b, 0, 0)),         # hidden_states
            pl.BlockSpec((H, 3 * H), lambda b: (0, 0)),           # fused W^T
            pl.BlockSpec((1, 3 * H), lambda b: (0, 0)),           # fused bias
            pl.BlockSpec((1, S, S), lambda b: (b, 0, 0)),         # graph_arc ids
            pl.BlockSpec((NUM_REL, hd), lambda b: (0, 0)),        # rel_k table
            pl.BlockSpec((NUM_REL, hd), lambda b: (0, 0)),        # rel_v table
            pl.BlockSpec((1, 1, S), lambda b: (b, 0, 0)),         # additive mask
        ],
        out_specs=[
            pl.BlockSpec((1, S, H), lambda b: (b, 0, 0)),         # context (merged heads)
            pl.BlockSpec((1, nh, S, S), lambda b: (b, 0, 0, 0)),  # attention probs
        ],
        compiler_params=pltpu.CompilerParams(
            dimension_semantics=("parallel",)),
    )(hidden_states, wqkv, bqkv, graph_arc, params["rel_k"], params["rel_v"],
      mask_b1s)
    return ctx, probs


# -------------------------- pure-JAX reference -------------------------------
def reference(hidden_states, attention_mask_add, graph_arc, params):
    B, S, H = hidden_states.shape
    nh, hd = NUM_HEADS, HEAD_SIZE

    def lin(x, w, b):
        return x @ w.T + b

    def split_heads(x):
        return x.reshape(B, S, nh, hd).transpose(0, 2, 1, 3)

    q = split_heads(lin(hidden_states, params["wq"], params["bq"]))
    k = split_heads(lin(hidden_states, params["wk"], params["bk"]))
    v = split_heads(lin(hidden_states, params["wv"], params["bv"]))
    dp_k = params["rel_k"][graph_arc]
    dp_v = params["rel_v"][graph_arc]

    scores = jnp.einsum("bhid,bhjd->bhij", q, k) / math.sqrt(hd)
    scores = scores + jnp.einsum("bhid,bijd->bhij", q, dp_k)
    scores = scores + attention_mask_add
    probs = jax.nn.softmax(scores, axis=-1)
    ctx = jnp.einsum("bhij,bhjd->bhid", probs, v)
    ctx = ctx + jnp.einsum("bhij,bijd->bhid", probs, dp_v)
    context = ctx.transpose(0, 2, 1, 3).reshape(B, S, H)
    return context, probs


# ------------------------------- main -----------------------------------------
if __name__ == "__main__":
    key = jax.random.PRNGKey(0)
    ks = jax.random.split(key, 12)

    # Deterministic parameter init (shapes from the module's __init__).
    def lin_init(kw, kb):
        w = jax.random.normal(kw, (HIDDEN, HIDDEN), jnp.float32) * 0.02
        b = jax.random.normal(kb, (HIDDEN,), jnp.float32) * 0.02
        return w, b

    wq, bq = lin_init(ks[0], ks[1])
    wk, bk = lin_init(ks[2], ks[3])
    wv, bv = lin_init(ks[4], ks[5])

    # Embedding tables: xavier_uniform, row 0 zeroed (reset_parameters).
    bound = math.sqrt(6.0 / (NUM_REL + HEAD_SIZE))
    rel_k = jax.random.uniform(ks[6], (NUM_REL, HEAD_SIZE), jnp.float32,
                               minval=-bound, maxval=bound).at[0].set(0.0)
    rel_v = jax.random.uniform(ks[7], (NUM_REL, HEAD_SIZE), jnp.float32,
                               minval=-bound, maxval=bound).at[0].set(0.0)

    params = dict(wq=wq, bq=bq, wk=wk, bk=bk, wv=wv, bv=bv,
                  rel_k=rel_k, rel_v=rel_v)

    # Inputs.
    hidden_states = jax.random.normal(ks[8], (BATCH, SEQ, HIDDEN), jnp.float32)
    graph_arc = jax.random.randint(ks[9], (BATCH, SEQ, SEQ), 0, NUM_REL, jnp.int32)
    # BERT-style additive mask [B, 1, 1, S]: batch 1 has the last 2 positions padded.
    pad = jnp.ones((BATCH, SEQ), jnp.float32).at[1, SEQ - 2:].set(0.0)
    attention_mask_add = ((1.0 - pad) * -10000.0).reshape(BATCH, 1, 1, SEQ)

    context, probs = bert_graph_self_attention(
        hidden_states, attention_mask_add, graph_arc, params)
    context = jax.block_until_ready(context)
    probs = jax.block_until_ready(probs)

    ref_ctx, ref_probs = reference(hidden_states, attention_mask_add,
                                   graph_arc, params)
    assert context.shape == (BATCH, SEQ, HIDDEN)
    assert probs.shape == (BATCH, NUM_HEADS, SEQ, SEQ)
    # Tolerance relaxed from 1e-5 because the softmax uses the EUP approximate
    # reciprocal (pl.reciprocal(approx=True)).
    assert jnp.allclose(context, ref_ctx, atol=2e-3, rtol=2e-3)
    assert jnp.allclose(probs, ref_probs, atol=2e-3, rtol=2e-3)

    print("KERNEL_OK")
</pallas_src>

<mosaic_0001>
module attributes {stable_mosaic.version = 11 : i64} {
  func.func @_fused_graph_attn_kernel(%arg0: i32, %arg1: memref<1x8x32xf32, #tpu.memory_space<vmem>>, %arg2: memref<32x96xf32, #tpu.memory_space<vmem>>, %arg3: memref<1x96xf32, #tpu.memory_space<vmem>>, %arg4: memref<1x8x8xi32, #tpu.memory_space<vmem>>, %arg5: memref<11x8xf32, #tpu.memory_space<vmem>>, %arg6: memref<11x8xf32, #tpu.memory_space<vmem>>, %arg7: memref<1x1x8xf32, #tpu.memory_space<vmem>>, %arg8: memref<1x8x32xf32, #tpu.memory_space<vmem>>, %arg9: memref<1x4x8x8xf32, #tpu.memory_space<vmem>>) attributes {dimension_semantics = [#tpu.dimension_semantics<parallel>], iteration_bounds = array<i64: 2>, scalar_prefetch = 0 : i64, scratch_operands = 0 : i64, tpu.core_type = #tpu.core_type<tc>, window_params = [{transform_indices = @transform_0, window_bounds = array<i64: 1, 8, 32>}, {pipeline_mode = #tpu.pipeline_mode<synchronous>, transform_indices = @transform_1, window_bounds = array<i64: 32, 96>}, {pipeline_mode = #tpu.pipeline_mode<synchronous>, transform_indices = @transform_2, window_bounds = array<i64: 1, 96>}, {transform_indices = @transform_3, window_bounds = array<i64: 1, 8, 8>}, {pipeline_mode = #tpu.pipeline_mode<synchronous>, transform_indices = @transform_4, window_bounds = array<i64: 11, 8>}, {pipeline_mode = #tpu.pipeline_mode<synchronous>, transform_indices = @transform_5, window_bounds = array<i64: 11, 8>}, {transform_indices = @transform_6, window_bounds = array<i64: 1, 1, 8>}, {transform_indices = @transform_7, window_bounds = array<i64: 1, 8, 32>}, {transform_indices = @transform_8, window_bounds = array<i64: 1, 4, 8, 8>}]} {
    %c0 = arith.constant 0 : index
    %c0_0 = arith.constant 0 : index
    %c0_1 = arith.constant 0 : index
    %0 = vector.load %arg1[%c0, %c0_0, %c0_1] : memref<1x8x32xf32, #tpu.memory_space<vmem>>, vector<1x8x32xf32>
    %1 = vector.shape_cast %0 : vector<1x8x32xf32> to vector<8x32xf32>
    %c0_2 = arith.constant 0 : index
    %c0_3 = arith.constant 0 : index
    %2 = vector.load %arg2[%c0_2, %c0_3] : memref<32x96xf32, #tpu.memory_space<vmem>>, vector<32x96xf32>
    %c0_4 = arith.constant 0 : index
    %c0_5 = arith.constant 0 : index
    %3 = vector.load %arg3[%c0_4, %c0_5] : memref<1x96xf32, #tpu.memory_space<vmem>>, vector<1x96xf32>
    %cst = arith.constant dense<0.000000e+00> : vector<8x96xf32>
    %4 = tpu.matmul %1, %2, %cst {dimension_numbers = #tpu.dot_dimension_numbers<[1], [0], [0], [1], [0, 0, 1, 1], [], []>} : vector<8x32xf32>, vector<32x96xf32>, vector<8x96xf32> -> vector<8x96xf32>
    %5 = vector.broadcast %3 : vector<1x96xf32> to vector<8x96xf32>
    %6 = arith.addf %4, %5 : vector<8x96xf32>
    %7 = vector.extract_strided_slice %6 {offsets = [0, 0], sizes = [8, 32], strides = [1, 1]} : vector<8x96xf32> to vector<8x32xf32>
    %8 = vector.shape_cast %7 : vector<8x32xf32> to vector<8x4x8xf32>
    %9 = vector.extract_strided_slice %6 {offsets = [0, 32], sizes = [8, 32], strides = [1, 1]} : vector<8x96xf32> to vector<8x32xf32>
    %10 = vector.shape_cast %9 : vector<8x32xf32> to vector<8x4x8xf32>
    %11 = vector.extract_strided_slice %6 {offsets = [0, 64], sizes = [8, 32], strides = [1, 1]} : vector<8x96xf32> to vector<8x32xf32>
    %12 = vector.shape_cast %11 : vector<8x32xf32> to vector<8x4x8xf32>
    %13 = tpu.transpose %8, [1, 0, 2] : vector<8x4x8xf32> -> vector<4x8x8xf32>
    %14 = tpu.transpose %10, [1, 0, 2] : vector<8x4x8xf32> -> vector<4x8x8xf32>
    %15 = tpu.transpose %12, [1, 0, 2] : vector<8x4x8xf32> -> vector<4x8x8xf32>
    %c0_6 = arith.constant 0 : index
    %c0_7 = arith.constant 0 : index
    %c0_8 = arith.constant 0 : index
    %16 = vector.load %arg4[%c0_6, %c0_7, %c0_8] : memref<1x8x8xi32, #tpu.memory_space<vmem>>, vector<1x8x8xi32>
    %17 = vector.shape_cast %16 : vector<1x8x8xi32> to vector<8x8xi32>
    %18 = tpu.iota {dimensions = array<i32: 2>} : vector<8x8x11xi32>
    %19 = vector.shape_cast %17 : vector<8x8xi32> to vector<8x8x1xi32>
    %20 = vector.broadcast %19 : vector<8x8x1xi32> to vector<8x8x11xi32>
    %21 = arith.cmpi eq, %20, %18 : vector<8x8x11xi32>
    %22 = arith.extui %21 : vector<8x8x11xi1> to vector<8x8x11xi32>
    %23 = arith.sitofp %22 : vector<8x8x11xi32> to vector<8x8x11xf32>
    %24 = vector.shape_cast %23 : vector<8x8x11xf32> to vector<64x11xf32>
    %c0_9 = arith.constant 0 : index
    %c0_10 = arith.constant 0 : index
    %25 = vector.load %arg5[%c0_9, %c0_10] : memref<11x8xf32, #tpu.memory_space<vmem>>, vector<11x8xf32>
    %cst_11 = arith.constant dense<0.000000e+00> : vector<64x8xf32>
    %26 = tpu.matmul %24, %25, %cst_11 {dimension_numbers = #tpu.dot_dimension_numbers<[1], [0], [0], [1], [0, 0, 1, 1], [], []>} : vector<64x11xf32>, vector<11x8xf32>, vector<64x8xf32> -> vector<64x8xf32>
    %27 = vector.shape_cast %26 : vector<64x8xf32> to vector<8x8x8xf32>
    %c0_12 = arith.constant 0 : index
    %c0_13 = arith.constant 0 : index
    %28 = vector.load %arg6[%c0_12, %c0_13] : memref<11x8xf32, #tpu.memory_space<vmem>>, vector<11x8xf32>
    %cst_14 = arith.constant dense<0.000000e+00> : vector<64x8xf32>
    %29 = tpu.matmul %24, %28, %cst_14 {dimension_numbers = #tpu.dot_dimension_numbers<[1], [0], [0], [1], [0, 0, 1, 1], [], []>} : vector<64x11xf32>, vector<11x8xf32>, vector<64x8xf32> -> vector<64x8xf32>
    %30 = vector.shape_cast %29 : vector<64x8xf32> to vector<8x8x8xf32>
    "tpu.trace_start"() <{level = 10 : i32, message = "hqd,hkd->hqk"}> : () -> ()
    %cst_15 = arith.constant dense<0.000000e+00> : vector<4x8x8xf32>
    %31 = tpu.matmul %13, %14, %cst_15 {dimension_numbers = #tpu.dot_dimension_numbers<[2], [2], [1], [1], [0, 0, 0, 1, 1, 1], [0], [0]>} : vector<4x8x8xf32>, vector<4x8x8xf32>, vector<4x8x8xf32> -> vector<4x8x8xf32>
    "tpu.trace_stop"() : () -> ()
    %cst_16 = arith.constant 0.353553385 : f32
    %32 = vector.broadcast %cst_16 : f32 to vector<4x8x8xf32>
    %33 = arith.mulf %31, %32 : vector<4x8x8xf32>
    "tpu.trace_start"() <{level = 10 : i32, message = "ihd,ijd->ihj"}> : () -> ()
    %cst_17 = arith.constant dense<0.000000e+00> : vector<8x4x8xf32>
    %34 = tpu.matmul %8, %27, %cst_17 {dimension_numbers = #tpu.dot_dimension_numbers<[2], [2], [1], [1], [0, 0, 0, 1, 1, 1], [0], [0]>} : vector<8x4x8xf32>, vector<8x8x8xf32>, vector<8x4x8xf32> -> vector<8x4x8xf32>
    "tpu.trace_stop"() : () -> ()
    %35 = tpu.transpose %34, [1, 0, 2] : vector<8x4x8xf32> -> vector<4x8x8xf32>
    %36 = arith.addf %33, %35 : vector<4x8x8xf32>
    %c0_18 = arith.constant 0 : index
    %c0_19 = arith.constant 0 : index
    %c0_20 = arith.constant 0 : index
    %37 = vector.load %arg7[%c0_18, %c0_19, %c0_20] : memref<1x1x8xf32, #tpu.memory_space<vmem>>, vector<1x1x8xf32>
    %38 = vector.broadcast %37 : vector<1x1x8xf32> to vector<4x8x8xf32>
    %39 = arith.addf %36, %38 : vector<4x8x8xf32>
    %cst_21 = arith.constant dense<0xFF800000> : vector<4x8xf32>
    %40 = vector.multi_reduction <maximumf>, %39, %cst_21 [2] : vector<4x8x8xf32> to vector<4x8xf32>
    %41 = vector.shape_cast %40 : vector<4x8xf32> to vector<4x8x1xf32>
    %42 = vector.broadcast %41 : vector<4x8x1xf32> to vector<4x8x8xf32>
    %43 = arith.subf %39, %42 : vector<4x8x8xf32>
    %44 = math.exp %43 : vector<4x8x8xf32>
    %cst_22 = arith.constant dense<0.000000e+00> : vector<4x8xf32>
    %45 = vector.multi_reduction <add>, %44, %cst_22 [2] : vector<4x8x8xf32> to vector<4x8xf32>
    %46 = vector.shape_cast %45 : vector<4x8xf32> to vector<4x8x1xf32>
    %47 = tpu.reciprocal %46 {approx = true} : vector<4x8x1xf32> -> vector<4x8x1xf32>
    %48 = vector.broadcast %47 : vector<4x8x1xf32> to vector<4x8x8xf32>
    %49 = arith.mulf %44, %48 : vector<4x8x8xf32>
    "tpu.trace_start"() <{level = 10 : i32, message = "hqk,hkd->hqd"}> : () -> ()
    %cst_23 = arith.constant dense<0.000000e+00> : vector<4x8x8xf32>
    %50 = tpu.matmul %49, %15, %cst_23 {dimension_numbers = #tpu.dot_dimension_numbers<[2], [1], [1], [2], [0, 0, 0, 1, 1, 2], [0], [0]>} : vector<4x8x8xf32>, vector<4x8x8xf32>, vector<4x8x8xf32> -> vector<4x8x8xf32>
    "tpu.trace_stop"() : () -> ()
    %51 = tpu.transpose %49, [1, 0, 2] : vector<4x8x8xf32> -> vector<8x4x8xf32>
    "tpu.trace_start"() <{level = 10 : i32, message = "ihj,ijd->ihd"}> : () -> ()
    %cst_24 = arith.constant dense<0.000000e+00> : vector<8x4x8xf32>
    %52 = tpu.matmul %51, %30, %cst_24 {dimension_numbers = #tpu.dot_dimension_numbers<[2], [1], [1], [2], [0, 0, 0, 1, 1, 2], [0], [0]>} : vector<8x4x8xf32>, vector<8x8x8xf32>, vector<8x4x8xf32> -> vector<8x4x8xf32>
    "tpu.trace_stop"() : () -> ()
    %53 = tpu.transpose %50, [1, 0, 2] : vector<4x8x8xf32> -> vector<8x4x8xf32>
    %54 = arith.addf %53, %52 : vector<8x4x8xf32>
    %55 = vector.shape_cast %54 : vector<8x4x8xf32> to vector<8x32xf32>
    %c0_25 = arith.constant 0 : index
    %c0_26 = arith.constant 0 : index
    %c0_27 = arith.constant 0 : index
    %56 = vector.load %arg8[%c0_25, %c0_26, %c0_27] : memref<1x8x32xf32, #tpu.memory_space<vmem>>, vector<1x8x32xf32>
    %57 = vector.shape_cast %56 : vector<1x8x32xf32> to vector<8x32xf32>
    %58 = vector.shape_cast %55 : vector<8x32xf32> to vector<1x8x32xf32>
    tpu.vector_store %arg8[%c0_25, %c0_26, %c0_27], %58 {strides = array<i32>} : memref<1x8x32xf32, #tpu.memory_space<vmem>>, vector<1x8x32xf32>,
    %c0_28 = arith.constant 0 : index
    %c0_29 = arith.constant 0 : index
    %c0_30 = arith.constant 0 : index
    %c0_31 = arith.constant 0 : index
    %59 = vector.load %arg9[%c0_28, %c0_29, %c0_30, %c0_31] : memref<1x4x8x8xf32, #tpu.memory_space<vmem>>, vector<1x4x8x8xf32>
    %60 = vector.shape_cast %59 : vector<1x4x8x8xf32> to vector<4x8x8xf32>
    %61 = vector.shape_cast %49 : vector<4x8x8xf32> to vector<1x4x8x8xf32>
    tpu.vector_store %arg9[%c0_28, %c0_29, %c0_30, %c0_31], %61 {strides = array<i32>} : memref<1x4x8x8xf32, #tpu.memory_space<vmem>>, vector<1x4x8x8xf32>,
    return
  }
  func.func @transform_0(%arg0: i32) -> (i32, i32, i32) {
    %c0_i32 = arith.constant 0 : i32
    %c0_i32_0 = arith.constant 0 : i32
    %c0_i32_1 = arith.constant 0 : i32
    return %arg0, %c0_i32, %c0_i32_0 : i32, i32, i32
  }
  func.func @transform_1(%arg0: i32) -> (i32, i32) {
    %c0_i32 = arith.constant 0 : i32
    %c0_i32_0 = arith.constant 0 : i32
    %c0_i32_1 = arith.constant 0 : i32
    return %c0_i32, %c0_i32_0 : i32, i32
  }
  func.func @transform_2(%arg0: i32) -> (i32, i32) {
    %c0_i32 = arith.constant 0 : i32
    %c0_i32_0 = arith.constant 0 : i32
    %c0_i32_1 = arith.constant 0 : i32
    return %c0_i32, %c0_i32_0 : i32, i32
  }
  func.func @transform_3(%arg0: i32) -> (i32, i32, i32) {
    %c0_i32 = arith.constant 0 : i32
    %c0_i32_0 = arith.constant 0 : i32
    %c0_i32_1 = arith.constant 0 : i32
    return %arg0, %c0_i32, %c0_i32_0 : i32, i32, i32
  }
  func.func @transform_4(%arg0: i32) -> (i32, i32) {
    %c0_i32 = arith.constant 0 : i32
    %c0_i32_0 = arith.constant 0 : i32
    %c0_i32_1 = arith.constant 0 : i32
    return %c0_i32, %c0_i32_0 : i32, i32
  }
  func.func @transform_5(%arg0: i32) -> (i32, i32) {
    %c0_i32 = arith.constant 0 : i32
    %c0_i32_0 = arith.constant 0 : i32
    %c0_i32_1 = arith.constant 0 : i32
    return %c0_i32, %c0_i32_0 : i32, i32
  }
  func.func @transform_6(%arg0: i32) -> (i32, i32, i32) {
    %c0_i32 = arith.constant 0 : i32
    %c0_i32_0 = arith.constant 0 : i32
    %c0_i32_1 = arith.constant 0 : i32
    return %arg0, %c0_i32, %c0_i32_0 : i32, i32, i32
  }
  func.func @transform_7(%arg0: i32) -> (i32, i32, i32) {
    %c0_i32 = arith.constant 0 : i32
    %c0_i32_0 = arith.constant 0 : i32
    %c0_i32_1 = arith.constant 0 : i32
    return %arg0, %c0_i32, %c0_i32_0 : i32, i32, i32
  }
  func.func @transform_8(%arg0: i32) -> (i32, i32, i32, i32) {
    %c0_i32 = arith.constant 0 : i32
    %c0_i32_0 = arith.constant 0 : i32
    %c0_i32_1 = arith.constant 0 : i32
    %c0_i32_2 = arith.constant 0 : i32
    return %arg0, %c0_i32, %c0_i32_0, %c0_i32_1 : i32, i32, i32, i32
  }
}

</mosaic_0001>

<llo_original>
// kernel: tpu_custom_call.1
$region0: #{tpu_custom_call.1}
  #allocation0 [shape = 'u32[]', space=smem, size = 0x4, offset = 0x4, fixed_abs, tag = 'smem constant byte address 0x4 - core index']
  #allocation1 [shape = 'u32[144,128]{1,0:T(1,128)}', space=vmem, size = 0x12000, scoped, tag = 'internal scratch']
  %s0 = inlined_call_operand.vmem [shape: f32[2,8,32], index: 0, kind: input, shape index: {}]
  %s1 = inlined_call_operand.vmem [shape: f32[32,96], index: 1, kind: input, shape index: {}]
  %s2 = inlined_call_operand.hbm [shape: f32[1,96], index: 2, kind: input, shape index: {}]
  %s3 = inlined_call_operand.hbm [shape: s32[2,8,8], index: 3, kind: input, shape index: {}]
  %s4 = inlined_call_operand.vmem [shape: f32[11,8], index: 4, kind: input, shape index: {}]
  %s5 = inlined_call_operand.vmem [shape: f32[11,8], index: 5, kind: input, shape index: {}]
  %s6 = inlined_call_operand.vmem [shape: f32[2,1,8], index: 6, kind: input, shape index: {}]
  %s7 = inlined_call_operand.hbm [shape: f32[2,8,32], index: 7, kind: output, shape index: {0}]
  %s8 = inlined_call_operand.hbm [shape: f32[2,4,8,8], index: 8, kind: output, shape index: {1}]
  %9 = xla_tuple %s7, %s8
  %s10 = sld [smem:[#allocation0]]
  $region77: #{tpu_custom_call.1} parent=0
    _
  %s12 = ssub.s32 1, %s10
  %s13 = scalar_select 0, %s12, %s10
  $region1: #{tpu_custom_call.1} parent=0
    #allocation2 [shape = 'u8[512]{0}', space=vmem, size = 0x400, scoped, tag = 'input window, operand 2, single buffered']
    #allocation3 [shape = 's32[2]{0}', space=sflag, size = 0x8, scoped, tag = 'scoped memory for tpu_custom_call.1']
    #allocation4 [shape = 's32[2]{0}', space=sflag, size = 0x8, scoped, tag = 'scoped memory for tpu_custom_call.1']
    #allocation5 [shape = 'u8[8192]{0}', space=vmem, size = 0x2000, scoped, tag = 'input window, operand 3']
    #allocation6 [shape = 's32[2]{0}', space=sflag, size = 0x8, scoped, tag = 'scoped memory for tpu_custom_call.1']
    #allocation7 [shape = 'u8[8192]{0}', space=vmem, size = 0x2000, scoped, tag = 'output window, operand 0']
    #allocation8 [shape = 'u8[32768]{0}', space=vmem, size = 0x8000, scoped, tag = 'output window, operand 1']
    #allocation9 [shape = 's32[2]{0}', space=sflag, size = 0x8, scoped, tag = 'scoped memory for tpu_custom_call.1']
    %14 = vsyncpa [#allocation3], 0
    %15 = vsyncpa [#allocation6], 0
    %s16 = scalar_lea.sflag [#allocation6], 1
    %17 = vsyncpa %s16, 0
    %18 = vsyncpa [#allocation4], 0
    %s19 = scalar_lea.sflag [#allocation4], 1
    %20 = vsyncpa %s19, 0
    %21 = vsyncpa [#allocation9], 0
    %s22 = scalar_lea.sflag [#allocation9], 1
    %23 = vsyncpa %s22, 0
    loop: start=0, step=1, limit=4
    $region2: #{tpu_custom_call.1} parent=1 // loop_pre_header
      _
    $region3: #{tpu_custom_call.1} parent=1 // loop_header
      %s25 = sphi 0, %s29
      %p26 = scmp.ge.s32.totalorder %s25, 4
      %s35 = sphi 0, %s37
      %s38 = sphi 0, %s35
      %s39 = sphi 0, %s38
      %s55 = sphi 0, %s39
      %s59 = sphi 0, %s59
      %s61 = sphi 0, %s59
      %s62 = sphi 0, %s61
      %s76 = sphi 0, %s62
      %s80 = sphi 0, %s80
      %s82 = sphi 0, %s80
      %s83 = sphi 0, %s82
      %s97 = sphi 0, %s83
      %s103 = sphi 0, %s105
      %s106 = sphi 0, %s103
      %s107 = sphi 0, %s106
      %s123 = sphi 0, %s107
      %s127 = sphi 0, %s127
      %s129 = sphi 0, %s127
      %s130 = sphi 0, %s129
      %s144 = sphi 0, %s130
      %s148 = sphi 0, %s148
      %s150 = sphi 0, %s148
      %s151 = sphi 0, %s150
      %s165 = sphi 0, %s151
      %s171 = sphi 0, %s173
      %s174 = sphi 0, %s171
      %s175 = sphi 0, %s174
      %s191 = sphi 0, %s175
      %s197 = sphi 0, %s199
      %s200 = sphi 0, %s197
      %s201 = sphi 0, %s200
      %s217 = sphi 0, %s201
      %s223 = sphi 0, %s225
      %s226 = sphi 0, %s223
      %s227 = sphi 0, %s226
      %s243 = sphi 0, %s227
    $region4: #{tpu_custom_call.1} parent=1 // loop_header_branch
      %28 = sbr.rel (%p26) target = $region8
    $region5: #{tpu_custom_call.1} parent=1 // loop_body
      %s30 = ssub.s32 %s25, 1
      %s31 = ssub.s32 %s25, 2
      %s32 = sadd.s32 %s25, 1
      %s33 = ssub.s32 %s25, %s32
      %p34 = scmp.eq.s32.totalorder %s33, 0
      %s36 = sadd.s32 %s35, 1
      %s37 = scalar_select %p34, %s35, %s36
      %p40 = pneg %p34
      %p41 = scmp.eq.s32.totalorder %s25, 1
      %p42 = por %p40, %p41
      %p43 = scmp.ne.s32.totalorder %s35, %s38
      %p44 = scmp.eq.s32.totalorder %s25, 0
      %p45 = por %p43, %p44
      %p46 = scmp.ne.s32.totalorder %s35, %s38
      %p47 = scmp.eq.s32.totalorder %s30, 1
      %p48 = por %p46, %p47
      %p49 = scmp.ne.s32.totalorder %s38, %s39
      %p50 = scmp.eq.s32.totalorder %s30, 0
      %p51 = por %p49, %p50
      %p52 = scmp.ne.s32.totalorder %s38, %s39
      %p53 = scmp.eq.s32.totalorder %s31, 1
      %p54 = por %p52, %p53
      %p56 = scmp.ne.s32.totalorder %s39, %s55
      %p57 = scmp.eq.s32.totalorder %s31, 0
      %p58 = por %p56, %p57
      %s60 = sadd.s32 %s59, 1
      %p63 = scmp.eq.s32.totalorder %s25, 1
      %p64 = scmp.ne.s32.totalorder %s59, %s61
      %p65 = scmp.eq.s32.totalorder %s25, 0
      %p66 = por %p64, %p65
      %p67 = scmp.ne.s32.totalorder %s59, %s61
      %p68 = scmp.eq.s32.totalorder %s30, 1
      %p69 = por %p67, %p68
      %p70 = scmp.ne.s32.totalorder %s61, %s62
      %p71 = scmp.eq.s32.totalorder %s30, 0
      %p72 = por %p70, %p71
      %p73 = scmp.ne.s32.totalorder %s61, %s62
      %p74 = scmp.eq.s32.totalorder %s31, 1
      %p75 = por %p73, %p74
      %p77 = scmp.ne.s32.totalorder %s62, %s76
      %p78 = scmp.eq.s32.totalorder %s31, 0
      %p79 = por %p77, %p78
      %s81 = sadd.s32 %s80, 1
      %p84 = scmp.eq.s32.totalorder %s25, 1
      %p85 = scmp.ne.s32.totalorder %s80, %s82
      %p86 = scmp.eq.s32.totalorder %s25, 0
      %p87 = por %p85, %p86
      %p88 = scmp.ne.s32.totalorder %s80, %s82
      %p89 = scmp.eq.s32.totalorder %s30, 1
      %p90 = por %p88, %p89
      %p91 = scmp.ne.s32.totalorder %s82, %s83
      %p92 = scmp.eq.s32.totalorder %s30, 0
      %p93 = por %p91, %p92
      %p94 = scmp.ne.s32.totalorder %s82, %s83
      %p95 = scmp.eq.s32.totalorder %s31, 1
      %p96 = por %p94, %p95
      %p98 = scmp.ne.s32.totalorder %s83, %s97
      %p99 = scmp.eq.s32.totalorder %s31, 0
      %p100 = por %p98, %p99
      %s101 = ssub.s32 %s25, %s32
      %p102 = scmp.eq.s32.totalorder %s101, 0
      %s104 = sadd.s32 %s103, 1
      %s105 = scalar_select %p102, %s103, %s104
      %p108 = pneg %p102
      %p109 = scmp.eq.s32.totalorder %s25, 1
      %p110 = por %p108, %p109
      %p111 = scmp.ne.s32.totalorder %s103, %s106
      %p112 = scmp.eq.s32.totalorder %s25, 0
      %p113 = por %p111, %p112
      %p114 = scmp.ne.s32.totalorder %s103, %s106
      %p115 = scmp.eq.s32.totalorder %s30, 1
      %p116 = por %p114, %p115
      %p117 = scmp.ne.s32.totalorder %s106, %s107
      %p118 = scmp.eq.s32.totalorder %s30, 0
      %p119 = por %p117, %p118
      %p120 = scmp.ne.s32.totalorder %s106, %s107
      %p121 = scmp.eq.s32.totalorder %s31, 1
      %p122 = por %p120, %p121
      %p124 = scmp.ne.s32.totalorder %s107, %s123
      %p125 = scmp.eq.s32.totalorder %s31, 0
      %p126 = por %p124, %p125
      %s128 = sadd.s32 %s127, 1
      %p131 = scmp.eq.s32.totalorder %s25, 1
      %p132 = scmp.ne.s32.totalorder %s127, %s129
      %p133 = scmp.eq.s32.totalorder %s25, 0
      %p134 = por %p132, %p133
      %p135 = scmp.ne.s32.totalorder %s127, %s129
      %p136 = scmp.eq.s32.totalorder %s30, 1
      %p137 = por %p135, %p136
      %p138 = scmp.ne.s32.totalorder %s129, %s130
      %p139 = scmp.eq.s32.totalorder %s30, 0
      %p140 = por %p138, %p139
      %p141 = scmp.ne.s32.totalorder %s129, %s130
      %p142 = scmp.eq.s32.totalorder %s31, 1
      %p143 = por %p141, %p142
      %p145 = scmp.ne.s32.totalorder %s130, %s144
      %p146 = scmp.eq.s32.totalorder %s31, 0
      %p147 = por %p145, %p146
      %s149 = sadd.s32 %s148, 1
      %p152 = scmp.eq.s32.totalorder %s25, 1
      %p153 = scmp.ne.s32.totalorder %s148, %s150
      %p154 = scmp.eq.s32.totalorder %s25, 0
      %p155 = por %p153, %p154
      %p156 = scmp.ne.s32.totalorder %s148, %s150
      %p157 = scmp.eq.s32.totalorder %s30, 1
      %p158 = por %p156, %p157
      %p159 = scmp.ne.s32.totalorder %s150, %s151
      %p160 = scmp.eq.s32.totalorder %s30, 0
      %p161 = por %p159, %p160
      %p162 = scmp.ne.s32.totalorder %s150, %s151
      %p163 = scmp.eq.s32.totalorder %s31, 1
      %p164 = por %p162, %p163
      %p166 = scmp.ne.s32.totalorder %s151, %s165
      %p167 = scmp.eq.s32.totalorder %s31, 0
      %p168 = por %p166, %p167
      %s169 = ssub.s32 %s25, %s32
      %p170 = scmp.eq.s32.totalorder %s169, 0
      %s172 = sadd.s32 %s171, 1
      %s173 = scalar_select %p170, %s171, %s172
      %p176 = pneg %p170
      %p177 = scmp.eq.s32.totalorder %s25, 1
      %p178 = por %p176, %p177
      %p179 = scmp.ne.s32.totalorder %s171, %s174
      %p180 = scmp.eq.s32.totalorder %s25, 0
      %p181 = por %p179, %p180
      %p182 = scmp.ne.s32.totalorder %s171, %s174
      %p183 = scmp.eq.s32.totalorder %s30, 1
      %p184 = por %p182, %p183
      %p185 = scmp.ne.s32.totalorder %s174, %s175
      %p186 = scmp.eq.s32.totalorder %s30, 0
      %p187 = por %p185, %p186
      %p188 = scmp.ne.s32.totalorder %s174, %s175
      %p189 = scmp.eq.s32.totalorder %s31, 1
      %p190 = por %p188, %p189
      %p192 = scmp.ne.s32.totalorder %s175, %s191
      %p193 = scmp.eq.s32.totalorder %s31, 0
      %p194 = por %p192, %p193
      %s195 = ssub.s32 %s25, %s32
      %p196 = scmp.eq.s32.totalorder %s195, 0
      %s198 = sadd.s32 %s197, 1
      %s199 = scalar_select %p196, %s197, %s198
      %p202 = pneg %p196
      %p203 = scmp.eq.s32.totalorder %s25, 1
      %p204 = por %p202, %p203
      %p205 = scmp.ne.s32.totalorder %s197, %s200
      %p206 = scmp.eq.s32.totalorder %s25, 0
      %p207 = por %p205, %p206
      %p208 = scmp.ne.s32.totalorder %s197, %s200
      %p209 = scmp.eq.s32.totalorder %s30, 1
      %p210 = por %p208, %p209
      %p211 = scmp.ne.s32.totalorder %s200, %s201
      %p212 = scmp.eq.s32.totalorder %s30, 0
      %p213 = por %p211, %p212
      %p214 = scmp.ne.s32.totalorder %s200, %s201
      %p215 = scmp.eq.s32.totalorder %s31, 1
      %p216 = por %p214, %p215
      %p218 = scmp.ne.s32.totalorder %s201, %s217
      %p219 = scmp.eq.s32.totalorder %s31, 0
      %p220 = por %p218, %p219
      %s221 = ssub.s32 %s25, %s32
      %p222 = scmp.eq.s32.totalorder %s221, 0
      %s224 = sadd.s32 %s223, 1
      %s225 = scalar_select %p222, %s223, %s224
      %p228 = pneg %p222
      %p229 = scmp.eq.s32.totalorder %s25, 1
      %p230 = por %p228, %p229
      %p231 = scmp.ne.s32.totalorder %s223, %s226
      %p232 = scmp.eq.s32.totalorder %s25, 0
      %p233 = por %p231, %p232
      %p234 = scmp.ne.s32.totalorder %s223, %s226
      %p235 = scmp.eq.s32.totalorder %s30, 1
      %p236 = por %p234, %p235
      %p237 = scmp.ne.s32.totalorder %s226, %s227
      %p238 = scmp.eq.s32.totalorder %s30, 0
      %p239 = por %p237, %p238
      %p240 = scmp.ne.s32.totalorder %s226, %s227
      %p241 = scmp.eq.s32.totalorder %s31, 1
      %p242 = por %p240, %p241
      %p244 = scmp.ne.s32.totalorder %s227, %s243
      %p245 = scmp.eq.s32.totalorder %s31, 0
      %p246 = por %p244, %p245
      %p247 = scmp.le.s32.totalorder 1, %s25
      %p248 = scmp.lt.s32.totalorder %s25, 3
      %p249 = pnand %p247, %p248
      %p250 = pneg %p249
      // Predicated region
      $region9: #{tpu_custom_call.1} parent=5 // pred_check
        _
      $region10: #{tpu_custom_call.1} parent=5 // pred_check_branch
        %252 = sbr.rel (%p249) target = $region12
      $region11: #{tpu_custom_call.1} parent=5 // pred_region
        %s253 = ssub.s32 %s25, 1
        // Predicated region
        $region13: #{tpu_custom_call.1} parent=11 // pred_check
          %p254 = pneg %p72
        $region14: #{tpu_custom_call.1} parent=11 // pred_check_branch
          %256 = sbr.rel (%p254) target = $region16
        $region15: #{tpu_custom_call.1} parent=11 // pred_region
          _
        $region16: #{tpu_custom_call.1} parent=11 // pred_fallthru
          _
        // Predicated region
        $region17: #{tpu_custom_call.1} parent=11 // pred_check
          %p257 = pneg %p93
        $region18: #{tpu_custom_call.1} parent=11 // pred_check_branch
          %259 = sbr.rel (%p257) target = $region20
        $region19: #{tpu_custom_call.1} parent=11 // pred_region
          %s261 = ssub.s32 16, 16
          %262 = vsyncadd [#allocation3], %s261
          %s264 = sshll.u32 [#allocation2], 4
          %s265 = int_to_ptr.vmem [resolvable:$true] %s264
          %267 = dma.hbm_to_vmem [thread:$0]  %s2, 16, %s265, [#allocation3]
        $region20: #{tpu_custom_call.1} parent=11 // pred_fallthru
          _
        // Predicated region
        $region21: #{tpu_custom_call.1} parent=11 // pred_check
          %p268 = pneg %p140
        $region22: #{tpu_custom_call.1} parent=11 // pred_check_branch
          %270 = sbr.rel (%p268) target = $region24
        $region23: #{tpu_custom_call.1} parent=11 // pred_region
          _
        $region24: #{tpu_custom_call.1} parent=11 // pred_fallthru
          _
        // Predicated region
        $region25: #{tpu_custom_call.1} parent=11 // pred_check
          %p271 = pneg %p161
        $region26: #{tpu_custom_call.1} parent=11 // pred_check_branch
          %273 = sbr.rel (%p271) target = $region28
        $region27: #{tpu_custom_call.1} parent=11 // pred_region
          _
        $region28: #{tpu_custom_call.1} parent=11 // pred_fallthru
          _
      $region12: #{tpu_custom_call.1} parent=5 // pred_fallthru
        _
      %p274 = scmp.lt.s32.totalorder %s25, 2
      // Predicated region
      $region29: #{tpu_custom_call.1} parent=5 // pred_check
        %p275 = pneg %p274
      $region30: #{tpu_custom_call.1} parent=5 // pred_check_branch
        %277 = sbr.rel (%p275) target = $region32
      $region31: #{tpu_custom_call.1} parent=5 // pred_region
        // Predicated region
        $region33: #{tpu_custom_call.1} parent=31 // pred_check
          %p278 = pneg %p45
        $region34: #{tpu_custom_call.1} parent=31 // pred_check_branch
          %280 = sbr.rel (%p278) target = $region36
        $region35: #{tpu_custom_call.1} parent=31 // pred_region
          %p281 = scmp.lt.s32.totalorder %s25, 1
          %s282 = scalar_select %p281, %s25, 1
          %s283 = smul.addr %s282, 8
          %s284 = scalar_lea.vmem %s0, %s283
        $region36: #{tpu_custom_call.1} parent=31 // pred_fallthru
          _
        // Predicated region
        $region37: #{tpu_custom_call.1} parent=31 // pred_check
          %p285 = pneg %p113
        $region38: #{tpu_custom_call.1} parent=31 // pred_check_branch
          %287 = sbr.rel (%p285) target = $region40
        $region39: #{tpu_custom_call.1} parent=31 // pred_region
          %s288 = sand.u32 %s103, 1
          %s289 = scalar_lea.sflag [#allocation6], %s288
          %s290 = sand.u32 %s103, 1
          %s291 = smul.addr %s290, 8
          %s292 = scalar_lea.vmem [#allocation5], %s291
          %s294 = ssub.s32 128, 128
          %295 = vsyncadd %s289, %s294
          %s296 = smul.addr %s25, 128
          %s297 = scalar_lea.hbm %s3, %s296
          %s299 = sshll.u32 %s292, 4
          %s300 = int_to_ptr.vmem [resolvable:$true] %s299
          %302 = dma.hbm_to_vmem [thread:$0]  %s297, 128, %s300, %s289
        $region40: #{tpu_custom_call.1} parent=31 // pred_fallthru
          _
        // Predicated region
        $region41: #{tpu_custom_call.1} parent=31 // pred_check
          %p303 = pneg %p181
        $region42: #{tpu_custom_call.1} parent=31 // pred_check_branch
          %305 = sbr.rel (%p303) target = $region44
        $region43: #{tpu_custom_call.1} parent=31 // pred_region
          %p306 = scmp.lt.s32.totalorder %s25, 1
          %s307 = scalar_select %p306, %s25, 1
          %s308 = scalar_lea.vmem %s6, %s307
        $region44: #{tpu_custom_call.1} parent=31 // pred_fallthru
          _
      $region32: #{tpu_custom_call.1} parent=5 // pred_fallthru
        _
      %p309 = scmp.le.s32.totalorder 1, %s25
      %p310 = scmp.lt.s32.totalorder %s25, 3
      %p311 = pnand %p309, %p310
      %p312 = pneg %p311
      // Predicated region
      $region45: #{tpu_custom_call.1} parent=5 // pred_check
        _
      $region46: #{tpu_custom_call.1} parent=5 // pred_check_branch
        %314 = sbr.rel (%p311) target = $region48
      $region47: #{tpu_custom_call.1} parent=5 // pred_region
        %s315 = ssub.s32 %s25, 1
        // Predicated region
        $region49: #{tpu_custom_call.1} parent=47 // pred_check
          %p316 = pneg %p93
        $region50: #{tpu_custom_call.1} parent=47 // pred_check_branch
          %318 = sbr.rel (%p316) target = $region52
        $region51: #{tpu_custom_call.1} parent=47 // pred_region
          %319 = dma.done [#allocation3], 16
        $region52: #{tpu_custom_call.1} parent=47 // pred_fallthru
          _
        %s320 = sand.u32 %s106, 1
        %s321 = scalar_lea.sflag [#allocation6], %s320
        %s322 = sand.u32 %s106, 1
        %s323 = smul.addr %s322, 8
        %s324 = scalar_lea.vmem [#allocation5], %s323
        // Predicated region
        $region53: #{tpu_custom_call.1} parent=47 // pred_check
          %p325 = pneg %p119
        $region54: #{tpu_custom_call.1} parent=47 // pred_check_branch
          %327 = sbr.rel (%p325) target = $region56
        $region55: #{tpu_custom_call.1} parent=47 // pred_region
          %328 = dma.done %s321, 128
        $region56: #{tpu_custom_call.1} parent=47 // pred_fallthru
          _
        %p329 = scmp.lt.s32.totalorder %s30, 1
        %s330 = scalar_select %p329, %s30, 1
        %s331 = smul.addr %s330, 8
        %s332 = scalar_lea.vmem %s0, %s331
        %p333 = pneg %p51
        %p334 = pneg %p48
        %p335 = pneg %p72
        %p336 = pneg %p69
        %p337 = pneg %p93
        %p338 = pneg %p90
        %s339 = sand.u32 %s106, 1
        %s340 = scalar_lea.sflag [#allocation6], %s339
        %s341 = sand.u32 %s106, 1
        %s342 = smul.addr %s341, 8
        %s343 = scalar_lea.vmem [#allocation5], %s342
        %p344 = pneg %p119
        %p345 = pneg %p116
        %p346 = pneg %p140
        %p347 = pneg %p137
        %p348 = pneg %p161
        %p349 = pneg %p158
        %p350 = scmp.lt.s32.totalorder %s30, 1
        %s351 = scalar_select %p350, %s30, 1
        %s352 = scalar_lea.vmem %s6, %s351
        %p353 = pneg %p187
        %p354 = pneg %p184
        %p355 = pneg %p213
        %p356 = pneg %p210
        %s357 = sand.u32 %s200, 1
        %s358 = scalar_lea.sflag [#allocation4], %s357
        %s359 = sand.u32 %s200, 1
        %s360 = smul.addr %s359, 8
        %s361 = scalar_lea.vmem [#allocation7], %s360
        %p362 = pneg %p239
        %p363 = pneg %p236
        %s364 = sand.u32 %s226, 1
        %s365 = scalar_lea.sflag [#allocation9], %s364
        %s366 = sand.u32 %s226, 1
        %s367 = smul.addr %s366, 32
        %s368 = scalar_lea.vmem [#allocation8], %s367
        %p369 = scmp.lt.s32.totalorder %s30, 1
        %s370 = scalar_select %p369, %s30, 1
        %s371 = smul.addr %s370, 8
        %s372 = scalar_lea.vmem %s0, %s371
        %p373 = scmp.lt.s32.totalorder %s30, 1
        %s374 = scalar_select %p373, %s30, 1
        %s375 = scalar_lea.vmem %s6, %s374
        %v376 = vld [vmem:[%s372] sm:$0xff]
        %v377 = vld [vmem:[%s1] sm:$0xff]
        %v378 = vld [vmem:[%s1 + $0x8] sm:$0xff]
        %v379 = vld [vmem:[%s1 + $0x10] sm:$0xff]
        %v380 = vld [vmem:[%s1 + $0x18] sm:$0xff]
        %v381 = vld [vmem:[#allocation2] sm:$0x1]
        %v383 = vlaneseq
        %v384 = vshrl.u32 %v383, 7
        %v385 = vsub.s32 0, %v384
        %v386 = vrot.slane %v381, %v385
        %vm388 = vcmask 261120
        %v390 = vsel %vm388, %v376, 0
        %392 = vmatprep.subr.mxu0 0.0
        %393 = vmatpush1.msra.mxu0 %v377
        %394 = vmatprep.subr.mxu0 0.0
        %395 = vmatpush1.msra.mxu0 %v378
        %396 = vmatprep.subr.mxu0 0.0
        %397 = vmatpush1.msra.mxu0 %v379
        %398 = vmatprep.subr.mxu0 0.0
        %399 = vmatpush1.msra.mxu0 %v380
        %400 = vmatprep.subr.mxu0 0.0
        %401 = vmatpush1.msra.mxu0 0.0
        %402 = vmatprep.subr.mxu0 0.0
        %403 = vmatpush1.msra.mxu0 0.0
        %404 = vmatprep.subr.mxu0 0.0
        %405 = vmatpush1.msra.mxu0 0.0
        %406 = vmatprep.subr.mxu0 0.0
        %407 = vmatpush1.msra.mxu0 0.0
        %408 = vmatprep.subr.mxu0 0.0
        %409 = vmatpush1.msra.mxu0 0.0
        %410 = vmatprep.subr.mxu0 0.0
        %411 = vmatpush1.msra.mxu0 0.0
        %412 = vmatprep.subr.mxu0 0.0
        %413 = vmatpush1.msra.mxu0 0.0
        %414 = vmatprep.subr.mxu0 0.0
        %415 = vmatpush1.msra.mxu0 0.0
        %416 = vmatprep.subr.mxu0 0.0
        %417 = vmatpush1.msra.mxu0 0.0
        %418 = vmatprep.subr.mxu0 0.0
        %419 = vmatpush1.msra.mxu0 0.0
        %420 = vmatprep.subr.mxu0 0.0
        %421 = vmatpush1.msra.mxu0 0.0
        %422 = vmatprep.subr.mxu0 0.0
        %423 = vmatpush1.msra.mxu0 0.0
        %424 = vmatprep.subr.mxu0 0.0
        %425 = vmatpush1.msra.mxu0 0.0
        %426 = vmatprep.subr.mxu0 0.0
        %427 = vmatpush1.msra.mxu0 0.0
        %428 = vmatprep.subr.mxu0 0.0
        %429 = vmatpush1.msra.mxu0 0.0
        %430 = vmatprep.subr.mxu0 0.0
        %431 = vmatpush1.msra.mxu0 0.0
        %432 = vmatprep.subr.mxu0 0.0
        %433 = vmatpush1.msra.mxu0 0.0
        %434 = vmatprep.subr.mxu0 0.0
        %435 = vmatpush1.msra.mxu0 0.0
        %436 = vmatprep.subr.mxu0 0.0
        %437 = vmatpush1.msra.mxu0 0.0
        %438 = vmatprep.subr.mxu0 0.0
        %439 = vmatpush1.msra.mxu0 0.0
        %440 = vmatprep.subr.mxu0 0.0
        %441 = vmatpush1.msra.mxu0 0.0
        %442 = vmatprep.subr.mxu0 0.0
        %443 = vmatpush1.msra.mxu0 0.0
        %444 = vmatprep.subr.mxu0 0.0
        %445 = vmatpush1.msra.mxu0 0.0
        %446 = vmatprep.subr.mxu0 0.0
        %447 = vmatpush1.msra.mxu0 0.0
        %448 = vmatprep.subr.mxu0 0.0
        %449 = vmatpush1.msra.mxu0 0.0
        %450 = vmatprep.subr.mxu0 0.0
        %451 = vmatpush1.msra.mxu0 0.0
        %452 = vmatprep.subr.mxu0 0.0
        %453 = vmatpush1.msra.mxu0 0.0
        %454 = vmatprep.subr.mxu0 0.0
        %455 = vmatpush1.msra.mxu0 0.0
        %456 = vmatprep.mubr.f32.mxu0 0.0
        %457 = vmatmul.mubr.f32.gmra.mrb[0].mxu0 %v390
        %v458 = vpop.f32.mrb[0].mxu0
        %v459 = vadd.f32 %v386, %v458
        %v460 = vpop.f32.mrb[0].mxu0
        %461 = vdwg.mxu0
        %463 = vrot.lane.b32.xlu0 %v459, 120
        %v464 = vpop.permute.xlu0 %463
        %466 = vrot.lane.b32.xlu0 %v459, 112
        %v467 = vpop.permute.xlu0 %466
        %469 = vrot.lane.b32.xlu0 %v459, 104
        %v470 = vpop.permute.xlu0 %469
        %v472 = vcombine.low %v459, %v467
        %v473 = vcombine.high %v459, %v467
        %v475 = vunpack.c.l.s4 1983009808
        %v476 = vunpack.c.0.s8 %v475
        %v477 = vlaneseq
        %v478 = vshrl.u32 %v477, 7
        %v479 = vsub.s32 %v476, %v478
        %v480 = vrot.slane %v472, %v479
        %v482 = vunpack.c.l.s4 1983009808
        %v483 = vunpack.c.0.s8 %v482
        %v484 = vlaneseq
        %v485 = vshrl.u32 %v484, 7
        %v486 = vsub.s32 %v483, %v485
        %v487 = vrot.slane %v473, %v486
        %v488 = vcombine.low %v464, %v470
        %v489 = vcombine.high %v464, %v470
        %v491 = vunpack.c.l.s4 1983009808
        %v492 = vunpack.c.0.s8 %v491
        %v493 = vlaneseq
        %v494 = vshrl.u32 %v493, 7
        %v495 = vsub.s32 %v492, %v494
        %v496 = vrot.slane %v488, %v495
        %v498 = vunpack.c.l.s4 1983009808
        %v499 = vunpack.c.0.s8 %v498
        %v500 = vlaneseq
        %v501 = vshrl.u32 %v500, 7
        %v502 = vsub.s32 %v499, %v501
        %v503 = vrot.slane %v489, %v502
        %v504 = vcombine.low %v480, %v496
        %v505 = vcombine.high %v480, %v496
        %v507 = vunpack.c.l.s4 1934713408
        %v508 = vunpack.c.0.s8 %v507
        %v509 = vlaneseq
        %v510 = vshrl.u32 %v509, 7
        %v511 = vsub.s32 %v508, %v510
        %v512 = vrot.slane %v504, %v511
        %v514 = vunpack.c.l.s4 1934713408
        %v515 = vunpack.c.0.s8 %v514
        %v516 = vlaneseq
        %v517 = vshrl.u32 %v516, 7
        %v518 = vsub.s32 %v515, %v517
        %v519 = vrot.slane %v505, %v518
        %v520 = vcombine.low %v487, %v503
        %v521 = vcombine.high %v487, %v503
        %v523 = vunpack.c.l.s4 1934713408
        %v524 = vunpack.c.0.s8 %v523
        %v525 = vlaneseq
        %v526 = vshrl.u32 %v525, 7
        %v527 = vsub.s32 %v524, %v526
        %v528 = vrot.slane %v520, %v527
        %v530 = vunpack.c.l.s4 1934713408
        %v531 = vunpack.c.0.s8 %v530
        %v532 = vlaneseq
        %v533 = vshrl.u32 %v532, 7
        %v534 = vsub.s32 %v531, %v533
        %v535 = vrot.slane %v521, %v534
        %v536 = vcombine.high %v512, 0.0
        %v537 = vcombine.high %v519, 0.0
        %v538 = vcombine.high %v528, 0.0
        %v539 = vcombine.high %v535, 0.0
        %540 = vrot.lane.b32.xlu0 %v459, 96
        %v541 = vpop.permute.xlu0 %540
        %542 = vrot.lane.b32.xlu0 %v464, 96
        %v543 = vpop.permute.xlu0 %542
        %544 = vrot.lane.b32.xlu0 %v467, 96
        %v545 = vpop.permute.xlu0 %544
        %546 = vrot.lane.b32.xlu0 %v470, 96
        %v547 = vpop.permute.xlu0 %546
        %v552 = vcombine.low %v541, %v545
        %v553 = vcombine.high %v541, %v545
        %v555 = vunpack.c.l.s4 1983009808
        %v556 = vunpack.c.0.s8 %v555
        %v557 = vlaneseq
        %v558 = vshrl.u32 %v557, 7
        %v559 = vsub.s32 %v556, %v558
        %v560 = vrot.slane %v552, %v559
        %v562 = vunpack.c.l.s4 1983009808
        %v563 = vunpack.c.0.s8 %v562
        %v564 = vlaneseq
        %v565 = vshrl.u32 %v564, 7
        %v566 = vsub.s32 %v563, %v565
        %v567 = vrot.slane %v553, %v566
        %v568 = vcombine.low %v543, %v547
        %v569 = vcombine.high %v543, %v547
        %v571 = vunpack.c.l.s4 1983009808
        %v572 = vunpack.c.0.s8 %v571
        %v573 = vlaneseq
        %v574 = vshrl.u32 %v573, 7
        %v575 = vsub.s32 %v572, %v574
        %v576 = vrot.slane %v568, %v575
        %v578 = vunpack.c.l.s4 1983009808
        %v579 = vunpack.c.0.s8 %v578
        %v580 = vlaneseq
        %v581 = vshrl.u32 %v580, 7
        %v582 = vsub.s32 %v579, %v581
        %v583 = vrot.slane %v569, %v582
        %v584 = vcombine.low %v560, %v576
        %v585 = vcombine.high %v560, %v576
        %v587 = vunpack.c.l.s4 1934713408
        %v588 = vunpack.c.0.s8 %v587
        %v589 = vlaneseq
        %v590 = vshrl.u32 %v589, 7
        %v591 = vsub.s32 %v588, %v590
        %v592 = vrot.slane %v584, %v591
        %v594 = vunpack.c.l.s4 1934713408
        %v595 = vunpack.c.0.s8 %v594
        %v596 = vlaneseq
        %v597 = vshrl.u32 %v596, 7
        %v598 = vsub.s32 %v595, %v597
        %v599 = vrot.slane %v585, %v598
        %v600 = vcombine.low %v567, %v583
        %v601 = vcombine.high %v567, %v583
        %v603 = vunpack.c.l.s4 1934713408
        %v604 = vunpack.c.0.s8 %v603
        %v605 = vlaneseq
        %v606 = vshrl.u32 %v605, 7
        %v607 = vsub.s32 %v604, %v606
        %v608 = vrot.slane %v600, %v607
        %v610 = vunpack.c.l.s4 1934713408
        %v611 = vunpack.c.0.s8 %v610
        %v612 = vlaneseq
        %v613 = vshrl.u32 %v612, 7
        %v614 = vsub.s32 %v611, %v613
        %v615 = vrot.slane %v601, %v614
        %v616 = vcombine.high %v592, 0.0
        %v617 = vcombine.high %v599, 0.0
        %v618 = vcombine.high %v608, 0.0
        %v619 = vcombine.high %v615, 0.0
        %620 = vrot.lane.b32.xlu0 %v459, 64
        %v621 = vpop.permute.xlu0 %620
        %622 = vrot.lane.b32.xlu0 %v464, 64
        %v623 = vpop.permute.xlu0 %622
        %624 = vrot.lane.b32.xlu0 %v467, 64
        %v625 = vpop.permute.xlu0 %624
        %626 = vrot.lane.b32.xlu0 %v470, 64
        %v627 = vpop.permute.xlu0 %626
        %v632 = vcombine.low %v621, %v625
        %v633 = vcombine.high %v621, %v625
        %v635 = vunpack.c.l.s4 1983009808
        %v636 = vunpack.c.0.s8 %v635
        %v637 = vlaneseq
        %v638 = vshrl.u32 %v637, 7
        %v639 = vsub.s32 %v636, %v638
        %v640 = vrot.slane %v632, %v639
        %v642 = vunpack.c.l.s4 1983009808
        %v643 = vunpack.c.0.s8 %v642
        %v644 = vlaneseq
        %v645 = vshrl.u32 %v644, 7
        %v646 = vsub.s32 %v643, %v645
        %v647 = vrot.slane %v633, %v646
        %v648 = vcombine.low %v623, %v627
        %v649 = vcombine.high %v623, %v627
        %v651 = vunpack.c.l.s4 1983009808
        %v652 = vunpack.c.0.s8 %v651
        %v653 = vlaneseq
        %v654 = vshrl.u32 %v653, 7
        %v655 = vsub.s32 %v652, %v654
        %v656 = vrot.slane %v648, %v655
        %v658 = vunpack.c.l.s4 1983009808
        %v659 = vunpack.c.0.s8 %v658
        %v660 = vlaneseq
        %v661 = vshrl.u32 %v660, 7
        %v662 = vsub.s32 %v659, %v661
        %v663 = vrot.slane %v649, %v662
        %v664 = vcombine.low %v640, %v656
        %v665 = vcombine.high %v640, %v656
        %v667 = vunpack.c.l.s4 1934713408
        %v668 = vunpack.c.0.s8 %v667
        %v669 = vlaneseq
        %v670 = vshrl.u32 %v669, 7
        %v671 = vsub.s32 %v668, %v670
        %v672 = vrot.slane %v664, %v671
        %v674 = vunpack.c.l.s4 1934713408
        %v675 = vunpack.c.0.s8 %v674
        %v676 = vlaneseq
        %v677 = vshrl.u32 %v676, 7
        %v678 = vsub.s32 %v675, %v677
        %v679 = vrot.slane %v665, %v678
        %v680 = vcombine.low %v647, %v663
        %v681 = vcombine.high %v647, %v663
        %v683 = vunpack.c.l.s4 1934713408
        %v684 = vunpack.c.0.s8 %v683
        %v685 = vlaneseq
        %v686 = vshrl.u32 %v685, 7
        %v687 = vsub.s32 %v684, %v686
        %v688 = vrot.slane %v680, %v687
        %v690 = vunpack.c.l.s4 1934713408
        %v691 = vunpack.c.0.s8 %v690
        %v692 = vlaneseq
        %v693 = vshrl.u32 %v692, 7
        %v694 = vsub.s32 %v691, %v693
        %v695 = vrot.slane %v681, %v694
        %v696 = vcombine.high %v672, 0.0
        %v697 = vcombine.high %v679, 0.0
        %v698 = vcombine.high %v688, 0.0
        %v699 = vcombine.high %v695, 0.0
        %v700 = vcombine.low %v512, %v519
        %v702 = vunpack.c.l.s4 1983009808
        %v703 = vunpack.c.0.s8 %v702
        %v704 = vlaneseq
        %v705 = vshrl.u32 %v704, 7
        %v706 = vsub.s32 %v703, %v705
        %v707 = vrot.slane %v700, %v706
        %v708 = vcombine.low %v536, %v537
        %v710 = vunpack.c.l.s4 1983009808
        %v711 = vunpack.c.0.s8 %v710
        %v712 = vlaneseq
        %v713 = vshrl.u32 %v712, 7
        %v714 = vsub.s32 %v711, %v713
        %v715 = vrot.slane %v708, %v714
        %v716 = vcombine.low %v528, %v535
        %v718 = vunpack.c.l.s4 1983009808
        %v719 = vunpack.c.0.s8 %v718
        %v720 = vlaneseq
        %v721 = vshrl.u32 %v720, 7
        %v722 = vsub.s32 %v719, %v721
        %v723 = vrot.slane %v716, %v722
        %v724 = vcombine.low %v538, %v539
        %v726 = vunpack.c.l.s4 1983009808
        %v727 = vunpack.c.0.s8 %v726
        %v728 = vlaneseq
        %v729 = vshrl.u32 %v728, 7
        %v730 = vsub.s32 %v727, %v729
        %v731 = vrot.slane %v724, %v730
        %v732 = vcombine.low %v707, %v715
        %v733 = vcombine.high %v707, %v715
        %v735 = vunpack.c.l.s4 1934713408
        %v736 = vunpack.c.0.s8 %v735
        %v737 = vlaneseq
        %v738 = vshrl.u32 %v737, 7
        %v739 = vsub.s32 %v736, %v738
        %v740 = vrot.slane %v732, %v739
        %v742 = vunpack.c.l.s4 1934713408
        %v743 = vunpack.c.0.s8 %v742
        %v744 = vlaneseq
        %v745 = vshrl.u32 %v744, 7
        %v746 = vsub.s32 %v743, %v745
        %v747 = vrot.slane %v733, %v746
        %v748 = vcombine.low %v723, %v731
        %v749 = vcombine.high %v723, %v731
        %v751 = vunpack.c.l.s4 1934713408
        %v752 = vunpack.c.0.s8 %v751
        %v753 = vlaneseq
        %v754 = vshrl.u32 %v753, 7
        %v755 = vsub.s32 %v752, %v754
        %v756 = vrot.slane %v748, %v755
        %v758 = vunpack.c.l.s4 1934713408
        %v759 = vunpack.c.0.s8 %v758
        %v760 = vlaneseq
        %v761 = vshrl.u32 %v760, 7
        %v762 = vsub.s32 %v759, %v761
        %v763 = vrot.slane %v749, %v762
        %v764 = vcombine.low %v740, %v756
        %v765 = vcombine.high %v740, %v756
        %v766 = vcombine.low %v747, %v763
        %v767 = vcombine.high %v747, %v763
        %v768 = vcombine.low %v592, %v599
        %v770 = vunpack.c.l.s4 1983009808
        %v771 = vunpack.c.0.s8 %v770
        %v772 = vlaneseq
        %v773 = vshrl.u32 %v772, 7
        %v774 = vsub.s32 %v771, %v773
        %v775 = vrot.slane %v768, %v774
        %v776 = vcombine.low %v616, %v617
        %v778 = vunpack.c.l.s4 1983009808
        %v779 = vunpack.c.0.s8 %v778
        %v780 = vlaneseq
        %v781 = vshrl.u32 %v780, 7
        %v782 = vsub.s32 %v779, %v781
        %v783 = vrot.slane %v776, %v782
        %v784 = vcombine.low %v608, %v615
        %v786 = vunpack.c.l.s4 1983009808
        %v787 = vunpack.c.0.s8 %v786
        %v788 = vlaneseq
        %v789 = vshrl.u32 %v788, 7
        %v790 = vsub.s32 %v787, %v789
        %v791 = vrot.slane %v784, %v790
        %v792 = vcombine.low %v618, %v619
        %v794 = vunpack.c.l.s4 1983009808
        %v795 = vunpack.c.0.s8 %v794
        %v796 = vlaneseq
        %v797 = vshrl.u32 %v796, 7
        %v798 = vsub.s32 %v795, %v797
        %v799 = vrot.slane %v792, %v798
        %v800 = vcombine.low %v775, %v783
        %v801 = vcombine.high %v775, %v783
        %v803 = vunpack.c.l.s4 1934713408
        %v804 = vunpack.c.0.s8 %v803
        %v805 = vlaneseq
        %v806 = vshrl.u32 %v805, 7
        %v807 = vsub.s32 %v804, %v806
        %v808 = vrot.slane %v800, %v807
        %v810 = vunpack.c.l.s4 1934713408
        %v811 = vunpack.c.0.s8 %v810
        %v812 = vlaneseq
        %v813 = vshrl.u32 %v812, 7
        %v814 = vsub.s32 %v811, %v813
        %v815 = vrot.slane %v801, %v814
        %v816 = vcombine.low %v791, %v799
        %v817 = vcombine.high %v791, %v799
        %v819 = vunpack.c.l.s4 1934713408
        %v820 = vunpack.c.0.s8 %v819
        %v821 = vlaneseq
        %v822 = vshrl.u32 %v821, 7
        %v823 = vsub.s32 %v820, %v822
        %v824 = vrot.slane %v816, %v823
        %v826 = vunpack.c.l.s4 1934713408
        %v827 = vunpack.c.0.s8 %v826
        %v828 = vlaneseq
        %v829 = vshrl.u32 %v828, 7
        %v830 = vsub.s32 %v827, %v829
        %v831 = vrot.slane %v817, %v830
        %v832 = vcombine.low %v808, %v824
        %v833 = vcombine.high %v808, %v824
        %v834 = vcombine.low %v815, %v831
        %v835 = vcombine.high %v815, %v831
        %v836 = vcombine.low %v672, %v679
        %v838 = vunpack.c.l.s4 1983009808
        %v839 = vunpack.c.0.s8 %v838
        %v840 = vlaneseq
        %v841 = vshrl.u32 %v840, 7
        %v842 = vsub.s32 %v839, %v841
        %v843 = vrot.slane %v836, %v842
        %v844 = vcombine.low %v696, %v697
        %v846 = vunpack.c.l.s4 1983009808
        %v847 = vunpack.c.0.s8 %v846
        %v848 = vlaneseq
        %v849 = vshrl.u32 %v848, 7
        %v850 = vsub.s32 %v847, %v849
        %v851 = vrot.slane %v844, %v850
        %v852 = vcombine.low %v688, %v695
        %v854 = vunpack.c.l.s4 1983009808
        %v855 = vunpack.c.0.s8 %v854
        %v856 = vlaneseq
        %v857 = vshrl.u32 %v856, 7
        %v858 = vsub.s32 %v855, %v857
        %v859 = vrot.slane %v852, %v858
        %v860 = vcombine.low %v698, %v699
        %v862 = vunpack.c.l.s4 1983009808
        %v863 = vunpack.c.0.s8 %v862
        %v864 = vlaneseq
        %v865 = vshrl.u32 %v864, 7
        %v866 = vsub.s32 %v863, %v865
        %v867 = vrot.slane %v860, %v866
        %v868 = vcombine.low %v843, %v851
        %v869 = vcombine.high %v843, %v851
        %v871 = vunpack.c.l.s4 1934713408
        %v872 = vunpack.c.0.s8 %v871
        %v873 = vlaneseq
        %v874 = vshrl.u32 %v873, 7
        %v875 = vsub.s32 %v872, %v874
        %v876 = vrot.slane %v868, %v875
        %v878 = vunpack.c.l.s4 1934713408
        %v879 = vunpack.c.0.s8 %v878
        %v880 = vlaneseq
        %v881 = vshrl.u32 %v880, 7
        %v882 = vsub.s32 %v879, %v881
        %v883 = vrot.slane %v869, %v882
        %v884 = vcombine.low %v859, %v867
        %v885 = vcombine.high %v859, %v867
        %v887 = vunpack.c.l.s4 1934713408
        %v888 = vunpack.c.0.s8 %v887
        %v889 = vlaneseq
        %v890 = vshrl.u32 %v889, 7
        %v891 = vsub.s32 %v888, %v890
        %v892 = vrot.slane %v884, %v891
        %v894 = vunpack.c.l.s4 1934713408
        %v895 = vunpack.c.0.s8 %v894
        %v896 = vlaneseq
        %v897 = vshrl.u32 %v896, 7
        %v898 = vsub.s32 %v895, %v897
        %v899 = vrot.slane %v885, %v898
        %v900 = vcombine.low %v876, %v892
        %v901 = vcombine.high %v876, %v892
        %v902 = vcombine.low %v883, %v899
        %v903 = vcombine.high %v883, %v899
        %v904 = vld [vmem:[%s324] sm:$0xff]
        %v905 = vlaneseq
        %v906 = vand.u32 %v905, 127
        %v907 = vlaneseq
        %v908 = vshrl.u32 %v907, 7
        %v909 = vsub.s32 0, %v908
        %v910 = vrot.slane %v904, %v909
        %912 = vbcast.lane.b32.xlu0 %v910, 256
        %v913 = vpop.permute.xlu0 %912
        %v914 = vlaneseq
        %v915 = vshrl.u32 %v914, 7
        %v916 = vsub.s32 1, %v915
        %v917 = vrot.slane %v904, %v916
        %919 = vbcast.lane.b32.xlu0 %v917, 256
        %v920 = vpop.permute.xlu0 %919
        %v921 = vlaneseq
        %v922 = vshrl.u32 %v921, 7
        %v923 = vsub.s32 2, %v922
        %v924 = vrot.slane %v904, %v923
        %926 = vbcast.lane.b32.xlu0 %v924, 256
        %v927 = vpop.permute.xlu0 %926
        %v928 = vlaneseq
        %v929 = vshrl.u32 %v928, 7
        %v930 = vsub.s32 3, %v929
        %v931 = vrot.slane %v904, %v930
        %933 = vbcast.lane.b32.xlu0 %v931, 256
        %v934 = vpop.permute.xlu0 %933
        %v935 = vlaneseq
        %v936 = vshrl.u32 %v935, 7
        %v937 = vsub.s32 4, %v936
        %v938 = vrot.slane %v904, %v937
        %940 = vbcast.lane.b32.xlu0 %v938, 256
        %v941 = vpop.permute.xlu0 %940
        %v942 = vlaneseq
        %v943 = vshrl.u32 %v942, 7
        %v944 = vsub.s32 5, %v943
        %v945 = vrot.slane %v904, %v944
        %947 = vbcast.lane.b32.xlu0 %v945, 256
        %v948 = vpop.permute.xlu0 %947
        %v949 = vlaneseq
        %v950 = vshrl.u32 %v949, 7
        %v951 = vsub.s32 6, %v950
        %v952 = vrot.slane %v904, %v951
        %954 = vbcast.lane.b32.xlu0 %v952, 256
        %v955 = vpop.permute.xlu0 %954
        %v956 = vlaneseq
        %v957 = vshrl.u32 %v956, 7
        %v958 = vsub.s32 7, %v957
        %v959 = vrot.slane %v904, %v958
        %961 = vbcast.lane.b32.xlu0 %v959, 256
        %v962 = vpop.permute.xlu0 %961
        %vm963 = vcmp.eq.s32.totalorder %v913, %v906
        %vm964 = vcmp.eq.s32.totalorder %v920, %v906
        %vm965 = vcmp.eq.s32.totalorder %v927, %v906
        %vm966 = vcmp.eq.s32.totalorder %v934, %v906
        %vm967 = vcmp.eq.s32.totalorder %v941, %v906
        %vm968 = vcmp.eq.s32.totalorder %v948, %v906
        %vm969 = vcmp.eq.s32.totalorder %v955, %v906
        %vm970 = vcmp.eq.s32.totalorder %v962, %v906
        %v971 = vsel %vm963, 1, 0
        %v972 = vsel %vm964, 1, 0
        %v973 = vsel %vm965, 1, 0
        %v974 = vsel %vm966, 1, 0
        %v975 = vsel %vm967, 1, 0
        %v976 = vsel %vm968, 1, 0
        %v977 = vsel %vm969, 1, 0
        %v978 = vsel %vm970, 1, 0
        %v979 = vcvt.s32.f32 %v971
        %v980 = vcvt.s32.f32 %v972
        %v981 = vcvt.s32.f32 %v973
        %v982 = vcvt.s32.f32 %v974
        %v983 = vcvt.s32.f32 %v975
        %v984 = vcvt.s32.f32 %v976
        %v985 = vcvt.s32.f32 %v977
        %v986 = vcvt.s32.f32 %v978
        %v987 = vld [vmem:[%s4] sm:$0xff]
        %v988 = vld [vmem:[%s4 + $0x8] sm:$0x7]
        %vm989 = vcmask 89088
        %v991 = vsel %vm989, %v979, 0
        %v994 = vsel %vm989, %v980, 0
        %v997 = vsel %vm989, %v981, 0
        %v1000 = vsel %vm989, %v982, 0
        %v1003 = vsel %vm989, %v983, 0
        %v1006 = vsel %vm989, %v984, 0
        %v1009 = vsel %vm989, %v985, 0
        %v1012 = vsel %vm989, %v986, 0
        %vm1014 = vcmask 1042432
        %v1016 = vsel %vm1014, %v988, 0
        %1018 = vmatprep.subr.mxu0 0.0
        %1019 = vmatpush1.msra.mxu0 %v987
        %1020 = vmatprep.subr.mxu0 0.0
        %1021 = vmatpush1.msra.mxu0 %v1016
        %1022 = vmatprep.subr.mxu0 0.0
        %1023 = vmatpush1.msra.mxu0 0.0
        %1024 = vmatprep.subr.mxu0 0.0
        %1025 = vmatpush1.msra.mxu0 0.0
        %1026 = vmatprep.subr.mxu0 0.0
        %1027 = vmatpush1.msra.mxu0 0.0
        %1028 = vmatprep.subr.mxu0 0.0
        %1029 = vmatpush1.msra.mxu0 0.0
        %1030 = vmatprep.subr.mxu0 0.0
        %1031 = vmatpush1.msra.mxu0 0.0
        %1032 = vmatprep.subr.mxu0 0.0
        %1033 = vmatpush1.msra.mxu0 0.0
        %1034 = vmatprep.subr.mxu0 0.0
        %1035 = vmatpush1.msra.mxu0 0.0
        %1036 = vmatprep.subr.mxu0 0.0
        %1037 = vmatpush1.msra.mxu0 0.0
        %1038 = vmatprep.subr.mxu0 0.0
        %1039 = vmatpush1.msra.mxu0 0.0
        %1040 = vmatprep.subr.mxu0 0.0
        %1041 = vmatpush1.msra.mxu0 0.0
        %1042 = vmatprep.subr.mxu0 0.0
        %1043 = vmatpush1.msra.mxu0 0.0
        %1044 = vmatprep.subr.mxu0 0.0
        %1045 = vmatpush1.msra.mxu0 0.0
        %1046 = vmatprep.subr.mxu0 0.0
        %1047 = vmatpush1.msra.mxu0 0.0
        %1048 = vmatprep.subr.mxu0 0.0
        %1049 = vmatpush1.msra.mxu0 0.0
        %1050 = vmatprep.subr.mxu0 0.0
        %1051 = vmatpush1.msra.mxu0 0.0
        %1052 = vmatprep.subr.mxu0 0.0
        %1053 = vmatpush1.msra.mxu0 0.0
        %1054 = vmatprep.subr.mxu0 0.0
        %1055 = vmatpush1.msra.mxu0 0.0
        %1056 = vmatprep.subr.mxu0 0.0
        %1057 = vmatpush1.msra.mxu0 0.0
        %1058 = vmatprep.subr.mxu0 0.0
        %1059 = vmatpush1.msra.mxu0 0.0
        %1060 = vmatprep.subr.mxu0 0.0
        %1061 = vmatpush1.msra.mxu0 0.0
        %1062 = vmatprep.subr.mxu0 0.0
        %1063 = vmatpush1.msra.mxu0 0.0
        %1064 = vmatprep.subr.mxu0 0.0
        %1065 = vmatpush1.msra.mxu0 0.0
        %1066 = vmatprep.subr.mxu0 0.0
        %1067 = vmatpush1.msra.mxu0 0.0
        %1068 = vmatprep.subr.mxu0 0.0
        %1069 = vmatpush1.msra.mxu0 0.0
        %1070 = vmatprep.subr.mxu0 0.0
        %1071 = vmatpush1.msra.mxu0 0.0
        %1072 = vmatprep.subr.mxu0 0.0
        %1073 = vmatpush1.msra.mxu0 0.0
        %1074 = vmatprep.subr.mxu0 0.0
        %1075 = vmatpush1.msra.mxu0 0.0
        %1076 = vmatprep.subr.mxu0 0.0
        %1077 = vmatpush1.msra.mxu0 0.0
        %1078 = vmatprep.subr.mxu0 0.0
        %1079 = vmatpush1.msra.mxu0 0.0
        %1080 = vmatprep.subr.mxu0 0.0
        %1081 = vmatpush1.msra.mxu0 0.0
        %1082 = vmatprep.mubr.f32.mxu0 0.0
        %1083 = vmatmul.mubr.f32.gmra.mrb[0].mxu0 %v991
        %v1084 = vpop.f32.mrb[0].mxu0
        %v1085 = vadd.f32 0.0, %v1084
        %v1086 = vpop.f32.mrb[0].mxu0
        %1087 = vmatprep.mubr.f32.mxu0 0.0
        %1088 = vmatmul.mubr.f32.gmra.mrb[0].mxu0 %v994
        %v1089 = vpop.f32.mrb[0].mxu0
        %v1090 = vadd.f32 0.0, %v1089
        %v1091 = vpop.f32.mrb[0].mxu0
        %1092 = vmatprep.mubr.f32.mxu0 0.0
        %1093 = vmatmul.mubr.f32.gmra.mrb[0].mxu0 %v997
        %v1094 = vpop.f32.mrb[0].mxu0
        %v1095 = vadd.f32 0.0, %v1094
        %v1096 = vpop.f32.mrb[0].mxu0
        %1097 = vmatprep.mubr.f32.mxu0 0.0
        %1098 = vmatmul.mubr.f32.gmra.mrb[0].mxu0 %v1000
        %v1099 = vpop.f32.mrb[0].mxu0
        %v1100 = vadd.f32 0.0, %v1099
        %v1101 = vpop.f32.mrb[0].mxu0
        %1102 = vmatprep.mubr.f32.mxu0 0.0
        %1103 = vmatmul.mubr.f32.gmra.mrb[0].mxu0 %v1003
        %v1104 = vpop.f32.mrb[0].mxu0
        %v1105 = vadd.f32 0.0, %v1104
        %v1106 = vpop.f32.mrb[0].mxu0
        %1107 = vmatprep.mubr.f32.mxu0 0.0
        %1108 = vmatmul.mubr.f32.gmra.mrb[0].mxu0 %v1006
        %v1109 = vpop.f32.mrb[0].mxu0
        %v1110 = vadd.f32 0.0, %v1109
        %v1111 = vpop.f32.mrb[0].mxu0
        %1112 = vmatprep.mubr.f32.mxu0 0.0
        %1113 = vmatmul.mubr.f32.gmra.mrb[0].mxu0 %v1009
        %v1114 = vpop.f32.mrb[0].mxu0
        %v1115 = vadd.f32 0.0, %v1114
        %v1116 = vpop.f32.mrb[0].mxu0
        %1117 = vmatprep.mubr.f32.mxu0 0.0
        %1118 = vmatmul.mubr.f32.gmra.mrb[0].mxu0 %v1012
        %v1119 = vpop.f32.mrb[0].mxu0
        %v1120 = vadd.f32 0.0, %v1119
        %v1121 = vpop.f32.mrb[0].mxu0
        %1122 = vdwg.mxu0
        %v1123 = vld [vmem:[%s5] sm:$0xff]
        %v1124 = vld [vmem:[%s5 + $0x8] sm:$0x7]
        %v1126 = vsel %vm1014, %v1124, 0
        %1128 = vmatprep.subr.mxu0 0.0
        %1129 = vmatpush1.msra.mxu0 %v1123
        %1130 = vmatprep.subr.mxu0 0.0
        %1131 = vmatpush1.msra.mxu0 %v1126
        %1132 = vmatprep.subr.mxu0 0.0
        %1133 = vmatpush1.msra.mxu0 0.0
        %1134 = vmatprep.subr.mxu0 0.0
        %1135 = vmatpush1.msra.mxu0 0.0
        %1136 = vmatprep.subr.mxu0 0.0
        %1137 = vmatpush1.msra.mxu0 0.0
        %1138 = vmatprep.subr.mxu0 0.0
        %1139 = vmatpush1.msra.mxu0 0.0
        %1140 = vmatprep.subr.mxu0 0.0
        %1141 = vmatpush1.msra.mxu0 0.0
        %1142 = vmatprep.subr.mxu0 0.0
        %1143 = vmatpush1.msra.mxu0 0.0
        %1144 = vmatprep.subr.mxu0 0.0
        %1145 = vmatpush1.msra.mxu0 0.0
        %1146 = vmatprep.subr.mxu0 0.0
        %1147 = vmatpush1.msra.mxu0 0.0
        %1148 = vmatprep.subr.mxu0 0.0
        %1149 = vmatpush1.msra.mxu0 0.0
        %1150 = vmatprep.subr.mxu0 0.0
        %1151 = vmatpush1.msra.mxu0 0.0
        %1152 = vmatprep.subr.mxu0 0.0
        %1153 = vmatpush1.msra.mxu0 0.0
        %1154 = vmatprep.subr.mxu0 0.0
        %1155 = vmatpush1.msra.mxu0 0.0
        %1156 = vmatprep.subr.mxu0 0.0
        %1157 = vmatpush1.msra.mxu0 0.0
        %1158 = vmatprep.subr.mxu0 0.0
        %1159 = vmatpush1.msra.mxu0 0.0
        %1160 = vmatprep.subr.mxu0 0.0
        %1161 = vmatpush1.msra.mxu0 0.0
        %1162 = vmatprep.subr.mxu0 0.0
        %1163 = vmatpush1.msra.mxu0 0.0
        %1164 = vmatprep.subr.mxu0 0.0
        %1165 = vmatpush1.msra.mxu0 0.0
        %1166 = vmatprep.subr.mxu0 0.0
        %1167 = vmatpush1.msra.mxu0 0.0
        %1168 = vmatprep.subr.mxu0 0.0
        %1169 = vmatpush1.msra.mxu0 0.0
        %1170 = vmatprep.subr.mxu0 0.0
        %1171 = vmatpush1.msra.mxu0 0.0
        %1172 = vmatprep.subr.mxu0 0.0
        %1173 = vmatpush1.msra.mxu0 0.0
        %1174 = vmatprep.subr.mxu0 0.0
        %1175 = vmatpush1.msra.mxu0 0.0
        %1176 = vmatprep.subr.mxu0 0.0
        %1177 = vmatpush1.msra.mxu0 0.0
        %1178 = vmatprep.subr.mxu0 0.0
        %1179 = vmatpush1.msra.mxu0 0.0
        %1180 = vmatprep.subr.mxu0 0.0
        %1181 = vmatpush1.msra.mxu0 0.0
        %1182 = vmatprep.subr.mxu0 0.0
        %1183 = vmatpush1.msra.mxu0 0.0
        %1184 = vmatprep.subr.mxu0 0.0
        %1185 = vmatpush1.msra.mxu0 0.0
        %1186 = vmatprep.subr.mxu0 0.0
        %1187 = vmatpush1.msra.mxu0 0.0
        %1188 = vmatprep.subr.mxu0 0.0
        %1189 = vmatpush1.msra.mxu0 0.0
        %1190 = vmatprep.subr.mxu0 0.0
        %1191 = vmatpush1.msra.mxu0 0.0
        %1192 = vmatprep.mubr.f32.mxu0 0.0
        %1193 = vmatmul.mubr.f32.gmra.mrb[0].mxu0 %v991
        %v1194 = vpop.f32.mrb[0].mxu0
        %v1195 = vadd.f32 0.0, %v1194
        %v1196 = vpop.f32.mrb[0].mxu0
        %1197 = vmatprep.mubr.f32.mxu0 0.0
        %1198 = vmatmul.mubr.f32.gmra.mrb[0].mxu0 %v994
        %v1199 = vpop.f32.mrb[0].mxu0
        %v1200 = vadd.f32 0.0, %v1199
        %v1201 = vpop.f32.mrb[0].mxu0
        %1202 = vmatprep.mubr.f32.mxu0 0.0
        %1203 = vmatmul.mubr.f32.gmra.mrb[0].mxu0 %v997
        %v1204 = vpop.f32.mrb[0].mxu0
        %v1205 = vadd.f32 0.0, %v1204
        %v1206 = vpop.f32.mrb[0].mxu0
        %1207 = vmatprep.mubr.f32.mxu0 0.0
        %1208 = vmatmul.mubr.f32.gmra.mrb[0].mxu0 %v1000
        %v1209 = vpop.f32.mrb[0].mxu0
        %v1210 = vadd.f32 0.0, %v1209
        %v1211 = vpop.f32.mrb[0].mxu0
        %1212 = vmatprep.mubr.f32.mxu0 0.0
        %1213 = vmatmul.mubr.f32.gmra.mrb[0].mxu0 %v1003
        %v1214 = vpop.f32.mrb[0].mxu0
        %v1215 = vadd.f32 0.0, %v1214
        %v1216 = vpop.f32.mrb[0].mxu0
        %1217 = vmatprep.mubr.f32.mxu0 0.0
        %1218 = vmatmul.mubr.f32.gmra.mrb[0].mxu0 %v1006
        %v1219 = vpop.f32.mrb[0].mxu0
        %v1220 = vadd.f32 0.0, %v1219
        %v1221 = vpop.f32.mrb[0].mxu0
        %1222 = vmatprep.mubr.f32.mxu0 0.0
        %1223 = vmatmul.mubr.f32.gmra.mrb[0].mxu0 %v1009
        %v1224 = vpop.f32.mrb[0].mxu0
        %v1225 = vadd.f32 0.0, %v1224
        %v1226 = vpop.f32.mrb[0].mxu0
        %1227 = vmatprep.mubr.f32.mxu0 0.0
        %1228 = vmatmul.mubr.f32.gmra.mrb[0].mxu0 %v1012
        %v1229 = vpop.f32.mrb[0].mxu0
        %v1230 = vadd.f32 0.0, %v1229
        %v1231 = vpop.f32.mrb[0].mxu0
        %1232 = vdwg.mxu0
        %vm1233 = vcmask 64512
        %v1235 = vsel %vm1233, %v764, 0
        %v1238 = vsel %vm1233, %v832, 0
        %1240 = vmatprep.subr.mxu0 0.0
        %1241 = vmatpush1.xpose.msra.mxu0 %v1238
        %1242 = vmatprep.subr.mxu0 0.0
        %1243 = vmatpush1.xpose.msra.mxu0 0.0
        %1244 = vmatprep.subr.mxu0 0.0
        %1245 = vmatpush1.xpose.msra.mxu0 0.0
        %1246 = vmatprep.subr.mxu0 0.0
        %1247 = vmatpush1.xpose.msra.mxu0 0.0
        %1248 = vmatprep.subr.mxu0 0.0
        %1249 = vmatpush1.xpose.msra.mxu0 0.0
        %1250 = vmatprep.subr.mxu0 0.0
        %1251 = vmatpush1.xpose.msra.mxu0 0.0
        %1252 = vmatprep.subr.mxu0 0.0
        %1253 = vmatpush1.xpose.msra.mxu0 0.0
        %1254 = vmatprep.subr.mxu0 0.0
        %1255 = vmatpush1.xpose.msra.mxu0 0.0
        %1256 = vmatprep.subr.mxu0 0.0
        %1257 = vmatpush1.xpose.msra.mxu0 0.0
        %1258 = vmatprep.subr.mxu0 0.0
        %1259 = vmatpush1.xpose.msra.mxu0 0.0
        %1260 = vmatprep.subr.mxu0 0.0
        %1261 = vmatpush1.xpose.msra.mxu0 0.0
        %1262 = vmatprep.subr.mxu0 0.0
        %1263 = vmatpush1.xpose.msra.mxu0 0.0
        %1264 = vmatprep.subr.mxu0 0.0
        %1265 = vmatpush1.xpose.msra.mxu0 0.0
        %1266 = vmatprep.subr.mxu0 0.0
        %1267 = vmatpush1.xpose.msra.mxu0 0.0
        %1268 = vmatprep.subr.mxu0 0.0
        %1269 = vmatpush1.xpose.msra.mxu0 0.0
        %1270 = vmatprep.subr.mxu0 0.0
        %1271 = vmatpush1.xpose.msra.mxu0 0.0
        %1272 = vmatprep.subr.mxu0 0.0
        %1273 = vmatpush1.xpose.msra.mxu0 0.0
        %1274 = vmatprep.subr.mxu0 0.0
        %1275 = vmatpush1.xpose.msra.mxu0 0.0
        %1276 = vmatprep.subr.mxu0 0.0
        %1277 = vmatpush1.xpose.msra.mxu0 0.0
        %1278 = vmatprep.subr.mxu0 0.0
        %1279 = vmatpush1.xpose.msra.mxu0 0.0
        %1280 = vmatprep.subr.mxu0 0.0
        %1281 = vmatpush1.xpose.msra.mxu0 0.0
        %1282 = vmatprep.subr.mxu0 0.0
        %1283 = vmatpush1.xpose.msra.mxu0 0.0
        %1284 = vmatprep.subr.mxu0 0.0
        %1285 = vmatpush1.xpose.msra.mxu0 0.0
        %1286 = vmatprep.subr.mxu0 0.0
        %1287 = vmatpush1.xpose.msra.mxu0 0.0
        %1288 = vmatprep.subr.mxu0 0.0
        %1289 = vmatpush1.xpose.msra.mxu0 0.0
        %1290 = vmatprep.subr.mxu0 0.0
        %1291 = vmatpush1.xpose.msra.mxu0 0.0
        %1292 = vmatprep.subr.mxu0 0.0
        %1293 = vmatpush1.xpose.msra.mxu0 0.0
        %1294 = vmatprep.subr.mxu0 0.0
        %1295 = vmatpush1.xpose.msra.mxu0 0.0
        %1296 = vmatprep.subr.mxu0 0.0
        %1297 = vmatpush1.xpose.msra.mxu0 0.0
        %1298 = vmatprep.subr.mxu0 0.0
        %1299 = vmatpush1.xpose.msra.mxu0 0.0
        %1300 = vmatprep.subr.mxu0 0.0
        %1301 = vmatpush1.xpose.msra.mxu0 0.0
        %1302 = vmatprep.subr.mxu0 0.0
        %1303 = vmatpush1.xpose.msra.mxu0 0.0
        %1304 = vmatprep.mubr.f32.mxu0 0.0
        %1305 = vmatmul.mubr.f32.gmra.mrb[0].mxu0 %v1235
        %v1306 = vpop.f32.mrb[0].mxu0
        %v1307 = vadd.f32 0.0, %v1306
        %v1308 = vpop.f32.mrb[0].mxu0
        %1309 = vdwg.mxu0
        %v1311 = vsel %vm1233, %v765, 0
        %v1314 = vsel %vm1233, %v833, 0
        %1316 = vmatprep.subr.mxu0 0.0
        %1317 = vmatpush1.xpose.msra.mxu0 %v1314
        %1318 = vmatprep.subr.mxu0 0.0
        %1319 = vmatpush1.xpose.msra.mxu0 0.0
        %1320 = vmatprep.subr.mxu0 0.0
        %1321 = vmatpush1.xpose.msra.mxu0 0.0
        %1322 = vmatprep.subr.mxu0 0.0
        %1323 = vmatpush1.xpose.msra.mxu0 0.0
        %1324 = vmatprep.subr.mxu0 0.0
        %1325 = vmatpush1.xpose.msra.mxu0 0.0
        %1326 = vmatprep.subr.mxu0 0.0
        %1327 = vmatpush1.xpose.msra.mxu0 0.0
        %1328 = vmatprep.subr.mxu0 0.0
        %1329 = vmatpush1.xpose.msra.mxu0 0.0
        %1330 = vmatprep.subr.mxu0 0.0
        %1331 = vmatpush1.xpose.msra.mxu0 0.0
        %1332 = vmatprep.subr.mxu0 0.0
        %1333 = vmatpush1.xpose.msra.mxu0 0.0
        %1334 = vmatprep.subr.mxu0 0.0
        %1335 = vmatpush1.xpose.msra.mxu0 0.0
        %1336 = vmatprep.subr.mxu0 0.0
        %1337 = vmatpush1.xpose.msra.mxu0 0.0
        %1338 = vmatprep.subr.mxu0 0.0
        %1339 = vmatpush1.xpose.msra.mxu0 0.0
        %1340 = vmatprep.subr.mxu0 0.0
        %1341 = vmatpush1.xpose.msra.mxu0 0.0
        %1342 = vmatprep.subr.mxu0 0.0
        %1343 = vmatpush1.xpose.msra.mxu0 0.0
        %1344 = vmatprep.subr.mxu0 0.0
        %1345 = vmatpush1.xpose.msra.mxu0 0.0
        %1346 = vmatprep.subr.mxu0 0.0
        %1347 = vmatpush1.xpose.msra.mxu0 0.0
        %1348 = vmatprep.subr.mxu0 0.0
        %1349 = vmatpush1.xpose.msra.mxu0 0.0
        %1350 = vmatprep.subr.mxu0 0.0
        %1351 = vmatpush1.xpose.msra.mxu0 0.0
        %1352 = vmatprep.subr.mxu0 0.0
        %1353 = vmatpush1.xpose.msra.mxu0 0.0
        %1354 = vmatprep.subr.mxu0 0.0
        %1355 = vmatpush1.xpose.msra.mxu0 0.0
        %1356 = vmatprep.subr.mxu0 0.0
        %1357 = vmatpush1.xpose.msra.mxu0 0.0
        %1358 = vmatprep.subr.mxu0 0.0
        %1359 = vmatpush1.xpose.msra.mxu0 0.0
        %1360 = vmatprep.subr.mxu0 0.0
        %1361 = vmatpush1.xpose.msra.mxu0 0.0
        %1362 = vmatprep.subr.mxu0 0.0
        %1363 = vmatpush1.xpose.msra.mxu0 0.0
        %1364 = vmatprep.subr.mxu0 0.0
        %1365 = vmatpush1.xpose.msra.mxu0 0.0
        %1366 = vmatprep.subr.mxu0 0.0
        %1367 = vmatpush1.xpose.msra.mxu0 0.0
        %1368 = vmatprep.subr.mxu0 0.0
        %1369 = vmatpush1.xpose.msra.mxu0 0.0
        %1370 = vmatprep.subr.mxu0 0.0
        %1371 = vmatpush1.xpose.msra.mxu0 0.0
        %1372 = vmatprep.subr.mxu0 0.0
        %1373 = vmatpush1.xpose.msra.mxu0 0.0
        %1374 = vmatprep.subr.mxu0 0.0
        %1375 = vmatpush1.xpose.msra.mxu0 0.0
        %1376 = vmatprep.subr.mxu0 0.0
        %1377 = vmatpush1.xpose.msra.mxu0 0.0
        %1378 = vmatprep.subr.mxu0 0.0
        %1379 = vmatpush1.xpose.msra.mxu0 0.0
        %1380 = vmatprep.mubr.f32.mxu0 0.0
        %1381 = vmatmul.mubr.f32.gmra.mrb[0].mxu0 %v1311
        %v1382 = vpop.f32.mrb[0].mxu0
        %v1383 = vadd.f32 0.0, %v1382
        %v1384 = vpop.f32.mrb[0].mxu0
        %1385 = vdwg.mxu0
        %v1387 = vsel %vm1233, %v766, 0
        %v1390 = vsel %vm1233, %v834, 0
        %1392 = vmatprep.subr.mxu0 0.0
        %1393 = vmatpush1.xpose.msra.mxu0 %v1390
        %1394 = vmatprep.subr.mxu0 0.0
        %1395 = vmatpush1.xpose.msra.mxu0 0.0
        %1396 = vmatprep.subr.mxu0 0.0
        %1397 = vmatpush1.xpose.msra.mxu0 0.0
        %1398 = vmatprep.subr.mxu0 0.0
        %1399 = vmatpush1.xpose.msra.mxu0 0.0
        %1400 = vmatprep.subr.mxu0 0.0
        %1401 = vmatpush1.xpose.msra.mxu0 0.0
        %1402 = vmatprep.subr.mxu0 0.0
        %1403 = vmatpush1.xpose.msra.mxu0 0.0
        %1404 = vmatprep.subr.mxu0 0.0
        %1405 = vmatpush1.xpose.msra.mxu0 0.0
        %1406 = vmatprep.subr.mxu0 0.0
        %1407 = vmatpush1.xpose.msra.mxu0 0.0
        %1408 = vmatprep.subr.mxu0 0.0
        %1409 = vmatpush1.xpose.msra.mxu0 0.0
        %1410 = vmatprep.subr.mxu0 0.0
        %1411 = vmatpush1.xpose.msra.mxu0 0.0
        %1412 = vmatprep.subr.mxu0 0.0
        %1413 = vmatpush1.xpose.msra.mxu0 0.0
        %1414 = vmatprep.subr.mxu0 0.0
        %1415 = vmatpush1.xpose.msra.mxu0 0.0
        %1416 = vmatprep.subr.mxu0 0.0
        %1417 = vmatpush1.xpose.msra.mxu0 0.0
        %1418 = vmatprep.subr.mxu0 0.0
        %1419 = vmatpush1.xpose.msra.mxu0 0.0
        %1420 = vmatprep.subr.mxu0 0.0
        %1421 = vmatpush1.xpose.msra.mxu0 0.0
        %1422 = vmatprep.subr.mxu0 0.0
        %1423 = vmatpush1.xpose.msra.mxu0 0.0
        %1424 = vmatprep.subr.mxu0 0.0
        %1425 = vmatpush1.xpose.msra.mxu0 0.0
        %1426 = vmatprep.subr.mxu0 0.0
        %1427 = vmatpush1.xpose.msra.mxu0 0.0
        %1428 = vmatprep.subr.mxu0 0.0
        %1429 = vmatpush1.xpose.msra.mxu0 0.0
        %1430 = vmatprep.subr.mxu0 0.0
        %1431 = vmatpush1.xpose.msra.mxu0 0.0
        %1432 = vmatprep.subr.mxu0 0.0
        %1433 = vmatpush1.xpose.msra.mxu0 0.0
        %1434 = vmatprep.subr.mxu0 0.0
        %1435 = vmatpush1.xpose.msra.mxu0 0.0
        %1436 = vmatprep.subr.mxu0 0.0
        %1437 = vmatpush1.xpose.msra.mxu0 0.0
        %1438 = vmatprep.subr.mxu0 0.0
        %1439 = vmatpush1.xpose.msra.mxu0 0.0
        %1440 = vmatprep.subr.mxu0 0.0
        %1441 = vmatpush1.xpose.msra.mxu0 0.0
        %1442 = vmatprep.subr.mxu0 0.0
        %1443 = vmatpush1.xpose.msra.mxu0 0.0
        %1444 = vmatprep.subr.mxu0 0.0
        %1445 = vmatpush1.xpose.msra.mxu0 0.0
        %1446 = vmatprep.subr.mxu0 0.0
        %1447 = vmatpush1.xpose.msra.mxu0 0.0
        %1448 = vmatprep.subr.mxu0 0.0
        %1449 = vmatpush1.xpose.msra.mxu0 0.0
        %1450 = vmatprep.subr.mxu0 0.0
        %1451 = vmatpush1.xpose.msra.mxu0 0.0
        %1452 = vmatprep.subr.mxu0 0.0
        %1453 = vmatpush1.xpose.msra.mxu0 0.0
        %1454 = vmatprep.subr.mxu0 0.0
        %1455 = vmatpush1.xpose.msra.mxu0 0.0
        %1456 = vmatprep.mubr.f32.mxu0 0.0
        %1457 = vmatmul.mubr.f32.gmra.mrb[0].mxu0 %v1387
        %v1458 = vpop.f32.mrb[0].mxu0
        %v1459 = vadd.f32 0.0, %v1458
        %v1460 = vpop.f32.mrb[0].mxu0
        %1461 = vdwg.mxu0
        %v1463 = vsel %vm1233, %v767, 0
        %v1466 = vsel %vm1233, %v835, 0
        %1468 = vmatprep.subr.mxu0 0.0
        %1469 = vmatpush1.xpose.msra.mxu0 %v1466
        %1470 = vmatprep.subr.mxu0 0.0
        %1471 = vmatpush1.xpose.msra.mxu0 0.0
        %1472 = vmatprep.subr.mxu0 0.0
        %1473 = vmatpush1.xpose.msra.mxu0 0.0
        %1474 = vmatprep.subr.mxu0 0.0
        %1475 = vmatpush1.xpose.msra.mxu0 0.0
        %1476 = vmatprep.subr.mxu0 0.0
        %1477 = vmatpush1.xpose.msra.mxu0 0.0
        %1478 = vmatprep.subr.mxu0 0.0
        %1479 = vmatpush1.xpose.msra.mxu0 0.0
        %1480 = vmatprep.subr.mxu0 0.0
        %1481 = vmatpush1.xpose.msra.mxu0 0.0
        %1482 = vmatprep.subr.mxu0 0.0
        %1483 = vmatpush1.xpose.msra.mxu0 0.0
        %1484 = vmatprep.subr.mxu0 0.0
        %1485 = vmatpush1.xpose.msra.mxu0 0.0
        %1486 = vmatprep.subr.mxu0 0.0
        %1487 = vmatpush1.xpose.msra.mxu0 0.0
        %1488 = vmatprep.subr.mxu0 0.0
        %1489 = vmatpush1.xpose.msra.mxu0 0.0
        %1490 = vmatprep.subr.mxu0 0.0
        %1491 = vmatpush1.xpose.msra.mxu0 0.0
        %1492 = vmatprep.subr.mxu0 0.0
        %1493 = vmatpush1.xpose.msra.mxu0 0.0
        %1494 = vmatprep.subr.mxu0 0.0
        %1495 = vmatpush1.xpose.msra.mxu0 0.0
        %1496 = vmatprep.subr.mxu0 0.0
        %1497 = vmatpush1.xpose.msra.mxu0 0.0
        %1498 = vmatprep.subr.mxu0 0.0
        %1499 = vmatpush1.xpose.msra.mxu0 0.0
        %1500 = vmatprep.subr.mxu0 0.0
        %1501 = vmatpush1.xpose.msra.mxu0 0.0
        %1502 = vmatprep.subr.mxu0 0.0
        %1503 = vmatpush1.xpose.msra.mxu0 0.0
        %1504 = vmatprep.subr.mxu0 0.0
        %1505 = vmatpush1.xpose.msra.mxu0 0.0
        %1506 = vmatprep.subr.mxu0 0.0
        %1507 = vmatpush1.xpose.msra.mxu0 0.0
        %1508 = vmatprep.subr.mxu0 0.0
        %1509 = vmatpush1.xpose.msra.mxu0 0.0
        %1510 = vmatprep.subr.mxu0 0.0
        %1511 = vmatpush1.xpose.msra.mxu0 0.0
        %1512 = vmatprep.subr.mxu0 0.0
        %1513 = vmatpush1.xpose.msra.mxu0 0.0
        %1514 = vmatprep.subr.mxu0 0.0
        %1515 = vmatpush1.xpose.msra.mxu0 0.0
        %1516 = vmatprep.subr.mxu0 0.0
        %1517 = vmatpush1.xpose.msra.mxu0 0.0
        %1518 = vmatprep.subr.mxu0 0.0
        %1519 = vmatpush1.xpose.msra.mxu0 0.0
        %1520 = vmatprep.subr.mxu0 0.0
        %1521 = vmatpush1.xpose.msra.mxu0 0.0
        %1522 = vmatprep.subr.mxu0 0.0
        %1523 = vmatpush1.xpose.msra.mxu0 0.0
        %1524 = vmatprep.subr.mxu0 0.0
        %1525 = vmatpush1.xpose.msra.mxu0 0.0
        %1526 = vmatprep.subr.mxu0 0.0
        %1527 = vmatpush1.xpose.msra.mxu0 0.0
        %1528 = vmatprep.subr.mxu0 0.0
        %1529 = vmatpush1.xpose.msra.mxu0 0.0
        %1530 = vmatprep.subr.mxu0 0.0
        %1531 = vmatpush1.xpose.msra.mxu0 0.0
        %1532 = vmatprep.mubr.f32.mxu0 0.0
        %1533 = vmatmul.mubr.f32.gmra.mrb[0].mxu0 %v1463
        %v1534 = vpop.f32.mrb[0].mxu0
        %v1535 = vadd.f32 0.0, %v1534
        %v1536 = vpop.f32.mrb[0].mxu0
        %1537 = vdwg.mxu0
        %v1538 = vmul.f32 %v1307, 0.35355338
        %v1539 = vmul.f32 %v1383, 0.35355338
        %v1540 = vmul.f32 %v1459, 0.35355338
        %v1541 = vmul.f32 %v1535, 0.35355338
        %v1543 = vsel %vm1233, %v512, 0
        %v1546 = vsel %vm1233, %v1085, 0
        %1548 = vmatprep.subr.mxu0 0.0
        %1549 = vmatpush1.xpose.msra.mxu0 %v1546
        %1550 = vmatprep.subr.mxu0 0.0
        %1551 = vmatpush1.xpose.msra.mxu0 0.0
        %1552 = vmatprep.subr.mxu0 0.0
        %1553 = vmatpush1.xpose.msra.mxu0 0.0
        %1554 = vmatprep.subr.mxu0 0.0
        %1555 = vmatpush1.xpose.msra.mxu0 0.0
        %1556 = vmatprep.subr.mxu0 0.0
        %1557 = vmatpush1.xpose.msra.mxu0 0.0
        %1558 = vmatprep.subr.mxu0 0.0
        %1559 = vmatpush1.xpose.msra.mxu0 0.0
        %1560 = vmatprep.subr.mxu0 0.0
        %1561 = vmatpush1.xpose.msra.mxu0 0.0
        %1562 = vmatprep.subr.mxu0 0.0
        %1563 = vmatpush1.xpose.msra.mxu0 0.0
        %1564 = vmatprep.subr.mxu0 0.0
        %1565 = vmatpush1.xpose.msra.mxu0 0.0
        %1566 = vmatprep.subr.mxu0 0.0
        %1567 = vmatpush1.xpose.msra.mxu0 0.0
        %1568 = vmatprep.subr.mxu0 0.0
        %1569 = vmatpush1.xpose.msra.mxu0 0.0
        %1570 = vmatprep.subr.mxu0 0.0
        %1571 = vmatpush1.xpose.msra.mxu0 0.0
        %1572 = vmatprep.subr.mxu0 0.0
        %1573 = vmatpush1.xpose.msra.mxu0 0.0
        %1574 = vmatprep.subr.mxu0 0.0
        %1575 = vmatpush1.xpose.msra.mxu0 0.0
        %1576 = vmatprep.subr.mxu0 0.0
        %1577 = vmatpush1.xpose.msra.mxu0 0.0
        %1578 = vmatprep.subr.mxu0 0.0
        %1579 = vmatpush1.xpose.msra.mxu0 0.0
        %1580 = vmatprep.subr.mxu0 0.0
        %1581 = vmatpush1.xpose.msra.mxu0 0.0
        %1582 = vmatprep.subr.mxu0 0.0
        %1583 = vmatpush1.xpose.msra.mxu0 0.0
        %1584 = vmatprep.subr.mxu0 0.0
        %1585 = vmatpush1.xpose.msra.mxu0 0.0
        %1586 = vmatprep.subr.mxu0 0.0
        %1587 = vmatpush1.xpose.msra.mxu0 0.0
        %1588 = vmatprep.subr.mxu0 0.0
        %1589 = vmatpush1.xpose.msra.mxu0 0.0
        %1590 = vmatprep.subr.mxu0 0.0
        %1591 = vmatpush1.xpose.msra.mxu0 0.0
        %1592 = vmatprep.subr.mxu0 0.0
        %1593 = vmatpush1.xpose.msra.mxu0 0.0
        %1594 = vmatprep.subr.mxu0 0.0
        %1595 = vmatpush1.xpose.msra.mxu0 0.0
        %1596 = vmatprep.subr.mxu0 0.0
        %1597 = vmatpush1.xpose.msra.mxu0 0.0
        %1598 = vmatprep.subr.mxu0 0.0
        %1599 = vmatpush1.xpose.msra.mxu0 0.0
        %1600 = vmatprep.subr.mxu0 0.0
        %1601 = vmatpush1.xpose.msra.mxu0 0.0
        %1602 = vmatprep.subr.mxu0 0.0
        %1603 = vmatpush1.xpose.msra.mxu0 0.0
        %1604 = vmatprep.subr.mxu0 0.0
        %1605 = vmatpush1.xpose.msra.mxu0 0.0
        %1606 = vmatprep.subr.mxu0 0.0
        %1607 = vmatpush1.xpose.msra.mxu0 0.0
        %1608 = vmatprep.subr.mxu0 0.0
        %1609 = vmatpush1.xpose.msra.mxu0 0.0
        %1610 = vmatprep.subr.mxu0 0.0
        %1611 = vmatpush1.xpose.msra.mxu0 0.0
        %1612 = vmatprep.mubr.f32.mxu0 0.0
        %1613 = vmatmul.mubr.f32.gmra.mrb[0].mxu0 %v1543
        %v1614 = vpop.f32.mrb[0].mxu0
        %v1615 = vadd.f32 0.0, %v1614
        %v1616 = vpop.f32.mrb[0].mxu0
        %1617 = vdwg.mxu0
        %v1619 = vsel %vm1233, %v536, 0
        %v1622 = vsel %vm1233, %v1090, 0
        %1624 = vmatprep.subr.mxu0 0.0
        %1625 = vmatpush1.xpose.msra.mxu0 %v1622
        %1626 = vmatprep.subr.mxu0 0.0
        %1627 = vmatpush1.xpose.msra.mxu0 0.0
        %1628 = vmatprep.subr.mxu0 0.0
        %1629 = vmatpush1.xpose.msra.mxu0 0.0
        %1630 = vmatprep.subr.mxu0 0.0
        %1631 = vmatpush1.xpose.msra.mxu0 0.0
        %1632 = vmatprep.subr.mxu0 0.0
        %1633 = vmatpush1.xpose.msra.mxu0 0.0
        %1634 = vmatprep.subr.mxu0 0.0
        %1635 = vmatpush1.xpose.msra.mxu0 0.0
        %1636 = vmatprep.subr.mxu0 0.0
        %1637 = vmatpush1.xpose.msra.mxu0 0.0
        %1638 = vmatprep.subr.mxu0 0.0
        %1639 = vmatpush1.xpose.msra.mxu0 0.0
        %1640 = vmatprep.subr.mxu0 0.0
        %1641 = vmatpush1.xpose.msra.mxu0 0.0
        %1642 = vmatprep.subr.mxu0 0.0
        %1643 = vmatpush1.xpose.msra.mxu0 0.0
        %1644 = vmatprep.subr.mxu0 0.0
        %1645 = vmatpush1.xpose.msra.mxu0 0.0
        %1646 = vmatprep.subr.mxu0 0.0
        %1647 = vmatpush1.xpose.msra.mxu0 0.0
        %1648 = vmatprep.subr.mxu0 0.0
        %1649 = vmatpush1.xpose.msra.mxu0 0.0
        %1650 = vmatprep.subr.mxu0 0.0
        %1651 = vmatpush1.xpose.msra.mxu0 0.0
        %1652 = vmatprep.subr.mxu0 0.0
        %1653 = vmatpush1.xpose.msra.mxu0 0.0
        %1654 = vmatprep.subr.mxu0 0.0
        %1655 = vmatpush1.xpose.msra.mxu0 0.0
        %1656 = vmatprep.subr.mxu0 0.0
        %1657 = vmatpush1.xpose.msra.mxu0 0.0
        %1658 = vmatprep.subr.mxu0 0.0
        %1659 = vmatpush1.xpose.msra.mxu0 0.0
        %1660 = vmatprep.subr.mxu0 0.0
        %1661 = vmatpush1.xpose.msra.mxu0 0.0
        %1662 = vmatprep.subr.mxu0 0.0
        %1663 = vmatpush1.xpose.msra.mxu0 0.0
        %1664 = vmatprep.subr.mxu0 0.0
        %1665 = vmatpush1.xpose.msra.mxu0 0.0
        %1666 = vmatprep.subr.mxu0 0.0
        %1667 = vmatpush1.xpose.msra.mxu0 0.0
        %1668 = vmatprep.subr.mxu0 0.0
        %1669 = vmatpush1.xpose.msra.mxu0 0.0
        %1670 = vmatprep.subr.mxu0 0.0
        %1671 = vmatpush1.xpose.msra.mxu0 0.0
        %1672 = vmatprep.subr.mxu0 0.0
        %1673 = vmatpush1.xpose.msra.mxu0 0.0
        %1674 = vmatprep.subr.mxu0 0.0
        %1675 = vmatpush1.xpose.msra.mxu0 0.0
        %1676 = vmatprep.subr.mxu0 0.0
        %1677 = vmatpush1.xpose.msra.mxu0 0.0
        %1678 = vmatprep.subr.mxu0 0.0
        %1679 = vmatpush1.xpose.msra.mxu0 0.0
        %1680 = vmatprep.subr.mxu0 0.0
        %1681 = vmatpush1.xpose.msra.mxu0 0.0
        %1682 = vmatprep.subr.mxu0 0.0
        %1683 = vmatpush1.xpose.msra.mxu0 0.0
        %1684 = vmatprep.subr.mxu0 0.0
        %1685 = vmatpush1.xpose.msra.mxu0 0.0
        %1686 = vmatprep.subr.mxu0 0.0
        %1687 = vmatpush1.xpose.msra.mxu0 0.0
        %1688 = vmatprep.mubr.f32.mxu0 0.0
        %1689 = vmatmul.mubr.f32.gmra.mrb[0].mxu0 %v1619
        %v1690 = vpop.f32.mrb[0].mxu0
        %v1691 = vadd.f32 0.0, %v1690
        %v1692 = vpop.f32.mrb[0].mxu0
        %1693 = vdwg.mxu0
        %v1695 = vsel %vm1233, %v519, 0
        %v1698 = vsel %vm1233, %v1095, 0
        %1700 = vmatprep.subr.mxu0 0.0
        %1701 = vmatpush1.xpose.msra.mxu0 %v1698
        %1702 = vmatprep.subr.mxu0 0.0
        %1703 = vmatpush1.xpose.msra.mxu0 0.0
        %1704 = vmatprep.subr.mxu0 0.0
        %1705 = vmatpush1.xpose.msra.mxu0 0.0
        %1706 = vmatprep.subr.mxu0 0.0
        %1707 = vmatpush1.xpose.msra.mxu0 0.0
        %1708 = vmatprep.subr.mxu0 0.0
        %1709 = vmatpush1.xpose.msra.mxu0 0.0
        %1710 = vmatprep.subr.mxu0 0.0
        %1711 = vmatpush1.xpose.msra.mxu0 0.0
        %1712 = vmatprep.subr.mxu0 0.0
        %1713 = vmatpush1.xpose.msra.mxu0 0.0
        %1714 = vmatprep.subr.mxu0 0.0
        %1715 = vmatpush1.xpose.msra.mxu0 0.0
        %1716 = vmatprep.subr.mxu0 0.0
        %1717 = vmatpush1.xpose.msra.mxu0 0.0
        %1718 = vmatprep.subr.mxu0 0.0
        %1719 = vmatpush1.xpose.msra.mxu0 0.0
        %1720 = vmatprep.subr.mxu0 0.0
        %1721 = vmatpush1.xpose.msra.mxu0 0.0
        %1722 = vmatprep.subr.mxu0 0.0
        %1723 = vmatpush1.xpose.msra.mxu0 0.0
        %1724 = vmatprep.subr.mxu0 0.0
        %1725 = vmatpush1.xpose.msra.mxu0 0.0
        %1726 = vmatprep.subr.mxu0 0.0
        %1727 = vmatpush1.xpose.msra.mxu0 0.0
        %1728 = vmatprep.subr.mxu0 0.0
        %1729 = vmatpush1.xpose.msra.mxu0 0.0
        %1730 = vmatprep.subr.mxu0 0.0
        %1731 = vmatpush1.xpose.msra.mxu0 0.0
        %1732 = vmatprep.subr.mxu0 0.0
        %1733 = vmatpush1.xpose.msra.mxu0 0.0
        %1734 = vmatprep.subr.mxu0 0.0
        %1735 = vmatpush1.xpose.msra.mxu0 0.0
        %1736 = vmatprep.subr.mxu0 0.0
        %1737 = vmatpush1.xpose.msra.mxu0 0.0
        %1738 = vmatprep.subr.mxu0 0.0
        %1739 = vmatpush1.xpose.msra.mxu0 0.0
        %1740 = vmatprep.subr.mxu0 0.0
        %1741 = vmatpush1.xpose.msra.mxu0 0.0
        %1742 = vmatprep.subr.mxu0 0.0
        %1743 = vmatpush1.xpose.msra.mxu0 0.0
        %1744 = vmatprep.subr.mxu0 0.0
        %1745 = vmatpush1.xpose.msra.mxu0 0.0
        %1746 = vmatprep.subr.mxu0 0.0
        %1747 = vmatpush1.xpose.msra.mxu0 0.0
        %1748 = vmatprep.subr.mxu0 0.0
        %1749 = vmatpush1.xpose.msra.mxu0 0.0
        %1750 = vmatprep.subr.mxu0 0.0
        %1751 = vmatpush1.xpose.msra.mxu0 0.0
        %1752 = vmatprep.subr.mxu0 0.0
        %1753 = vmatpush1.xpose.msra.mxu0 0.0
        %1754 = vmatprep.subr.mxu0 0.0
        %1755 = vmatpush1.xpose.msra.mxu0 0.0
        %1756 = vmatprep.subr.mxu0 0.0
        %1757 = vmatpush1.xpose.msra.mxu0 0.0
        %1758 = vmatprep.subr.mxu0 0.0
        %1759 = vmatpush1.xpose.msra.mxu0 0.0
        %1760 = vmatprep.subr.mxu0 0.0
        %1761 = vmatpush1.xpose.msra.mxu0 0.0
        %1762 = vmatprep.subr.mxu0 0.0
        %1763 = vmatpush1.xpose.msra.mxu0 0.0
        %1764 = vmatprep.mubr.f32.mxu0 0.0
        %1765 = vmatmul.mubr.f32.gmra.mrb[0].mxu0 %v1695
        %v1766 = vpop.f32.mrb[0].mxu0
        %v1767 = vadd.f32 0.0, %v1766
        %v1768 = vpop.f32.mrb[0].mxu0
        %1769 = vdwg.mxu0
        %v1771 = vsel %vm1233, %v537, 0
        %v1774 = vsel %vm1233, %v1100, 0
        %1776 = vmatprep.subr.mxu0 0.0
        %1777 = vmatpush1.xpose.msra.mxu0 %v1774
        %1778 = vmatprep.subr.mxu0 0.0
        %1779 = vmatpush1.xpose.msra.mxu0 0.0
        %1780 = vmatprep.subr.mxu0 0.0
        %1781 = vmatpush1.xpose.msra.mxu0 0.0
        %1782 = vmatprep.subr.mxu0 0.0
        %1783 = vmatpush1.xpose.msra.mxu0 0.0
        %1784 = vmatprep.subr.mxu0 0.0
        %1785 = vmatpush1.xpose.msra.mxu0 0.0
        %1786 = vmatprep.subr.mxu0 0.0
        %1787 = vmatpush1.xpose.msra.mxu0 0.0
        %1788 = vmatprep.subr.mxu0 0.0
        %1789 = vmatpush1.xpose.msra.mxu0 0.0
        %1790 = vmatprep.subr.mxu0 0.0
        %1791 = vmatpush1.xpose.msra.mxu0 0.0
        %1792 = vmatprep.subr.mxu0 0.0
        %1793 = vmatpush1.xpose.msra.mxu0 0.0
        %1794 = vmatprep.subr.mxu0 0.0
        %1795 = vmatpush1.xpose.msra.mxu0 0.0
        %1796 = vmatprep.subr.mxu0 0.0
        %1797 = vmatpush1.xpose.msra.mxu0 0.0
        %1798 = vmatprep.subr.mxu0 0.0
        %1799 = vmatpush1.xpose.msra.mxu0 0.0
        %1800 = vmatprep.subr.mxu0 0.0
        %1801 = vmatpush1.xpose.msra.mxu0 0.0
        %1802 = vmatprep.subr.mxu0 0.0
        %1803 = vmatpush1.xpose.msra.mxu0 0.0
        %1804 = vmatprep.subr.mxu0 0.0
        %1805 = vmatpush1.xpose.msra.mxu0 0.0
        %1806 = vmatprep.subr.mxu0 0.0
        %1807 = vmatpush1.xpose.msra.mxu0 0.0
        %1808 = vmatprep.subr.mxu0 0.0
        %1809 = vmatpush1.xpose.msra.mxu0 0.0
        %1810 = vmatprep.subr.mxu0 0.0
        %1811 = vmatpush1.xpose.msra.mxu0 0.0
        %1812 = vmatprep.subr.mxu0 0.0
        %1813 = vmatpush1.xpose.msra.mxu0 0.0
        %1814 = vmatprep.subr.mxu0 0.0
        %1815 = vmatpush1.xpose.msra.mxu0 0.0
        %1816 = vmatprep.subr.mxu0 0.0
        %1817 = vmatpush1.xpose.msra.mxu0 0.0
        %1818 = vmatprep.subr.mxu0 0.0
        %1819 = vmatpush1.xpose.msra.mxu0 0.0
        %1820 = vmatprep.subr.mxu0 0.0
        %1821 = vmatpush1.xpose.msra.mxu0 0.0
        %1822 = vmatprep.subr.mxu0 0.0
        %1823 = vmatpush1.xpose.msra.mxu0 0.0
        %1824 = vmatprep.subr.mxu0 0.0
        %1825 = vmatpush1.xpose.msra.mxu0 0.0
        %1826 = vmatprep.subr.mxu0 0.0
        %1827 = vmatpush1.xpose.msra.mxu0 0.0
        %1828 = vmatprep.subr.mxu0 0.0
        %1829 = vmatpush1.xpose.msra.mxu0 0.0
        %1830 = vmatprep.subr.mxu0 0.0
        %1831 = vmatpush1.xpose.msra.mxu0 0.0
        %1832 = vmatprep.subr.mxu0 0.0
        %1833 = vmatpush1.xpose.msra.mxu0 0.0
        %1834 = vmatprep.subr.mxu0 0.0
        %1835 = vmatpush1.xpose.msra.mxu0 0.0
        %1836 = vmatprep.subr.mxu0 0.0
        %1837 = vmatpush1.xpose.msra.mxu0 0.0
        %1838 = vmatprep.subr.mxu0 0.0
        %1839 = vmatpush1.xpose.msra.mxu0 0.0
        %1840 = vmatprep.mubr.f32.mxu0 0.0
        %1841 = vmatmul.mubr.f32.gmra.mrb[0].mxu0 %v1771
        %v1842 = vpop.f32.mrb[0].mxu0
        %v1843 = vadd.f32 0.0, %v1842
        %v1844 = vpop.f32.mrb[0].mxu0
        %1845 = vdwg.mxu0
        %v1847 = vsel %vm1233, %v528, 0
        %v1850 = vsel %vm1233, %v1105, 0
        %1852 = vmatprep.subr.mxu0 0.0
        %1853 = vmatpush1.xpose.msra.mxu0 %v1850
        %1854 = vmatprep.subr.mxu0 0.0
        %1855 = vmatpush1.xpose.msra.mxu0 0.0
        %1856 = vmatprep.subr.mxu0 0.0
        %1857 = vmatpush1.xpose.msra.mxu0 0.0
        %1858 = vmatprep.subr.mxu0 0.0
        %1859 = vmatpush1.xpose.msra.mxu0 0.0
        %1860 = vmatprep.subr.mxu0 0.0
        %1861 = vmatpush1.xpose.msra.mxu0 0.0
        %1862 = vmatprep.subr.mxu0 0.0
        %1863 = vmatpush1.xpose.msra.mxu0 0.0
        %1864 = vmatprep.subr.mxu0 0.0
        %1865 = vmatpush1.xpose.msra.mxu0 0.0
        %1866 = vmatprep.subr.mxu0 0.0
        %1867 = vmatpush1.xpose.msra.mxu0 0.0
        %1868 = vmatprep.subr.mxu0 0.0
        %1869 = vmatpush1.xpose.msra.mxu0 0.0
        %1870 = vmatprep.subr.mxu0 0.0
        %1871 = vmatpush1.xpose.msra.mxu0 0.0
        %1872 = vmatprep.subr.mxu0 0.0
        %1873 = vmatpush1.xpose.msra.mxu0 0.0
        %1874 = vmatprep.subr.mxu0 0.0
        %1875 = vmatpush1.xpose.msra.mxu0 0.0
        %1876 = vmatprep.subr.mxu0 0.0
        %1877 = vmatpush1.xpose.msra.mxu0 0.0
        %1878 = vmatprep.subr.mxu0 0.0
        %1879 = vmatpush1.xpose.msra.mxu0 0.0
        %1880 = vmatprep.subr.mxu0 0.0
        %1881 = vmatpush1.xpose.msra.mxu0 0.0
        %1882 = vmatprep.subr.mxu0 0.0
        %1883 = vmatpush1.xpose.msra.mxu0 0.0
        %1884 = vmatprep.subr.mxu0 0.0
        %1885 = vmatpush1.xpose.msra.mxu0 0.0
        %1886 = vmatprep.subr.mxu0 0.0
        %1887 = vmatpush1.xpose.msra.mxu0 0.0
        %1888 = vmatprep.subr.mxu0 0.0
        %1889 = vmatpush1.xpose.msra.mxu0 0.0
        %1890 = vmatprep.subr.mxu0 0.0
        %1891 = vmatpush1.xpose.msra.mxu0 0.0
        %1892 = vmatprep.subr.mxu0 0.0
        %1893 = vmatpush1.xpose.msra.mxu0 0.0
        %1894 = vmatprep.subr.mxu0 0.0
        %1895 = vmatpush1.xpose.msra.mxu0 0.0
        %1896 = vmatprep.subr.mxu0 0.0
        %1897 = vmatpush1.xpose.msra.mxu0 0.0
        %1898 = vmatprep.subr.mxu0 0.0
        %1899 = vmatpush1.xpose.msra.mxu0 0.0
        %1900 = vmatprep.subr.mxu0 0.0
        %1901 = vmatpush1.xpose.msra.mxu0 0.0
        %1902 = vmatprep.subr.mxu0 0.0
        %1903 = vmatpush1.xpose.msra.mxu0 0.0
        %1904 = vmatprep.subr.mxu0 0.0
        %1905 = vmatpush1.xpose.msra.mxu0 0.0
        %1906 = vmatprep.subr.mxu0 0.0
        %1907 = vmatpush1.xpose.msra.mxu0 0.0
        %1908 = vmatprep.subr.mxu0 0.0
        %1909 = vmatpush1.xpose.msra.mxu0 0.0
        %1910 = vmatprep.subr.mxu0 0.0
        %1911 = vmatpush1.xpose.msra.mxu0 0.0
        %1912 = vmatprep.subr.mxu0 0.0
        %1913 = vmatpush1.xpose.msra.mxu0 0.0
        %1914 = vmatprep.subr.mxu0 0.0
        %1915 = vmatpush1.xpose.msra.mxu0 0.0
        %1916 = vmatprep.mubr.f32.mxu0 0.0
        %1917 = vmatmul.mubr.f32.gmra.mrb[0].mxu0 %v1847
        %v1918 = vpop.f32.mrb[0].mxu0
        %v1919 = vadd.f32 0.0, %v1918
        %v1920 = vpop.f32.mrb[0].mxu0
        %1921 = vdwg.mxu0
        %v1923 = vsel %vm1233, %v538, 0
        %v1926 = vsel %vm1233, %v1110, 0
        %1928 = vmatprep.subr.mxu0 0.0
        %1929 = vmatpush1.xpose.msra.mxu0 %v1926
        %1930 = vmatprep.subr.mxu0 0.0
        %1931 = vmatpush1.xpose.msra.mxu0 0.0
        %1932 = vmatprep.subr.mxu0 0.0
        %1933 = vmatpush1.xpose.msra.mxu0 0.0
        %1934 = vmatprep.subr.mxu0 0.0
        %1935 = vmatpush1.xpose.msra.mxu0 0.0
        %1936 = vmatprep.subr.mxu0 0.0
        %1937 = vmatpush1.xpose.msra.mxu0 0.0
        %1938 = vmatprep.subr.mxu0 0.0
        %1939 = vmatpush1.xpose.msra.mxu0 0.0
        %1940 = vmatprep.subr.mxu0 0.0
        %1941 = vmatpush1.xpose.msra.mxu0 0.0
        %1942 = vmatprep.subr.mxu0 0.0
        %1943 = vmatpush1.xpose.msra.mxu0 0.0
        %1944 = vmatprep.subr.mxu0 0.0
        %1945 = vmatpush1.xpose.msra.mxu0 0.0
        %1946 = vmatprep.subr.mxu0 0.0
        %1947 = vmatpush1.xpose.msra.mxu0 0.0
        %1948 = vmatprep.subr.mxu0 0.0
        %1949 = vmatpush1.xpose.msra.mxu0 0.0
        %1950 = vmatprep.subr.mxu0 0.0
        %1951 = vmatpush1.xpose.msra.mxu0 0.0
        %1952 = vmatprep.subr.mxu0 0.0
        %1953 = vmatpush1.xpose.msra.mxu0 0.0
        %1954 = vmatprep.subr.mxu0 0.0
        %1955 = vmatpush1.xpose.msra.mxu0 0.0
        %1956 = vmatprep.subr.mxu0 0.0
        %1957 = vmatpush1.xpose.msra.mxu0 0.0
        %1958 = vmatprep.subr.mxu0 0.0
        %1959 = vmatpush1.xpose.msra.mxu0 0.0
        %1960 = vmatprep.subr.mxu0 0.0
        %1961 = vmatpush1.xpose.msra.mxu0 0.0
        %1962 = vmatprep.subr.mxu0 0.0
        %1963 = vmatpush1.xpose.msra.mxu0 0.0
        %1964 = vmatprep.subr.mxu0 0.0
        %1965 = vmatpush1.xpose.msra.mxu0 0.0
        %1966 = vmatprep.subr.mxu0 0.0
        %1967 = vmatpush1.xpose.msra.mxu0 0.0
        %1968 = vmatprep.subr.mxu0 0.0
        %1969 = vmatpush1.xpose.msra.mxu0 0.0
        %1970 = vmatprep.subr.mxu0 0.0
        %1971 = vmatpush1.xpose.msra.mxu0 0.0
        %1972 = vmatprep.subr.mxu0 0.0
        %1973 = vmatpush1.xpose.msra.mxu0 0.0
        %1974 = vmatprep.subr.mxu0 0.0
        %1975 = vmatpush1.xpose.msra.mxu0 0.0
        %1976 = vmatprep.subr.mxu0 0.0
        %1977 = vmatpush1.xpose.msra.mxu0 0.0
        %1978 = vmatprep.subr.mxu0 0.0
        %1979 = vmatpush1.xpose.msra.mxu0 0.0
        %1980 = vmatprep.subr.mxu0 0.0
        %1981 = vmatpush1.xpose.msra.mxu0 0.0
        %1982 = vmatprep.subr.mxu0 0.0
        %1983 = vmatpush1.xpose.msra.mxu0 0.0
        %1984 = vmatprep.subr.mxu0 0.0
        %1985 = vmatpush1.xpose.msra.mxu0 0.0
        %1986 = vmatprep.subr.mxu0 0.0
        %1987 = vmatpush1.xpose.msra.mxu0 0.0
        %1988 = vmatprep.subr.mxu0 0.0
        %1989 = vmatpush1.xpose.msra.mxu0 0.0
        %1990 = vmatprep.subr.mxu0 0.0
        %1991 = vmatpush1.xpose.msra.mxu0 0.0
        %1992 = vmatprep.mubr.f32.mxu0 0.0
        %1993 = vmatmul.mubr.f32.gmra.mrb[0].mxu0 %v1923
        %v1994 = vpop.f32.mrb[0].mxu0
        %v1995 = vadd.f32 0.0, %v1994
        %v1996 = vpop.f32.mrb[0].mxu0
        %1997 = vdwg.mxu0
        %v1999 = vsel %vm1233, %v535, 0
        %v2002 = vsel %vm1233, %v1115, 0
        %2004 = vmatprep.subr.mxu0 0.0
        %2005 = vmatpush1.xpose.msra.mxu0 %v2002
        %2006 = vmatprep.subr.mxu0 0.0
        %2007 = vmatpush1.xpose.msra.mxu0 0.0
        %2008 = vmatprep.subr.mxu0 0.0
        %2009 = vmatpush1.xpose.msra.mxu0 0.0
        %2010 = vmatprep.subr.mxu0 0.0
        %2011 = vmatpush1.xpose.msra.mxu0 0.0
        %2012 = vmatprep.subr.mxu0 0.0
        %2013 = vmatpush1.xpose.msra.mxu0 0.0
        %2014 = vmatprep.subr.mxu0 0.0
        %2015 = vmatpush1.xpose.msra.mxu0 0.0
        %2016 = vmatprep.subr.mxu0 0.0
        %2017 = vmatpush1.xpose.msra.mxu0 0.0
        %2018 = vmatprep.subr.mxu0 0.0
        %2019 = vmatpush1.xpose.msra.mxu0 0.0
        %2020 = vmatprep.subr.mxu0 0.0
        %2021 = vmatpush1.xpose.msra.mxu0 0.0
        %2022 = vmatprep.subr.mxu0 0.0
        %2023 = vmatpush1.xpose.msra.mxu0 0.0
        %2024 = vmatprep.subr.mxu0 0.0
        %2025 = vmatpush1.xpose.msra.mxu0 0.0
        %2026 = vmatprep.subr.mxu0 0.0
        %2027 = vmatpush1.xpose.msra.mxu0 0.0
        %2028 = vmatprep.subr.mxu0 0.0
        %2029 = vmatpush1.xpose.msra.mxu0 0.0
        %2030 = vmatprep.subr.mxu0 0.0
        %2031 = vmatpush1.xpose.msra.mxu0 0.0
        %2032 = vmatprep.subr.mxu0 0.0
        %2033 = vmatpush1.xpose.msra.mxu0 0.0
        %2034 = vmatprep.subr.mxu0 0.0
        %2035 = vmatpush1.xpose.msra.mxu0 0.0
        %2036 = vmatprep.subr.mxu0 0.0
        %2037 = vmatpush1.xpose.msra.mxu0 0.0
        %2038 = vmatprep.subr.mxu0 0.0
        %2039 = vmatpush1.xpose.msra.mxu0 0.0
        %2040 = vmatprep.subr.mxu0 0.0
        %2041 = vmatpush1.xpose.msra.mxu0 0.0
        %2042 = vmatprep.subr.mxu0 0.0
        %2043 = vmatpush1.xpose.msra.mxu0 0.0
        %2044 = vmatprep.subr.mxu0 0.0
        %2045 = vmatpush1.xpose.msra.mxu0 0.0
        %2046 = vmatprep.subr.mxu0 0.0
        %2047 = vmatpush1.xpose.msra.mxu0 0.0
        %2048 = vmatprep.subr.mxu0 0.0
        %2049 = vmatpush1.xpose.msra.mxu0 0.0
        %2050 = vmatprep.subr.mxu0 0.0
        %2051 = vmatpush1.xpose.msra.mxu0 0.0
        %2052 = vmatprep.subr.mxu0 0.0
        %2053 = vmatpush1.xpose.msra.mxu0 0.0
        %2054 = vmatprep.subr.mxu0 0.0
        %2055 = vmatpush1.xpose.msra.mxu0 0.0
        %2056 = vmatprep.subr.mxu0 0.0
        %2057 = vmatpush1.xpose.msra.mxu0 0.0
        %2058 = vmatprep.subr.mxu0 0.0
        %2059 = vmatpush1.xpose.msra.mxu0 0.0
        %2060 = vmatprep.subr.mxu0 0.0
        %2061 = vmatpush1.xpose.msra.mxu0 0.0
        %2062 = vmatprep.subr.mxu0 0.0
        %2063 = vmatpush1.xpose.msra.mxu0 0.0
        %2064 = vmatprep.subr.mxu0 0.0
        %2065 = vmatpush1.xpose.msra.mxu0 0.0
        %2066 = vmatprep.subr.mxu0 0.0
        %2067 = vmatpush1.xpose.msra.mxu0 0.0
        %2068 = vmatprep.mubr.f32.mxu0 0.0
        %2069 = vmatmul.mubr.f32.gmra.mrb[0].mxu0 %v1999
        %v2070 = vpop.f32.mrb[0].mxu0
        %v2071 = vadd.f32 0.0, %v2070
        %v2072 = vpop.f32.mrb[0].mxu0
        %2073 = vdwg.mxu0
        %v2075 = vsel %vm1233, %v539, 0
        %v2078 = vsel %vm1233, %v1120, 0
        %2080 = vmatprep.subr.mxu0 0.0
        %2081 = vmatpush1.xpose.msra.mxu0 %v2078
        %2082 = vmatprep.subr.mxu0 0.0
        %2083 = vmatpush1.xpose.msra.mxu0 0.0
        %2084 = vmatprep.subr.mxu0 0.0
        %2085 = vmatpush1.xpose.msra.mxu0 0.0
        %2086 = vmatprep.subr.mxu0 0.0
        %2087 = vmatpush1.xpose.msra.mxu0 0.0
        %2088 = vmatprep.subr.mxu0 0.0
        %2089 = vmatpush1.xpose.msra.mxu0 0.0
        %2090 = vmatprep.subr.mxu0 0.0
        %2091 = vmatpush1.xpose.msra.mxu0 0.0
        %2092 = vmatprep.subr.mxu0 0.0
        %2093 = vmatpush1.xpose.msra.mxu0 0.0
        %2094 = vmatprep.subr.mxu0 0.0
        %2095 = vmatpush1.xpose.msra.mxu0 0.0
        %2096 = vmatprep.subr.mxu0 0.0
        %2097 = vmatpush1.xpose.msra.mxu0 0.0
        %2098 = vmatprep.subr.mxu0 0.0
        %2099 = vmatpush1.xpose.msra.mxu0 0.0
        %2100 = vmatprep.subr.mxu0 0.0
        %2101 = vmatpush1.xpose.msra.mxu0 0.0
        %2102 = vmatprep.subr.mxu0 0.0
        %2103 = vmatpush1.xpose.msra.mxu0 0.0
        %2104 = vmatprep.subr.mxu0 0.0
        %2105 = vmatpush1.xpose.msra.mxu0 0.0
        %2106 = vmatprep.subr.mxu0 0.0
        %2107 = vmatpush1.xpose.msra.mxu0 0.0
        %2108 = vmatprep.subr.mxu0 0.0
        %2109 = vmatpush1.xpose.msra.mxu0 0.0
        %2110 = vmatprep.subr.mxu0 0.0
        %2111 = vmatpush1.xpose.msra.mxu0 0.0
        %2112 = vmatprep.subr.mxu0 0.0
        %2113 = vmatpush1.xpose.msra.mxu0 0.0
        %2114 = vmatprep.subr.mxu0 0.0
        %2115 = vmatpush1.xpose.msra.mxu0 0.0
        %2116 = vmatprep.subr.mxu0 0.0
        %2117 = vmatpush1.xpose.msra.mxu0 0.0
        %2118 = vmatprep.subr.mxu0 0.0
        %2119 = vmatpush1.xpose.msra.mxu0 0.0
        %2120 = vmatprep.subr.mxu0 0.0
        %2121 = vmatpush1.xpose.msra.mxu0 0.0
        %2122 = vmatprep.subr.mxu0 0.0
        %2123 = vmatpush1.xpose.msra.mxu0 0.0
        %2124 = vmatprep.subr.mxu0 0.0
        %2125 = vmatpush1.xpose.msra.mxu0 0.0
        %2126 = vmatprep.subr.mxu0 0.0
        %2127 = vmatpush1.xpose.msra.mxu0 0.0
        %2128 = vmatprep.subr.mxu0 0.0
        %2129 = vmatpush1.xpose.msra.mxu0 0.0
        %2130 = vmatprep.subr.mxu0 0.0
        %2131 = vmatpush1.xpose.msra.mxu0 0.0
        %2132 = vmatprep.subr.mxu0 0.0
        %2133 = vmatpush1.xpose.msra.mxu0 0.0
        %2134 = vmatprep.subr.mxu0 0.0
        %2135 = vmatpush1.xpose.msra.mxu0 0.0
        %2136 = vmatprep.subr.mxu0 0.0
        %2137 = vmatpush1.xpose.msra.mxu0 0.0
        %2138 = vmatprep.subr.mxu0 0.0
        %2139 = vmatpush1.xpose.msra.mxu0 0.0
        %2140 = vmatprep.subr.mxu0 0.0
        %2141 = vmatpush1.xpose.msra.mxu0 0.0
        %2142 = vmatprep.subr.mxu0 0.0
        %2143 = vmatpush1.xpose.msra.mxu0 0.0
        %2144 = vmatprep.mubr.f32.mxu0 0.0
        %2145 = vmatmul.mubr.f32.gmra.mrb[0].mxu0 %v2075
        %v2146 = vpop.f32.mrb[0].mxu0
        %v2147 = vadd.f32 0.0, %v2146
        %v2148 = vpop.f32.mrb[0].mxu0
        %2149 = vdwg.mxu0
        %v2150 = vcombine.low %v1615, %v1767
        %v2152 = vunpack.c.l.s4 1983009808
        %v2153 = vunpack.c.0.s8 %v2152
        %v2154 = vlaneseq
        %v2155 = vshrl.u32 %v2154, 7
        %v2156 = vsub.s32 %v2153, %v2155
        %v2157 = vrot.slane %v2150, %v2156
        %v2158 = vcombine.low %v1691, %v1843
        %v2160 = vunpack.c.l.s4 1983009808
        %v2161 = vunpack.c.0.s8 %v2160
        %v2162 = vlaneseq
        %v2163 = vshrl.u32 %v2162, 7
        %v2164 = vsub.s32 %v2161, %v2163
        %v2165 = vrot.slane %v2158, %v2164
        %v2166 = vcombine.low %v1919, %v2071
        %v2168 = vunpack.c.l.s4 1983009808
        %v2169 = vunpack.c.0.s8 %v2168
        %v2170 = vlaneseq
        %v2171 = vshrl.u32 %v2170, 7
        %v2172 = vsub.s32 %v2169, %v2171
        %v2173 = vrot.slane %v2166, %v2172
        %v2174 = vcombine.low %v1995, %v2147
        %v2176 = vunpack.c.l.s4 1983009808
        %v2177 = vunpack.c.0.s8 %v2176
        %v2178 = vlaneseq
        %v2179 = vshrl.u32 %v2178, 7
        %v2180 = vsub.s32 %v2177, %v2179
        %v2181 = vrot.slane %v2174, %v2180
        %v2182 = vcombine.low %v2157, %v2165
        %v2183 = vcombine.high %v2157, %v2165
        %v2185 = vunpack.c.l.s4 1934713408
        %v2186 = vunpack.c.0.s8 %v2185
        %v2187 = vlaneseq
        %v2188 = vshrl.u32 %v2187, 7
        %v2189 = vsub.s32 %v2186, %v2188
        %v2190 = vrot.slane %v2182, %v2189
        %v2192 = vunpack.c.l.s4 1934713408
        %v2193 = vunpack.c.0.s8 %v2192
        %v2194 = vlaneseq
        %v2195 = vshrl.u32 %v2194, 7
        %v2196 = vsub.s32 %v2193, %v2195
        %v2197 = vrot.slane %v2183, %v2196
        %v2198 = vcombine.low %v2173, %v2181
        %v2199 = vcombine.high %v2173, %v2181
        %v2201 = vunpack.c.l.s4 1934713408
        %v2202 = vunpack.c.0.s8 %v2201
        %v2203 = vlaneseq
        %v2204 = vshrl.u32 %v2203, 7
        %v2205 = vsub.s32 %v2202, %v2204
        %v2206 = vrot.slane %v2198, %v2205
        %v2208 = vunpack.c.l.s4 1934713408
        %v2209 = vunpack.c.0.s8 %v2208
        %v2210 = vlaneseq
        %v2211 = vshrl.u32 %v2210, 7
        %v2212 = vsub.s32 %v2209, %v2211
        %v2213 = vrot.slane %v2199, %v2212
        %v2214 = vcombine.low %v2190, %v2206
        %v2215 = vcombine.high %v2190, %v2206
        %v2216 = vcombine.low %v2197, %v2213
        %v2217 = vcombine.high %v2197, %v2213
        %v2218 = vadd.f32 %v1538, %v2214
        %v2219 = vadd.f32 %v1539, %v2215
        %v2220 = vadd.f32 %v1540, %v2216
        %v2221 = vadd.f32 %v1541, %v2217
        %v2222 = vld [vmem:[%s375] sm:$0x1]
        %v2224 = vlaneseq
        %v2225 = vshrl.u32 %v2224, 7
        %v2226 = vsub.s32 0, %v2225
        %v2227 = vrot.slane %v2222, %v2226
        %v2229 = vadd.f32 %v2218, %v2227
        %v2230 = vadd.f32 %v2219, %v2227
        %v2231 = vadd.f32 %v2220, %v2227
        %v2232 = vadd.f32 %v2221, %v2227
        %v2233 = vsel %vm1233, %v2229, -inf
        %2234 = vmax.xlane.f32.xlu0 %v2233
        %v2235 = vpop.xlane.xlu0 %2234
        %v2236 = vsel %vm1233, %v2230, -inf
        %2237 = vmax.xlane.f32.xlu0 %v2236
        %v2238 = vpop.xlane.xlu0 %2237
        %v2239 = vsel %vm1233, %v2231, -inf
        %2240 = vmax.xlane.f32.xlu0 %v2239
        %v2241 = vpop.xlane.xlu0 %2240
        %v2242 = vsel %vm1233, %v2232, -inf
        %2243 = vmax.xlane.f32.xlu0 %v2242
        %v2244 = vpop.xlane.xlu0 %2243
        %v2245 = vsub.f32 %v2229, %v2235
        %v2246 = vsub.f32 %v2230, %v2238
        %v2247 = vsub.f32 %v2231, %v2241
        %v2248 = vsub.f32 %v2232, %v2244
        %v2249 = vmul.f32 %v2245, 1.442695
        %v2250 = vpow.pop %v2249
        %v2251 = vmul.f32 %v2246, 1.442695
        %v2252 = vpow.pop %v2251
        %v2253 = vmul.f32 %v2247, 1.442695
        %v2254 = vpow.pop %v2253
        %v2255 = vmul.f32 %v2248, 1.442695
        %v2256 = vpow.pop %v2255
        %v2257 = vsel %vm1233, %v2250, 0.0
        %2258 = vadd.xlane.f32.xlu0 %v2257
        %v2259 = vpop.xlane.xlu0 %2258
        %v2260 = vsel %vm1233, %v2252, 0.0
        %2261 = vadd.xlane.f32.xlu0 %v2260
        %v2262 = vpop.xlane.xlu0 %2261
        %v2263 = vsel %vm1233, %v2254, 0.0
        %2264 = vadd.xlane.f32.xlu0 %v2263
        %v2265 = vpop.xlane.xlu0 %2264
        %v2266 = vsel %vm1233, %v2256, 0.0
        %2267 = vadd.xlane.f32.xlu0 %v2266
        %v2268 = vpop.xlane.xlu0 %2267
        %v2269 = vrcp.pop %v2259
        %v2270 = vrcp.pop %v2262
        %v2271 = vrcp.pop %v2265
        %v2272 = vrcp.pop %v2268
        %v2273 = vmul.f32 %v2250, %v2269
        %v2274 = vmul.f32 %v2252, %v2270
        %v2275 = vmul.f32 %v2254, %v2271
        %v2276 = vmul.f32 %v2256, %v2272
        %v2278 = vsel %vm1233, %v2273, 0
        %2280 = vmatprep.subr.mxu0 0.0
        %2281 = vmatpush1.msra.mxu0 %v900
        %2282 = vmatprep.subr.mxu0 0.0
        %2283 = vmatpush1.msra.mxu0 0.0
        %2284 = vmatprep.subr.mxu0 0.0
        %2285 = vmatpush1.msra.mxu0 0.0
        %2286 = vmatprep.subr.mxu0 0.0
        %2287 = vmatpush1.msra.mxu0 0.0
        %2288 = vmatprep.subr.mxu0 0.0
        %2289 = vmatpush1.msra.mxu0 0.0
        %2290 = vmatprep.subr.mxu0 0.0
        %2291 = vmatpush1.msra.mxu0 0.0
        %2292 = vmatprep.subr.mxu0 0.0
        %2293 = vmatpush1.msra.mxu0 0.0
        %2294 = vmatprep.subr.mxu0 0.0
        %2295 = vmatpush1.msra.mxu0 0.0
        %2296 = vmatprep.subr.mxu0 0.0
        %2297 = vmatpush1.msra.mxu0 0.0
        %2298 = vmatprep.subr.mxu0 0.0
        %2299 = vmatpush1.msra.mxu0 0.0
        %2300 = vmatprep.subr.mxu0 0.0
        %2301 = vmatpush1.msra.mxu0 0.0
        %2302 = vmatprep.subr.mxu0 0.0
        %2303 = vmatpush1.msra.mxu0 0.0
        %2304 = vmatprep.subr.mxu0 0.0
        %2305 = vmatpush1.msra.mxu0 0.0
        %2306 = vmatprep.subr.mxu0 0.0
        %2307 = vmatpush1.msra.mxu0 0.0
        %2308 = vmatprep.subr.mxu0 0.0
        %2309 = vmatpush1.msra.mxu0 0.0
        %2310 = vmatprep.subr.mxu0 0.0
        %2311 = vmatpush1.msra.mxu0 0.0
        %2312 = vmatprep.subr.mxu0 0.0
        %2313 = vmatpush1.msra.mxu0 0.0
        %2314 = vmatprep.subr.mxu0 0.0
        %2315 = vmatpush1.msra.mxu0 0.0
        %2316 = vmatprep.subr.mxu0 0.0
        %2317 = vmatpush1.msra.mxu0 0.0
        %2318 = vmatprep.subr.mxu0 0.0
        %2319 = vmatpush1.msra.mxu0 0.0
        %2320 = vmatprep.subr.mxu0 0.0
        %2321 = vmatpush1.msra.mxu0 0.0
        %2322 = vmatprep.subr.mxu0 0.0
        %2323 = vmatpush1.msra.mxu0 0.0
        %2324 = vmatprep.subr.mxu0 0.0
        %2325 = vmatpush1.msra.mxu0 0.0
        %2326 = vmatprep.subr.mxu0 0.0
        %2327 = vmatpush1.msra.mxu0 0.0
        %2328 = vmatprep.subr.mxu0 0.0
        %2329 = vmatpush1.msra.mxu0 0.0
        %2330 = vmatprep.subr.mxu0 0.0
        %2331 = vmatpush1.msra.mxu0 0.0
        %2332 = vmatprep.subr.mxu0 0.0
        %2333 = vmatpush1.msra.mxu0 0.0
        %2334 = vmatprep.subr.mxu0 0.0
        %2335 = vmatpush1.msra.mxu0 0.0
        %2336 = vmatprep.subr.mxu0 0.0
        %2337 = vmatpush1.msra.mxu0 0.0
        %2338 = vmatprep.subr.mxu0 0.0
        %2339 = vmatpush1.msra.mxu0 0.0
        %2340 = vmatprep.subr.mxu0 0.0
        %2341 = vmatpush1.msra.mxu0 0.0
        %2342 = vmatprep.subr.mxu0 0.0
        %2343 = vmatpush1.msra.mxu0 0.0
        %2344 = vmatprep.mubr.f32.mxu0 0.0
        %2345 = vmatmul.mubr.f32.gmra.mrb[0].mxu0 %v2278
        %v2346 = vpop.f32.mrb[0].mxu0
        %v2347 = vadd.f32 0.0, %v2346
        %v2348 = vpop.f32.mrb[0].mxu0
        %2349 = vdwg.mxu0
        %v2351 = vsel %vm1233, %v2274, 0
        %2353 = vmatprep.subr.mxu0 0.0
        %2354 = vmatpush1.msra.mxu0 %v901
        %2355 = vmatprep.subr.mxu0 0.0
        %2356 = vmatpush1.msra.mxu0 0.0
        %2357 = vmatprep.subr.mxu0 0.0
        %2358 = vmatpush1.msra.mxu0 0.0
        %2359 = vmatprep.subr.mxu0 0.0
        %2360 = vmatpush1.msra.mxu0 0.0
        %2361 = vmatprep.subr.mxu0 0.0
        %2362 = vmatpush1.msra.mxu0 0.0
        %2363 = vmatprep.subr.mxu0 0.0
        %2364 = vmatpush1.msra.mxu0 0.0
        %2365 = vmatprep.subr.mxu0 0.0
        %2366 = vmatpush1.msra.mxu0 0.0
        %2367 = vmatprep.subr.mxu0 0.0
        %2368 = vmatpush1.msra.mxu0 0.0
        %2369 = vmatprep.subr.mxu0 0.0
        %2370 = vmatpush1.msra.mxu0 0.0
        %2371 = vmatprep.subr.mxu0 0.0
        %2372 = vmatpush1.msra.mxu0 0.0
        %2373 = vmatprep.subr.mxu0 0.0
        %2374 = vmatpush1.msra.mxu0 0.0
        %2375 = vmatprep.subr.mxu0 0.0
        %2376 = vmatpush1.msra.mxu0 0.0
        %2377 = vmatprep.subr.mxu0 0.0
        %2378 = vmatpush1.msra.mxu0 0.0
        %2379 = vmatprep.subr.mxu0 0.0
        %2380 = vmatpush1.msra.mxu0 0.0
        %2381 = vmatprep.subr.mxu0 0.0
        %2382 = vmatpush1.msra.mxu0 0.0
        %2383 = vmatprep.subr.mxu0 0.0
        %2384 = vmatpush1.msra.mxu0 0.0
        %2385 = vmatprep.subr.mxu0 0.0
        %2386 = vmatpush1.msra.mxu0 0.0
        %2387 = vmatprep.subr.mxu0 0.0
        %2388 = vmatpush1.msra.mxu0 0.0
        %2389 = vmatprep.subr.mxu0 0.0
        %2390 = vmatpush1.msra.mxu0 0.0
        %2391 = vmatprep.subr.mxu0 0.0
        %2392 = vmatpush1.msra.mxu0 0.0
        %2393 = vmatprep.subr.mxu0 0.0
        %2394 = vmatpush1.msra.mxu0 0.0
        %2395 = vmatprep.subr.mxu0 0.0
        %2396 = vmatpush1.msra.mxu0 0.0
        %2397 = vmatprep.subr.mxu0 0.0
        %2398 = vmatpush1.msra.mxu0 0.0
        %2399 = vmatprep.subr.mxu0 0.0
        %2400 = vmatpush1.msra.mxu0 0.0
        %2401 = vmatprep.subr.mxu0 0.0
        %2402 = vmatpush1.msra.mxu0 0.0
        %2403 = vmatprep.subr.mxu0 0.0
        %2404 = vmatpush1.msra.mxu0 0.0
        %2405 = vmatprep.subr.mxu0 0.0
        %2406 = vmatpush1.msra.mxu0 0.0
        %2407 = vmatprep.subr.mxu0 0.0
        %2408 = vmatpush1.msra.mxu0 0.0
        %2409 = vmatprep.subr.mxu0 0.0
        %2410 = vmatpush1.msra.mxu0 0.0
        %2411 = vmatprep.subr.mxu0 0.0
        %2412 = vmatpush1.msra.mxu0 0.0
        %2413 = vmatprep.subr.mxu0 0.0
        %2414 = vmatpush1.msra.mxu0 0.0
        %2415 = vmatprep.subr.mxu0 0.0
        %2416 = vmatpush1.msra.mxu0 0.0
        %2417 = vmatprep.mubr.f32.mxu0 0.0
        %2418 = vmatmul.mubr.f32.gmra.mrb[0].mxu0 %v2351
        %v2419 = vpop.f32.mrb[0].mxu0
        %v2420 = vadd.f32 0.0, %v2419
        %v2421 = vpop.f32.mrb[0].mxu0
        %2422 = vdwg.mxu0
        %v2424 = vsel %vm1233, %v2275, 0
        %2426 = vmatprep.subr.mxu0 0.0
        %2427 = vmatpush1.msra.mxu0 %v902
        %2428 = vmatprep.subr.mxu0 0.0
        %2429 = vmatpush1.msra.mxu0 0.0
        %2430 = vmatprep.subr.mxu0 0.0
        %2431 = vmatpush1.msra.mxu0 0.0
        %2432 = vmatprep.subr.mxu0 0.0
        %2433 = vmatpush1.msra.mxu0 0.0
        %2434 = vmatprep.subr.mxu0 0.0
        %2435 = vmatpush1.msra.mxu0 0.0
        %2436 = vmatprep.subr.mxu0 0.0
        %2437 = vmatpush1.msra.mxu0 0.0
        %2438 = vmatprep.subr.mxu0 0.0
        %2439 = vmatpush1.msra.mxu0 0.0
        %2440 = vmatprep.subr.mxu0 0.0
        %2441 = vmatpush1.msra.mxu0 0.0
        %2442 = vmatprep.subr.mxu0 0.0
        %2443 = vmatpush1.msra.mxu0 0.0
        %2444 = vmatprep.subr.mxu0 0.0
        %2445 = vmatpush1.msra.mxu0 0.0
        %2446 = vmatprep.subr.mxu0 0.0
        %2447 = vmatpush1.msra.mxu0 0.0
        %2448 = vmatprep.subr.mxu0 0.0
        %2449 = vmatpush1.msra.mxu0 0.0
        %2450 = vmatprep.subr.mxu0 0.0
        %2451 = vmatpush1.msra.mxu0 0.0
        %2452 = vmatprep.subr.mxu0 0.0
        %2453 = vmatpush1.msra.mxu0 0.0
        %2454 = vmatprep.subr.mxu0 0.0
        %2455 = vmatpush1.msra.mxu0 0.0
        %2456 = vmatprep.subr.mxu0 0.0
        %2457 = vmatpush1.msra.mxu0 0.0
        %2458 = vmatprep.subr.mxu0 0.0
        %2459 = vmatpush1.msra.mxu0 0.0
        %2460 = vmatprep.subr.mxu0 0.0
        %2461 = vmatpush1.msra.mxu0 0.0
        %2462 = vmatprep.subr.mxu0 0.0
        %2463 = vmatpush1.msra.mxu0 0.0
        %2464 = vmatprep.subr.mxu0 0.0
        %2465 = vmatpush1.msra.mxu0 0.0
        %2466 = vmatprep.subr.mxu0 0.0
        %2467 = vmatpush1.msra.mxu0 0.0
        %2468 = vmatprep.subr.mxu0 0.0
        %2469 = vmatpush1.msra.mxu0 0.0
        %2470 = vmatprep.subr.mxu0 0.0
        %2471 = vmatpush1.msra.mxu0 0.0
        %2472 = vmatprep.subr.mxu0 0.0
        %2473 = vmatpush1.msra.mxu0 0.0
        %2474 = vmatprep.subr.mxu0 0.0
        %2475 = vmatpush1.msra.mxu0 0.0
        %2476 = vmatprep.subr.mxu0 0.0
        %2477 = vmatpush1.msra.mxu0 0.0
        %2478 = vmatprep.subr.mxu0 0.0
        %2479 = vmatpush1.msra.mxu0 0.0
        %2480 = vmatprep.subr.mxu0 0.0
        %2481 = vmatpush1.msra.mxu0 0.0
        %2482 = vmatprep.subr.mxu0 0.0
        %2483 = vmatpush1.msra.mxu0 0.0
        %2484 = vmatprep.subr.mxu0 0.0
        %2485 = vmatpush1.msra.mxu0 0.0
        %2486 = vmatprep.subr.mxu0 0.0
        %2487 = vmatpush1.msra.mxu0 0.0
        %2488 = vmatprep.subr.mxu0 0.0
        %2489 = vmatpush1.msra.mxu0 0.0
        %2490 = vmatprep.mubr.f32.mxu0 0.0
        %2491 = vmatmul.mubr.f32.gmra.mrb[0].mxu0 %v2424
        %v2492 = vpop.f32.mrb[0].mxu0
        %v2493 = vadd.f32 0.0, %v2492
        %v2494 = vpop.f32.mrb[0].mxu0
        %2495 = vdwg.mxu0
        %v2497 = vsel %vm1233, %v2276, 0
        %2499 = vmatprep.subr.mxu0 0.0
        %2500 = vmatpush1.msra.mxu0 %v903
        %2501 = vmatprep.subr.mxu0 0.0
        %2502 = vmatpush1.msra.mxu0 0.0
        %2503 = vmatprep.subr.mxu0 0.0
        %2504 = vmatpush1.msra.mxu0 0.0
        %2505 = vmatprep.subr.mxu0 0.0
        %2506 = vmatpush1.msra.mxu0 0.0
        %2507 = vmatprep.subr.mxu0 0.0
        %2508 = vmatpush1.msra.mxu0 0.0
        %2509 = vmatprep.subr.mxu0 0.0
        %2510 = vmatpush1.msra.mxu0 0.0
        %2511 = vmatprep.subr.mxu0 0.0
        %2512 = vmatpush1.msra.mxu0 0.0
        %2513 = vmatprep.subr.mxu0 0.0
        %2514 = vmatpush1.msra.mxu0 0.0
        %2515 = vmatprep.subr.mxu0 0.0
        %2516 = vmatpush1.msra.mxu0 0.0
        %2517 = vmatprep.subr.mxu0 0.0
        %2518 = vmatpush1.msra.mxu0 0.0
        %2519 = vmatprep.subr.mxu0 0.0
        %2520 = vmatpush1.msra.mxu0 0.0
        %2521 = vmatprep.subr.mxu0 0.0
        %2522 = vmatpush1.msra.mxu0 0.0
        %2523 = vmatprep.subr.mxu0 0.0
        %2524 = vmatpush1.msra.mxu0 0.0
        %2525 = vmatprep.subr.mxu0 0.0
        %2526 = vmatpush1.msra.mxu0 0.0
        %2527 = vmatprep.subr.mxu0 0.0
        %2528 = vmatpush1.msra.mxu0 0.0
        %2529 = vmatprep.subr.mxu0 0.0
        %2530 = vmatpush1.msra.mxu0 0.0
        %2531 = vmatprep.subr.mxu0 0.0
        %2532 = vmatpush1.msra.mxu0 0.0
        %2533 = vmatprep.subr.mxu0 0.0
        %2534 = vmatpush1.msra.mxu0 0.0
        %2535 = vmatprep.subr.mxu0 0.0
        %2536 = vmatpush1.msra.mxu0 0.0
        %2537 = vmatprep.subr.mxu0 0.0
        %2538 = vmatpush1.msra.mxu0 0.0
        %2539 = vmatprep.subr.mxu0 0.0
        %2540 = vmatpush1.msra.mxu0 0.0
        %2541 = vmatprep.subr.mxu0 0.0
        %2542 = vmatpush1.msra.mxu0 0.0
        %2543 = vmatprep.subr.mxu0 0.0
        %2544 = vmatpush1.msra.mxu0 0.0
        %2545 = vmatprep.subr.mxu0 0.0
        %2546 = vmatpush1.msra.mxu0 0.0
        %2547 = vmatprep.subr.mxu0 0.0
        %2548 = vmatpush1.msra.mxu0 0.0
        %2549 = vmatprep.subr.mxu0 0.0
        %2550 = vmatpush1.msra.mxu0 0.0
        %2551 = vmatprep.subr.mxu0 0.0
        %2552 = vmatpush1.msra.mxu0 0.0
        %2553 = vmatprep.subr.mxu0 0.0
        %2554 = vmatpush1.msra.mxu0 0.0
        %2555 = vmatprep.subr.mxu0 0.0
        %2556 = vmatpush1.msra.mxu0 0.0
        %2557 = vmatprep.subr.mxu0 0.0
        %2558 = vmatpush1.msra.mxu0 0.0
        %2559 = vmatprep.subr.mxu0 0.0
        %2560 = vmatpush1.msra.mxu0 0.0
        %2561 = vmatprep.subr.mxu0 0.0
        %2562 = vmatpush1.msra.mxu0 0.0
        %2563 = vmatprep.mubr.f32.mxu0 0.0
        %2564 = vmatmul.mubr.f32.gmra.mrb[0].mxu0 %v2497
        %v2565 = vpop.f32.mrb[0].mxu0
        %v2566 = vadd.f32 0.0, %v2565
        %v2567 = vpop.f32.mrb[0].mxu0
        %2568 = vdwg.mxu0
        %v2569 = vcombine.low %v2273, %v2275
        %v2570 = vcombine.high %v2273, %v2275
        %v2572 = vunpack.c.l.s4 1983009808
        %v2573 = vunpack.c.0.s8 %v2572
        %v2574 = vlaneseq
        %v2575 = vshrl.u32 %v2574, 7
        %v2576 = vsub.s32 %v2573, %v2575
        %v2577 = vrot.slane %v2569, %v2576
        %v2579 = vunpack.c.l.s4 1983009808
        %v2580 = vunpack.c.0.s8 %v2579
        %v2581 = vlaneseq
        %v2582 = vshrl.u32 %v2581, 7
        %v2583 = vsub.s32 %v2580, %v2582
        %v2584 = vrot.slane %v2570, %v2583
        %v2585 = vcombine.low %v2274, %v2276
        %v2586 = vcombine.high %v2274, %v2276
        %v2588 = vunpack.c.l.s4 1983009808
        %v2589 = vunpack.c.0.s8 %v2588
        %v2590 = vlaneseq
        %v2591 = vshrl.u32 %v2590, 7
        %v2592 = vsub.s32 %v2589, %v2591
        %v2593 = vrot.slane %v2585, %v2592
        %v2595 = vunpack.c.l.s4 1983009808
        %v2596 = vunpack.c.0.s8 %v2595
        %v2597 = vlaneseq
        %v2598 = vshrl.u32 %v2597, 7
        %v2599 = vsub.s32 %v2596, %v2598
        %v2600 = vrot.slane %v2586, %v2599
        %v2601 = vcombine.low %v2577, %v2593
        %v2602 = vcombine.high %v2577, %v2593
        %v2604 = vunpack.c.l.s4 1934713408
        %v2605 = vunpack.c.0.s8 %v2604
        %v2606 = vlaneseq
        %v2607 = vshrl.u32 %v2606, 7
        %v2608 = vsub.s32 %v2605, %v2607
        %v2609 = vrot.slane %v2601, %v2608
        %v2611 = vunpack.c.l.s4 1934713408
        %v2612 = vunpack.c.0.s8 %v2611
        %v2613 = vlaneseq
        %v2614 = vshrl.u32 %v2613, 7
        %v2615 = vsub.s32 %v2612, %v2614
        %v2616 = vrot.slane %v2602, %v2615
        %v2617 = vcombine.low %v2584, %v2600
        %v2618 = vcombine.high %v2584, %v2600
        %v2620 = vunpack.c.l.s4 1934713408
        %v2621 = vunpack.c.0.s8 %v2620
        %v2622 = vlaneseq
        %v2623 = vshrl.u32 %v2622, 7
        %v2624 = vsub.s32 %v2621, %v2623
        %v2625 = vrot.slane %v2617, %v2624
        %v2627 = vunpack.c.l.s4 1934713408
        %v2628 = vunpack.c.0.s8 %v2627
        %v2629 = vlaneseq
        %v2630 = vshrl.u32 %v2629, 7
        %v2631 = vsub.s32 %v2628, %v2630
        %v2632 = vrot.slane %v2618, %v2631
        %v2633 = vcombine.high %v2609, 0.0
        %v2634 = vcombine.high %v2616, 0.0
        %v2635 = vcombine.high %v2625, 0.0
        %v2636 = vcombine.high %v2632, 0.0
        %v2638 = vsel %vm1233, %v2609, 0
        %2640 = vmatprep.subr.mxu0 0.0
        %2641 = vmatpush1.msra.mxu0 %v1195
        %2642 = vmatprep.subr.mxu0 0.0
        %2643 = vmatpush1.msra.mxu0 0.0
        %2644 = vmatprep.subr.mxu0 0.0
        %2645 = vmatpush1.msra.mxu0 0.0
        %2646 = vmatprep.subr.mxu0 0.0
        %2647 = vmatpush1.msra.mxu0 0.0
        %2648 = vmatprep.subr.mxu0 0.0
        %2649 = vmatpush1.msra.mxu0 0.0
        %2650 = vmatprep.subr.mxu0 0.0
        %2651 = vmatpush1.msra.mxu0 0.0
        %2652 = vmatprep.subr.mxu0 0.0
        %2653 = vmatpush1.msra.mxu0 0.0
        %2654 = vmatprep.subr.mxu0 0.0
        %2655 = vmatpush1.msra.mxu0 0.0
        %2656 = vmatprep.subr.mxu0 0.0
        %2657 = vmatpush1.msra.mxu0 0.0
        %2658 = vmatprep.subr.mxu0 0.0
        %2659 = vmatpush1.msra.mxu0 0.0
        %2660 = vmatprep.subr.mxu0 0.0
        %2661 = vmatpush1.msra.mxu0 0.0
        %2662 = vmatprep.subr.mxu0 0.0
        %2663 = vmatpush1.msra.mxu0 0.0
        %2664 = vmatprep.subr.mxu0 0.0
        %2665 = vmatpush1.msra.mxu0 0.0
        %2666 = vmatprep.subr.mxu0 0.0
        %2667 = vmatpush1.msra.mxu0 0.0
        %2668 = vmatprep.subr.mxu0 0.0
        %2669 = vmatpush1.msra.mxu0 0.0
        %2670 = vmatprep.subr.mxu0 0.0
        %2671 = vmatpush1.msra.mxu0 0.0
        %2672 = vmatprep.subr.mxu0 0.0
        %2673 = vmatpush1.msra.mxu0 0.0
        %2674 = vmatprep.subr.mxu0 0.0
        %2675 = vmatpush1.msra.mxu0 0.0
        %2676 = vmatprep.subr.mxu0 0.0
        %2677 = vmatpush1.msra.mxu0 0.0
        %2678 = vmatprep.subr.mxu0 0.0
        %2679 = vmatpush1.msra.mxu0 0.0
        %2680 = vmatprep.subr.mxu0 0.0
        %2681 = vmatpush1.msra.mxu0 0.0
        %2682 = vmatprep.subr.mxu0 0.0
        %2683 = vmatpush1.msra.mxu0 0.0
        %2684 = vmatprep.subr.mxu0 0.0
        %2685 = vmatpush1.msra.mxu0 0.0
        %2686 = vmatprep.subr.mxu0 0.0
        %2687 = vmatpush1.msra.mxu0 0.0
        %2688 = vmatprep.subr.mxu0 0.0
        %2689 = vmatpush1.msra.mxu0 0.0
        %2690 = vmatprep.subr.mxu0 0.0
        %2691 = vmatpush1.msra.mxu0 0.0
        %2692 = vmatprep.subr.mxu0 0.0
        %2693 = vmatpush1.msra.mxu0 0.0
        %2694 = vmatprep.subr.mxu0 0.0
        %2695 = vmatpush1.msra.mxu0 0.0
        %2696 = vmatprep.subr.mxu0 0.0
        %2697 = vmatpush1.msra.mxu0 0.0
        %2698 = vmatprep.subr.mxu0 0.0
        %2699 = vmatpush1.msra.mxu0 0.0
        %2700 = vmatprep.subr.mxu0 0.0
        %2701 = vmatpush1.msra.mxu0 0.0
        %2702 = vmatprep.subr.mxu0 0.0
        %2703 = vmatpush1.msra.mxu0 0.0
        %2704 = vmatprep.mubr.f32.mxu0 0.0
        %2705 = vmatmul.mubr.f32.gmra.mrb[0].mxu0 %v2638
        %v2706 = vpop.f32.mrb[0].mxu0
        %v2707 = vadd.f32 0.0, %v2706
        %v2708 = vpop.f32.mrb[0].mxu0
        %2709 = vdwg.mxu0
        %v2711 = vsel %vm1233, %v2633, 0
        %2713 = vmatprep.subr.mxu0 0.0
        %2714 = vmatpush1.msra.mxu0 %v1200
        %2715 = vmatprep.subr.mxu0 0.0
        %2716 = vmatpush1.msra.mxu0 0.0
        %2717 = vmatprep.subr.mxu0 0.0
        %2718 = vmatpush1.msra.mxu0 0.0
        %2719 = vmatprep.subr.mxu0 0.0
        %2720 = vmatpush1.msra.mxu0 0.0
        %2721 = vmatprep.subr.mxu0 0.0
        %2722 = vmatpush1.msra.mxu0 0.0
        %2723 = vmatprep.subr.mxu0 0.0
        %2724 = vmatpush1.msra.mxu0 0.0
        %2725 = vmatprep.subr.mxu0 0.0
        %2726 = vmatpush1.msra.mxu0 0.0
        %2727 = vmatprep.subr.mxu0 0.0
        %2728 = vmatpush1.msra.mxu0 0.0
        %2729 = vmatprep.subr.mxu0 0.0
        %2730 = vmatpush1.msra.mxu0 0.0
        %2731 = vmatprep.subr.mxu0 0.0
        %2732 = vmatpush1.msra.mxu0 0.0
        %2733 = vmatprep.subr.mxu0 0.0
        %2734 = vmatpush1.msra.mxu0 0.0
        %2735 = vmatprep.subr.mxu0 0.0
        %2736 = vmatpush1.msra.mxu0 0.0
        %2737 = vmatprep.subr.mxu0 0.0
        %2738 = vmatpush1.msra.mxu0 0.0
        %2739 = vmatprep.subr.mxu0 0.0
        %2740 = vmatpush1.msra.mxu0 0.0
        %2741 = vmatprep.subr.mxu0 0.0
        %2742 = vmatpush1.msra.mxu0 0.0
        %2743 = vmatprep.subr.mxu0 0.0
        %2744 = vmatpush1.msra.mxu0 0.0
        %2745 = vmatprep.subr.mxu0 0.0
        %2746 = vmatpush1.msra.mxu0 0.0
        %2747 = vmatprep.subr.mxu0 0.0
        %2748 = vmatpush1.msra.mxu0 0.0
        %2749 = vmatprep.subr.mxu0 0.0
        %2750 = vmatpush1.msra.mxu0 0.0
        %2751 = vmatprep.subr.mxu0 0.0
        %2752 = vmatpush1.msra.mxu0 0.0
        %2753 = vmatprep.subr.mxu0 0.0
        %2754 = vmatpush1.msra.mxu0 0.0
        %2755 = vmatprep.subr.mxu0 0.0
        %2756 = vmatpush1.msra.mxu0 0.0
        %2757 = vmatprep.subr.mxu0 0.0
        %2758 = vmatpush1.msra.mxu0 0.0
        %2759 = vmatprep.subr.mxu0 0.0
        %2760 = vmatpush1.msra.mxu0 0.0
        %2761 = vmatprep.subr.mxu0 0.0
        %2762 = vmatpush1.msra.mxu0 0.0
        %2763 = vmatprep.subr.mxu0 0.0
        %2764 = vmatpush1.msra.mxu0 0.0
        %2765 = vmatprep.subr.mxu0 0.0
        %2766 = vmatpush1.msra.mxu0 0.0
        %2767 = vmatprep.subr.mxu0 0.0
        %2768 = vmatpush1.msra.mxu0 0.0
        %2769 = vmatprep.subr.mxu0 0.0
        %2770 = vmatpush1.msra.mxu0 0.0
        %2771 = vmatprep.subr.mxu0 0.0
        %2772 = vmatpush1.msra.mxu0 0.0
        %2773 = vmatprep.subr.mxu0 0.0
        %2774 = vmatpush1.msra.mxu0 0.0
        %2775 = vmatprep.subr.mxu0 0.0
        %2776 = vmatpush1.msra.mxu0 0.0
        %2777 = vmatprep.mubr.f32.mxu0 0.0
        %2778 = vmatmul.mubr.f32.gmra.mrb[0].mxu0 %v2711
        %v2779 = vpop.f32.mrb[0].mxu0
        %v2780 = vadd.f32 0.0, %v2779
        %v2781 = vpop.f32.mrb[0].mxu0
        %2782 = vdwg.mxu0
        %v2784 = vsel %vm1233, %v2616, 0
        %2786 = vmatprep.subr.mxu0 0.0
        %2787 = vmatpush1.msra.mxu0 %v1205
        %2788 = vmatprep.subr.mxu0 0.0
        %2789 = vmatpush1.msra.mxu0 0.0
        %2790 = vmatprep.subr.mxu0 0.0
        %2791 = vmatpush1.msra.mxu0 0.0
        %2792 = vmatprep.subr.mxu0 0.0
        %2793 = vmatpush1.msra.mxu0 0.0
        %2794 = vmatprep.subr.mxu0 0.0
        %2795 = vmatpush1.msra.mxu0 0.0
        %2796 = vmatprep.subr.mxu0 0.0
        %2797 = vmatpush1.msra.mxu0 0.0
        %2798 = vmatprep.subr.mxu0 0.0
        %2799 = vmatpush1.msra.mxu0 0.0
        %2800 = vmatprep.subr.mxu0 0.0
        %2801 = vmatpush1.msra.mxu0 0.0
        %2802 = vmatprep.subr.mxu0 0.0
        %2803 = vmatpush1.msra.mxu0 0.0
        %2804 = vmatprep.subr.mxu0 0.0
        %2805 = vmatpush1.msra.mxu0 0.0
        %2806 = vmatprep.subr.mxu0 0.0
        %2807 = vmatpush1.msra.mxu0 0.0
        %2808 = vmatprep.subr.mxu0 0.0
        %2809 = vmatpush1.msra.mxu0 0.0
        %2810 = vmatprep.subr.mxu0 0.0
        %2811 = vmatpush1.msra.mxu0 0.0
        %2812 = vmatprep.subr.mxu0 0.0
        %2813 = vmatpush1.msra.mxu0 0.0
        %2814 = vmatprep.subr.mxu0 0.0
        %2815 = vmatpush1.msra.mxu0 0.0
        %2816 = vmatprep.subr.mxu0 0.0
        %2817 = vmatpush1.msra.mxu0 0.0
        %2818 = vmatprep.subr.mxu0 0.0
        %2819 = vmatpush1.msra.mxu0 0.0
        %2820 = vmatprep.subr.mxu0 0.0
        %2821 = vmatpush1.msra.mxu0 0.0
        %2822 = vmatprep.subr.mxu0 0.0
        %2823 = vmatpush1.msra.mxu0 0.0
        %2824 = vmatprep.subr.mxu0 0.0
        %2825 = vmatpush1.msra.mxu0 0.0
        %2826 = vmatprep.subr.mxu0 0.0
        %2827 = vmatpush1.msra.mxu0 0.0
        %2828 = vmatprep.subr.mxu0 0.0
        %2829 = vmatpush1.msra.mxu0 0.0
        %2830 = vmatprep.subr.mxu0 0.0
        %2831 = vmatpush1.msra.mxu0 0.0
        %2832 = vmatprep.subr.mxu0 0.0
        %2833 = vmatpush1.msra.mxu0 0.0
        %2834 = vmatprep.subr.mxu0 0.0
        %2835 = vmatpush1.msra.mxu0 0.0
        %2836 = vmatprep.subr.mxu0 0.0
        %2837 = vmatpush1.msra.mxu0 0.0
        %2838 = vmatprep.subr.mxu0 0.0
        %2839 = vmatpush1.msra.mxu0 0.0
        %2840 = vmatprep.subr.mxu0 0.0
        %2841 = vmatpush1.msra.mxu0 0.0
        %2842 = vmatprep.subr.mxu0 0.0
        %2843 = vmatpush1.msra.mxu0 0.0
        %2844 = vmatprep.subr.mxu0 0.0
        %2845 = vmatpush1.msra.mxu0 0.0
        %2846 = vmatprep.subr.mxu0 0.0
        %2847 = vmatpush1.msra.mxu0 0.0
        %2848 = vmatprep.subr.mxu0 0.0
        %2849 = vmatpush1.msra.mxu0 0.0
        %2850 = vmatprep.mubr.f32.mxu0 0.0
        %2851 = vmatmul.mubr.f32.gmra.mrb[0].mxu0 %v2784
        %v2852 = vpop.f32.mrb[0].mxu0
        %v2853 = vadd.f32 0.0, %v2852
        %v2854 = vpop.f32.mrb[0].mxu0
        %2855 = vdwg.mxu0
        %v2857 = vsel %vm1233, %v2634, 0
        %2859 = vmatprep.subr.mxu0 0.0
        %2860 = vmatpush1.msra.mxu0 %v1210
        %2861 = vmatprep.subr.mxu0 0.0
        %2862 = vmatpush1.msra.mxu0 0.0
        %2863 = vmatprep.subr.mxu0 0.0
        %2864 = vmatpush1.msra.mxu0 0.0
        %2865 = vmatprep.subr.mxu0 0.0
        %2866 = vmatpush1.msra.mxu0 0.0
        %2867 = vmatprep.subr.mxu0 0.0
        %2868 = vmatpush1.msra.mxu0 0.0
        %2869 = vmatprep.subr.mxu0 0.0
        %2870 = vmatpush1.msra.mxu0 0.0
        %2871 = vmatprep.subr.mxu0 0.0
        %2872 = vmatpush1.msra.mxu0 0.0
        %2873 = vmatprep.subr.mxu0 0.0
        %2874 = vmatpush1.msra.mxu0 0.0
        %2875 = vmatprep.subr.mxu0 0.0
        %2876 = vmatpush1.msra.mxu0 0.0
        %2877 = vmatprep.subr.mxu0 0.0
        %2878 = vmatpush1.msra.mxu0 0.0
        %2879 = vmatprep.subr.mxu0 0.0
        %2880 = vmatpush1.msra.mxu0 0.0
        %2881 = vmatprep.subr.mxu0 0.0
        %2882 = vmatpush1.msra.mxu0 0.0
        %2883 = vmatprep.subr.mxu0 0.0
        %2884 = vmatpush1.msra.mxu0 0.0
        %2885 = vmatprep.subr.mxu0 0.0
        %2886 = vmatpush1.msra.mxu0 0.0
        %2887 = vmatprep.subr.mxu0 0.0
        %2888 = vmatpush1.msra.mxu0 0.0
        %2889 = vmatprep.subr.mxu0 0.0
        %2890 = vmatpush1.msra.mxu0 0.0
        %2891 = vmatprep.subr.mxu0 0.0
        %2892 = vmatpush1.msra.mxu0 0.0
        %2893 = vmatprep.subr.mxu0 0.0
        %2894 = vmatpush1.msra.mxu0 0.0
        %2895 = vmatprep.subr.mxu0 0.0
        %2896 = vmatpush1.msra.mxu0 0.0
        %2897 = vmatprep.subr.mxu0 0.0
        %2898 = vmatpush1.msra.mxu0 0.0
        %2899 = vmatprep.subr.mxu0 0.0
        %2900 = vmatpush1.msra.mxu0 0.0
        %2901 = vmatprep.subr.mxu0 0.0
        %2902 = vmatpush1.msra.mxu0 0.0
        %2903 = vmatprep.subr.mxu0 0.0
        %2904 = vmatpush1.msra.mxu0 0.0
        %2905 = vmatprep.subr.mxu0 0.0
        %2906 = vmatpush1.msra.mxu0 0.0
        %2907 = vmatprep.subr.mxu0 0.0
        %2908 = vmatpush1.msra.mxu0 0.0
        %2909 = vmatprep.subr.mxu0 0.0
        %2910 = vmatpush1.msra.mxu0 0.0
        %2911 = vmatprep.subr.mxu0 0.0
        %2912 = vmatpush1.msra.mxu0 0.0
        %2913 = vmatprep.subr.mxu0 0.0
        %2914 = vmatpush1.msra.mxu0 0.0
        %2915 = vmatprep.subr.mxu0 0.0
        %2916 = vmatpush1.msra.mxu0 0.0
        %2917 = vmatprep.subr.mxu0 0.0
        %2918 = vmatpush1.msra.mxu0 0.0
        %2919 = vmatprep.subr.mxu0 0.0
        %2920 = vmatpush1.msra.mxu0 0.0
        %2921 = vmatprep.subr.mxu0 0.0
        %2922 = vmatpush1.msra.mxu0 0.0
        %2923 = vmatprep.mubr.f32.mxu0 0.0
        %2924 = vmatmul.mubr.f32.gmra.mrb[0].mxu0 %v2857
        %v2925 = vpop.f32.mrb[0].mxu0
        %v2926 = vadd.f32 0.0, %v2925
        %v2927 = vpop.f32.mrb[0].mxu0
        %2928 = vdwg.mxu0
        %v2930 = vsel %vm1233, %v2625, 0
        %2932 = vmatprep.subr.mxu0 0.0
        %2933 = vmatpush1.msra.mxu0 %v1215
        %2934 = vmatprep.subr.mxu0 0.0
        %2935 = vmatpush1.msra.mxu0 0.0
        %2936 = vmatprep.subr.mxu0 0.0
        %2937 = vmatpush1.msra.mxu0 0.0
        %2938 = vmatprep.subr.mxu0 0.0
        %2939 = vmatpush1.msra.mxu0 0.0
        %2940 = vmatprep.subr.mxu0 0.0
        %2941 = vmatpush1.msra.mxu0 0.0
        %2942 = vmatprep.subr.mxu0 0.0
        %2943 = vmatpush1.msra.mxu0 0.0
        %2944 = vmatprep.subr.mxu0 0.0
        %2945 = vmatpush1.msra.mxu0 0.0
        %2946 = vmatprep.subr.mxu0 0.0
        %2947 = vmatpush1.msra.mxu0 0.0
        %2948 = vmatprep.subr.mxu0 0.0
        %2949 = vmatpush1.msra.mxu0 0.0
        %2950 = vmatprep.subr.mxu0 0.0
        %2951 = vmatpush1.msra.mxu0 0.0
        %2952 = vmatprep.subr.mxu0 0.0
        %2953 = vmatpush1.msra.mxu0 0.0
        %2954 = vmatprep.subr.mxu0 0.0
        %2955 = vmatpush1.msra.mxu0 0.0
        %2956 = vmatprep.subr.mxu0 0.0
        %2957 = vmatpush1.msra.mxu0 0.0
        %2958 = vmatprep.subr.mxu0 0.0
        %2959 = vmatpush1.msra.mxu0 0.0
        %2960 = vmatprep.subr.mxu0 0.0
        %2961 = vmatpush1.msra.mxu0 0.0
        %2962 = vmatprep.subr.mxu0 0.0
        %2963 = vmatpush1.msra.mxu0 0.0
        %2964 = vmatprep.subr.mxu0 0.0
        %2965 = vmatpush1.msra.mxu0 0.0
        %2966 = vmatprep.subr.mxu0 0.0
        %2967 = vmatpush1.msra.mxu0 0.0
        %2968 = vmatprep.subr.mxu0 0.0
        %2969 = vmatpush1.msra.mxu0 0.0
        %2970 = vmatprep.subr.mxu0 0.0
        %2971 = vmatpush1.msra.mxu0 0.0
        %2972 = vmatprep.subr.mxu0 0.0
        %2973 = vmatpush1.msra.mxu0 0.0
        %2974 = vmatprep.subr.mxu0 0.0
        %2975 = vmatpush1.msra.mxu0 0.0
        %2976 = vmatprep.subr.mxu0 0.0
        %2977 = vmatpush1.msra.mxu0 0.0
        %2978 = vmatprep.subr.mxu0 0.0
        %2979 = vmatpush1.msra.mxu0 0.0
        %2980 = vmatprep.subr.mxu0 0.0
        %2981 = vmatpush1.msra.mxu0 0.0
        %2982 = vmatprep.subr.mxu0 0.0
        %2983 = vmatpush1.msra.mxu0 0.0
        %2984 = vmatprep.subr.mxu0 0.0
        %2985 = vmatpush1.msra.mxu0 0.0
        %2986 = vmatprep.subr.mxu0 0.0
        %2987 = vmatpush1.msra.mxu0 0.0
        %2988 = vmatprep.subr.mxu0 0.0
        %2989 = vmatpush1.msra.mxu0 0.0
        %2990 = vmatprep.subr.mxu0 0.0
        %2991 = vmatpush1.msra.mxu0 0.0
        %2992 = vmatprep.subr.mxu0 0.0
        %2993 = vmatpush1.msra.mxu0 0.0
        %2994 = vmatprep.subr.mxu0 0.0
        %2995 = vmatpush1.msra.mxu0 0.0
        %2996 = vmatprep.mubr.f32.mxu0 0.0
        %2997 = vmatmul.mubr.f32.gmra.mrb[0].mxu0 %v2930
        %v2998 = vpop.f32.mrb[0].mxu0
        %v2999 = vadd.f32 0.0, %v2998
        %v3000 = vpop.f32.mrb[0].mxu0
        %3001 = vdwg.mxu0
        %v3003 = vsel %vm1233, %v2635, 0
        %3005 = vmatprep.subr.mxu0 0.0
        %3006 = vmatpush1.msra.mxu0 %v1220
        %3007 = vmatprep.subr.mxu0 0.0
        %3008 = vmatpush1.msra.mxu0 0.0
        %3009 = vmatprep.subr.mxu0 0.0
        %3010 = vmatpush1.msra.mxu0 0.0
        %3011 = vmatprep.subr.mxu0 0.0
        %3012 = vmatpush1.msra.mxu0 0.0
        %3013 = vmatprep.subr.mxu0 0.0
        %3014 = vmatpush1.msra.mxu0 0.0
        %3015 = vmatprep.subr.mxu0 0.0
        %3016 = vmatpush1.msra.mxu0 0.0
        %3017 = vmatprep.subr.mxu0 0.0
        %3018 = vmatpush1.msra.mxu0 0.0
        %3019 = vmatprep.subr.mxu0 0.0
        %3020 = vmatpush1.msra.mxu0 0.0
        %3021 = vmatprep.subr.mxu0 0.0
        %3022 = vmatpush1.msra.mxu0 0.0
        %3023 = vmatprep.subr.mxu0 0.0
        %3024 = vmatpush1.msra.mxu0 0.0
        %3025 = vmatprep.subr.mxu0 0.0
        %3026 = vmatpush1.msra.mxu0 0.0
        %3027 = vmatprep.subr.mxu0 0.0
        %3028 = vmatpush1.msra.mxu0 0.0
        %3029 = vmatprep.subr.mxu0 0.0
        %3030 = vmatpush1.msra.mxu0 0.0
        %3031 = vmatprep.subr.mxu0 0.0
        %3032 = vmatpush1.msra.mxu0 0.0
        %3033 = vmatprep.subr.mxu0 0.0
        %3034 = vmatpush1.msra.mxu0 0.0
        %3035 = vmatprep.subr.mxu0 0.0
        %3036 = vmatpush1.msra.mxu0 0.0
        %3037 = vmatprep.subr.mxu0 0.0
        %3038 = vmatpush1.msra.mxu0 0.0
        %3039 = vmatprep.subr.mxu0 0.0
        %3040 = vmatpush1.msra.mxu0 0.0
        %3041 = vmatprep.subr.mxu0 0.0
        %3042 = vmatpush1.msra.mxu0 0.0
        %3043 = vmatprep.subr.mxu0 0.0
        %3044 = vmatpush1.msra.mxu0 0.0
        %3045 = vmatprep.subr.mxu0 0.0
        %3046 = vmatpush1.msra.mxu0 0.0
        %3047 = vmatprep.subr.mxu0 0.0
        %3048 = vmatpush1.msra.mxu0 0.0
        %3049 = vmatprep.subr.mxu0 0.0
        %3050 = vmatpush1.msra.mxu0 0.0
        %3051 = vmatprep.subr.mxu0 0.0
        %3052 = vmatpush1.msra.mxu0 0.0
        %3053 = vmatprep.subr.mxu0 0.0
        %3054 = vmatpush1.msra.mxu0 0.0
        %3055 = vmatprep.subr.mxu0 0.0
        %3056 = vmatpush1.msra.mxu0 0.0
        %3057 = vmatprep.subr.mxu0 0.0
        %3058 = vmatpush1.msra.mxu0 0.0
        %3059 = vmatprep.subr.mxu0 0.0
        %3060 = vmatpush1.msra.mxu0 0.0
        %3061 = vmatprep.subr.mxu0 0.0
        %3062 = vmatpush1.msra.mxu0 0.0
        %3063 = vmatprep.subr.mxu0 0.0
        %3064 = vmatpush1.msra.mxu0 0.0
        %3065 = vmatprep.subr.mxu0 0.0
        %3066 = vmatpush1.msra.mxu0 0.0
        %3067 = vmatprep.subr.mxu0 0.0
        %3068 = vmatpush1.msra.mxu0 0.0
        %3069 = vmatprep.mubr.f32.mxu0 0.0
        %3070 = vmatmul.mubr.f32.gmra.mrb[0].mxu0 %v3003
        %v3071 = vpop.f32.mrb[0].mxu0
        %v3072 = vadd.f32 0.0, %v3071
        %v3073 = vpop.f32.mrb[0].mxu0
        %3074 = vdwg.mxu0
        %v3076 = vsel %vm1233, %v2632, 0
        %3078 = vmatprep.subr.mxu0 0.0
        %3079 = vmatpush1.msra.mxu0 %v1225
        %3080 = vmatprep.subr.mxu0 0.0
        %3081 = vmatpush1.msra.mxu0 0.0
        %3082 = vmatprep.subr.mxu0 0.0
        %3083 = vmatpush1.msra.mxu0 0.0
        %3084 = vmatprep.subr.mxu0 0.0
        %3085 = vmatpush1.msra.mxu0 0.0
        %3086 = vmatprep.subr.mxu0 0.0
        %3087 = vmatpush1.msra.mxu0 0.0
        %3088 = vmatprep.subr.mxu0 0.0
        %3089 = vmatpush1.msra.mxu0 0.0
        %3090 = vmatprep.subr.mxu0 0.0
        %3091 = vmatpush1.msra.mxu0 0.0
        %3092 = vmatprep.subr.mxu0 0.0
        %3093 = vmatpush1.msra.mxu0 0.0
        %3094 = vmatprep.subr.mxu0 0.0
        %3095 = vmatpush1.msra.mxu0 0.0
        %3096 = vmatprep.subr.mxu0 0.0
        %3097 = vmatpush1.msra.mxu0 0.0
        %3098 = vmatprep.subr.mxu0 0.0
        %3099 = vmatpush1.msra.mxu0 0.0
        %3100 = vmatprep.subr.mxu0 0.0
        %3101 = vmatpush1.msra.mxu0 0.0
        %3102 = vmatprep.subr.mxu0 0.0
        %3103 = vmatpush1.msra.mxu0 0.0
        %3104 = vmatprep.subr.mxu0 0.0
        %3105 = vmatpush1.msra.mxu0 0.0
        %3106 = vmatprep.subr.mxu0 0.0
        %3107 = vmatpush1.msra.mxu0 0.0
        %3108 = vmatprep.subr.mxu0 0.0
        %3109 = vmatpush1.msra.mxu0 0.0
        %3110 = vmatprep.subr.mxu0 0.0
        %3111 = vmatpush1.msra.mxu0 0.0
        %3112 = vmatprep.subr.mxu0 0.0
        %3113 = vmatpush1.msra.mxu0 0.0
        %3114 = vmatprep.subr.mxu0 0.0
        %3115 = vmatpush1.msra.mxu0 0.0
        %3116 = vmatprep.subr.mxu0 0.0
        %3117 = vmatpush1.msra.mxu0 0.0
        %3118 = vmatprep.subr.mxu0 0.0
        %3119 = vmatpush1.msra.mxu0 0.0
        %3120 = vmatprep.subr.mxu0 0.0
        %3121 = vmatpush1.msra.mxu0 0.0
        %3122 = vmatprep.subr.mxu0 0.0
        %3123 = vmatpush1.msra.mxu0 0.0
        %3124 = vmatprep.subr.mxu0 0.0
        %3125 = vmatpush1.msra.mxu0 0.0
        %3126 = vmatprep.subr.mxu0 0.0
        %3127 = vmatpush1.msra.mxu0 0.0
        %3128 = vmatprep.subr.mxu0 0.0
        %3129 = vmatpush1.msra.mxu0 0.0
        %3130 = vmatprep.subr.mxu0 0.0
        %3131 = vmatpush1.msra.mxu0 0.0
        %3132 = vmatprep.subr.mxu0 0.0
        %3133 = vmatpush1.msra.mxu0 0.0
        %3134 = vmatprep.subr.mxu0 0.0
        %3135 = vmatpush1.msra.mxu0 0.0
        %3136 = vmatprep.subr.mxu0 0.0
        %3137 = vmatpush1.msra.mxu0 0.0
        %3138 = vmatprep.subr.mxu0 0.0
        %3139 = vmatpush1.msra.mxu0 0.0
        %3140 = vmatprep.subr.mxu0 0.0
        %3141 = vmatpush1.msra.mxu0 0.0
        %3142 = vmatprep.mubr.f32.mxu0 0.0
        %3143 = vmatmul.mubr.f32.gmra.mrb[0].mxu0 %v3076
        %v3144 = vpop.f32.mrb[0].mxu0
        %v3145 = vadd.f32 0.0, %v3144
        %v3146 = vpop.f32.mrb[0].mxu0
        %3147 = vdwg.mxu0
        %v3149 = vsel %vm1233, %v2636, 0
        %3151 = vmatprep.subr.mxu0 0.0
        %3152 = vmatpush1.msra.mxu0 %v1230
        %3153 = vmatprep.subr.mxu0 0.0
        %3154 = vmatpush1.msra.mxu0 0.0
        %3155 = vmatprep.subr.mxu0 0.0
        %3156 = vmatpush1.msra.mxu0 0.0
        %3157 = vmatprep.subr.mxu0 0.0
        %3158 = vmatpush1.msra.mxu0 0.0
        %3159 = vmatprep.subr.mxu0 0.0
        %3160 = vmatpush1.msra.mxu0 0.0
        %3161 = vmatprep.subr.mxu0 0.0
        %3162 = vmatpush1.msra.mxu0 0.0
        %3163 = vmatprep.subr.mxu0 0.0
        %3164 = vmatpush1.msra.mxu0 0.0
        %3165 = vmatprep.subr.mxu0 0.0
        %3166 = vmatpush1.msra.mxu0 0.0
        %3167 = vmatprep.subr.mxu0 0.0
        %3168 = vmatpush1.msra.mxu0 0.0
        %3169 = vmatprep.subr.mxu0 0.0
        %3170 = vmatpush1.msra.mxu0 0.0
        %3171 = vmatprep.subr.mxu0 0.0
        %3172 = vmatpush1.msra.mxu0 0.0
        %3173 = vmatprep.subr.mxu0 0.0
        %3174 = vmatpush1.msra.mxu0 0.0
        %3175 = vmatprep.subr.mxu0 0.0
        %3176 = vmatpush1.msra.mxu0 0.0
        %3177 = vmatprep.subr.mxu0 0.0
        %3178 = vmatpush1.msra.mxu0 0.0
        %3179 = vmatprep.subr.mxu0 0.0
        %3180 = vmatpush1.msra.mxu0 0.0
        %3181 = vmatprep.subr.mxu0 0.0
        %3182 = vmatpush1.msra.mxu0 0.0
        %3183 = vmatprep.subr.mxu0 0.0
        %3184 = vmatpush1.msra.mxu0 0.0
        %3185 = vmatprep.subr.mxu0 0.0
        %3186 = vmatpush1.msra.mxu0 0.0
        %3187 = vmatprep.subr.mxu0 0.0
        %3188 = vmatpush1.msra.mxu0 0.0
        %3189 = vmatprep.subr.mxu0 0.0
        %3190 = vmatpush1.msra.mxu0 0.0
        %3191 = vmatprep.subr.mxu0 0.0
        %3192 = vmatpush1.msra.mxu0 0.0
        %3193 = vmatprep.subr.mxu0 0.0
        %3194 = vmatpush1.msra.mxu0 0.0
        %3195 = vmatprep.subr.mxu0 0.0
        %3196 = vmatpush1.msra.mxu0 0.0
        %3197 = vmatprep.subr.mxu0 0.0
        %3198 = vmatpush1.msra.mxu0 0.0
        %3199 = vmatprep.subr.mxu0 0.0
        %3200 = vmatpush1.msra.mxu0 0.0
        %3201 = vmatprep.subr.mxu0 0.0
        %3202 = vmatpush1.msra.mxu0 0.0
        %3203 = vmatprep.subr.mxu0 0.0
        %3204 = vmatpush1.msra.mxu0 0.0
        %3205 = vmatprep.subr.mxu0 0.0
        %3206 = vmatpush1.msra.mxu0 0.0
        %3207 = vmatprep.subr.mxu0 0.0
        %3208 = vmatpush1.msra.mxu0 0.0
        %3209 = vmatprep.subr.mxu0 0.0
        %3210 = vmatpush1.msra.mxu0 0.0
        %3211 = vmatprep.subr.mxu0 0.0
        %3212 = vmatpush1.msra.mxu0 0.0
        %3213 = vmatprep.subr.mxu0 0.0
        %3214 = vmatpush1.msra.mxu0 0.0
        %3215 = vmatprep.mubr.f32.mxu0 0.0
        %3216 = vmatmul.mubr.f32.gmra.mrb[0].mxu0 %v3149
        %v3217 = vpop.f32.mrb[0].mxu0
        %v3218 = vadd.f32 0.0, %v3217
        %v3219 = vpop.f32.mrb[0].mxu0
        %3220 = vdwg.mxu0
        %v3221 = vcombine.low %v2347, %v2493
        %v3222 = vcombine.high %v2347, %v2493
        %v3224 = vunpack.c.l.s4 1983009808
        %v3225 = vunpack.c.0.s8 %v3224
        %v3226 = vlaneseq
        %v3227 = vshrl.u32 %v3226, 7
        %v3228 = vsub.s32 %v3225, %v3227
        %v3229 = vrot.slane %v3221, %v3228
        %v3231 = vunpack.c.l.s4 1983009808
        %v3232 = vunpack.c.0.s8 %v3231
        %v3233 = vlaneseq
        %v3234 = vshrl.u32 %v3233, 7
        %v3235 = vsub.s32 %v3232, %v3234
        %v3236 = vrot.slane %v3222, %v3235
        %v3237 = vcombine.low %v2420, %v2566
        %v3238 = vcombine.high %v2420, %v2566
        %v3240 = vunpack.c.l.s4 1983009808
        %v3241 = vunpack.c.0.s8 %v3240
        %v3242 = vlaneseq
        %v3243 = vshrl.u32 %v3242, 7
        %v3244 = vsub.s32 %v3241, %v3243
        %v3245 = vrot.slane %v3237, %v3244
        %v3247 = vunpack.c.l.s4 1983009808
        %v3248 = vunpack.c.0.s8 %v3247
        %v3249 = vlaneseq
        %v3250 = vshrl.u32 %v3249, 7
        %v3251 = vsub.s32 %v3248, %v3250
        %v3252 = vrot.slane %v3238, %v3251
        %v3253 = vcombine.low %v3229, %v3245
        %v3254 = vcombine.high %v3229, %v3245
        %v3256 = vunpack.c.l.s4 1934713408
        %v3257 = vunpack.c.0.s8 %v3256
        %v3258 = vlaneseq
        %v3259 = vshrl.u32 %v3258, 7
        %v3260 = vsub.s32 %v3257, %v3259
        %v3261 = vrot.slane %v3253, %v3260
        %v3263 = vunpack.c.l.s4 1934713408
        %v3264 = vunpack.c.0.s8 %v3263
        %v3265 = vlaneseq
        %v3266 = vshrl.u32 %v3265, 7
        %v3267 = vsub.s32 %v3264, %v3266
        %v3268 = vrot.slane %v3254, %v3267
        %v3269 = vcombine.low %v3236, %v3252
        %v3270 = vcombine.high %v3236, %v3252
        %v3272 = vunpack.c.l.s4 1934713408
        %v3273 = vunpack.c.0.s8 %v3272
        %v3274 = vlaneseq
        %v3275 = vshrl.u32 %v3274, 7
        %v3276 = vsub.s32 %v3273, %v3275
        %v3277 = vrot.slane %v3269, %v3276
        %v3279 = vunpack.c.l.s4 1934713408
        %v3280 = vunpack.c.0.s8 %v3279
        %v3281 = vlaneseq
        %v3282 = vshrl.u32 %v3281, 7
        %v3283 = vsub.s32 %v3280, %v3282
        %v3284 = vrot.slane %v3270, %v3283
        %v3285 = vcombine.high %v3261, 0.0
        %v3286 = vcombine.high %v3268, 0.0
        %v3287 = vcombine.high %v3277, 0.0
        %v3288 = vcombine.high %v3284, 0.0
        %v3289 = vadd.f32 %v3261, %v2707
        %v3290 = vadd.f32 %v3285, %v2780
        %v3291 = vadd.f32 %v3268, %v2853
        %v3292 = vadd.f32 %v3286, %v2926
        %v3293 = vadd.f32 %v3277, %v2999
        %v3294 = vadd.f32 %v3287, %v3072
        %v3295 = vadd.f32 %v3284, %v3145
        %v3296 = vadd.f32 %v3288, %v3218
        %v3297 = vcombine.low %v3289, %v3291
        %v3299 = vunpack.c.l.s4 1983009808
        %v3300 = vunpack.c.0.s8 %v3299
        %v3301 = vlaneseq
        %v3302 = vshrl.u32 %v3301, 7
        %v3303 = vsub.s32 %v3300, %v3302
        %v3304 = vrot.slane %v3297, %v3303
        %v3305 = vcombine.low %v3290, %v3292
        %v3307 = vunpack.c.l.s4 1983009808
        %v3308 = vunpack.c.0.s8 %v3307
        %v3309 = vlaneseq
        %v3310 = vshrl.u32 %v3309, 7
        %v3311 = vsub.s32 %v3308, %v3310
        %v3312 = vrot.slane %v3305, %v3311
        %v3313 = vcombine.low %v3293, %v3295
        %v3315 = vunpack.c.l.s4 1983009808
        %v3316 = vunpack.c.0.s8 %v3315
        %v3317 = vlaneseq
        %v3318 = vshrl.u32 %v3317, 7
        %v3319 = vsub.s32 %v3316, %v3318
        %v3320 = vrot.slane %v3313, %v3319
        %v3321 = vcombine.low %v3294, %v3296
        %v3323 = vunpack.c.l.s4 1983009808
        %v3324 = vunpack.c.0.s8 %v3323
        %v3325 = vlaneseq
        %v3326 = vshrl.u32 %v3325, 7
        %v3327 = vsub.s32 %v3324, %v3326
        %v3328 = vrot.slane %v3321, %v3327
        %v3329 = vcombine.low %v3304, %v3312
        %v3330 = vcombine.high %v3304, %v3312
        %v3332 = vunpack.c.l.s4 1934713408
        %v3333 = vunpack.c.0.s8 %v3332
        %v3334 = vlaneseq
        %v3335 = vshrl.u32 %v3334, 7
        %v3336 = vsub.s32 %v3333, %v3335
        %v3337 = vrot.slane %v3329, %v3336
        %v3339 = vunpack.c.l.s4 1934713408
        %v3340 = vunpack.c.0.s8 %v3339
        %v3341 = vlaneseq
        %v3342 = vshrl.u32 %v3341, 7
        %v3343 = vsub.s32 %v3340, %v3342
        %v3344 = vrot.slane %v3330, %v3343
        %v3345 = vcombine.low %v3320, %v3328
        %v3346 = vcombine.high %v3320, %v3328
        %v3348 = vunpack.c.l.s4 1934713408
        %v3349 = vunpack.c.0.s8 %v3348
        %v3350 = vlaneseq
        %v3351 = vshrl.u32 %v3350, 7
        %v3352 = vsub.s32 %v3349, %v3351
        %v3353 = vrot.slane %v3345, %v3352
        %v3355 = vunpack.c.l.s4 1934713408
        %v3356 = vunpack.c.0.s8 %v3355
        %v3357 = vlaneseq
        %v3358 = vshrl.u32 %v3357, 7
        %v3359 = vsub.s32 %v3356, %v3358
        %v3360 = vrot.slane %v3346, %v3359
        %v3361 = vcombine.low %v3337, %v3353
        %v3362 = vcombine.high %v3337, %v3353
        %v3363 = vcombine.low %v3344, %v3360
        %v3364 = vcombine.high %v3344, %v3360
        %3366 = vrot.lane.b32.xlu0 %v3362, 8
        %v3367 = vpop.permute.xlu0 %3366
        %3370 = vrot.lane.b32.xlu0 %v3363, 16
        %v3371 = vpop.permute.xlu0 %3370
        %3374 = vrot.lane.b32.xlu0 %v3364, 24
        %v3375 = vpop.permute.xlu0 %3374
        %v3377 = vsel %vm1233, %v3361, %v3367
        %vm3378 = vcmask 130048
        %v3379 = vsel %vm3378, %v3377, %v3371
        %vm3380 = vcmask 195584
        %v3381 = vsel %vm3380, %v3379, %v3375
        %3382 = vst.msk [vmem:[%s361] sm:$0xff] %vm388, %v3381
        %3383 = vst.msk [vmem:[%s368] sm:$0xff] %vm1233, %v2273
        %3384 = vst.msk [vmem:[%s368 + $0x8] sm:$0xff] %vm1233, %v2274
        %3385 = vst.msk [vmem:[%s368 + $0x10] sm:$0xff] %vm1233, %v2275
        %3386 = vst.msk [vmem:[%s368 + $0x18] sm:$0xff] %vm1233, %v2276
        %s3387 = sand.u32 %s200, 1
        %s3388 = scalar_lea.sflag [#allocation4], %s3387
        %s3389 = sand.u32 %s200, 1
        %s3390 = smul.addr %s3389, 8
        %s3391 = scalar_lea.vmem [#allocation7], %s3390
        %s3392 = sand.u32 %s226, 1
        %s3393 = scalar_lea.sflag [#allocation9], %s3392
        %s3394 = sand.u32 %s226, 1
        %s3395 = smul.addr %s3394, 32
        %s3396 = scalar_lea.vmem [#allocation8], %s3395
        // Predicated region
        $region57: #{tpu_custom_call.1} parent=47 // pred_check
          %p3397 = pneg %p210
        $region58: #{tpu_custom_call.1} parent=47 // pred_check_branch
          %3399 = sbr.rel (%p3397) target = $region60
        $region59: #{tpu_custom_call.1} parent=47 // pred_region
          %s3401 = ssub.s32 128, 128
          %3402 = vsyncadd %s3388, %s3401
          %s3403 = smul.addr %s30, 128
          %s3404 = scalar_lea.hbm %s7, %s3403
          %s3406 = sshll.u32 %s3391, 4
          %s3407 = int_to_ptr.vmem [resolvable:$true] %s3406
          %3409 = dma.vmem_to_hbm [thread:$0]  %s3407, 128, %s3404, %s3388
        $region60: #{tpu_custom_call.1} parent=47 // pred_fallthru
          _
        // Predicated region
        $region61: #{tpu_custom_call.1} parent=47 // pred_check
          %p3410 = pneg %p236
        $region62: #{tpu_custom_call.1} parent=47 // pred_check_branch
          %3412 = sbr.rel (%p3410) target = $region64
        $region63: #{tpu_custom_call.1} parent=47 // pred_region
          %s3414 = ssub.s32 512, 512
          %3415 = vsyncadd %s3393, %s3414
          %s3416 = smul.addr %s30, 4
          %s3417 = smul.addr %s3416, 128
          %s3418 = scalar_lea.hbm %s8, %s3417
          %s3419 = sshll.u32 %s3396, 4
          %s3420 = int_to_ptr.vmem [resolvable:$true] %s3419
          %3425 = dma.vmem_to_hbm [thread:$0]  %s3420, 512, %s3418, %s3393, 128, 128, 8
        $region64: #{tpu_custom_call.1} parent=47 // pred_fallthru
          _
      $region48: #{tpu_custom_call.1} parent=5 // pred_fallthru
        _
      %p3426 = scmp.le.s32.totalorder 2, %s25
      // Predicated region
      $region65: #{tpu_custom_call.1} parent=5 // pred_check
        %p3427 = pneg %p3426
      $region66: #{tpu_custom_call.1} parent=5 // pred_check_branch
        %3429 = sbr.rel (%p3427) target = $region68
      $region67: #{tpu_custom_call.1} parent=5 // pred_region
        %s3430 = ssub.s32 %s25, 2
        // Predicated region
        $region69: #{tpu_custom_call.1} parent=67 // pred_check
          %p3431 = pneg %p216
        $region70: #{tpu_custom_call.1} parent=67 // pred_check_branch
          %3433 = sbr.rel (%p3431) target = $region72
        $region71: #{tpu_custom_call.1} parent=67 // pred_region
          %s3434 = sand.u32 %s201, 1
          %s3435 = scalar_lea.sflag [#allocation4], %s3434
          %s3436 = sand.u32 %s201, 1
          %s3437 = smul.addr %s3436, 8
          %s3438 = scalar_lea.vmem [#allocation7], %s3437
          %3439 = dma.done %s3435, 128
        $region72: #{tpu_custom_call.1} parent=67 // pred_fallthru
          _
        // Predicated region
        $region73: #{tpu_custom_call.1} parent=67 // pred_check
          %p3440 = pneg %p242
        $region74: #{tpu_custom_call.1} parent=67 // pred_check_branch
          %3442 = sbr.rel (%p3440) target = $region76
        $region75: #{tpu_custom_call.1} parent=67 // pred_region
          %s3443 = sand.u32 %s227, 1
          %s3444 = scalar_lea.sflag [#allocation9], %s3443
          %s3445 = sand.u32 %s227, 1
          %s3446 = smul.addr %s3445, 32
          %s3447 = scalar_lea.vmem [#allocation8], %s3446
          %3448 = dma.done %s3444, 512
        $region76: #{tpu_custom_call.1} parent=67 // pred_fallthru
          _
      $region68: #{tpu_custom_call.1} parent=5 // pred_fallthru
        _
    $region6: #{tpu_custom_call.1} parent=1 // loop_footer
      %s29 = sadd.s32 1, %s25
    $region7: #{tpu_custom_call.1} parent=1 // loop_footer_branch
      %24 = sbr.rel target = $region3
    $region8: #{tpu_custom_call.1} parent=1 // loop_exit
      _
    %3449 = vsyncpa [#allocation3], 1
    %s3450 = scalar_lea.sflag [#allocation3], 1
    %3451 = vsyncpa %s3450, 1
    %3452 = vsyncpa [#allocation6], 1
    %s3453 = scalar_lea.sflag [#allocation6], 1
    %3454 = vsyncpa %s3453, 1
    %3455 = vsyncpa [#allocation4], 1
    %s3456 = scalar_lea.sflag [#allocation4], 1
    %3457 = vsyncpa %s3456, 1
    %3458 = vsyncpa [#allocation9], 1
    %s3459 = scalar_lea.sflag [#allocation9], 1
    %3460 = vsyncpa %s3459, 1

</llo_original>
